<compile_context>
chip_gen: v7x
topology: tpu7x:2x2x1
jax: 0.10.0
libtpu: 0.0.40
codegen_flags: <defaults>
</compile_context>

<pallas_src>
import functools
import math

import jax
import jax.numpy as jnp
from jax.experimental import pallas as pl
from jax.experimental.pallas import tpu as pltpu

EPS_LN = 1e-5


# ----------------------------------------------------------------------------
# Pallas kernel: one TransformerBlock per grid step (layer axis = streamed grid
# dim), Bblk samples per block, final L2 normalize on the last layer step.
# ----------------------------------------------------------------------------
def _bert_layer_kernel(x_ref, ln1_g_ref, ln1_b_ref, wqkv_ref, bqkv_ref,
                       wo_ref, bo_ref, ln2_g_ref, ln2_b_ref,
                       w1_ref, b1_ref, w2_ref, b2_ref, o_ref, acc_ref,
                       *, n_heads, d_real, hd_pad, matmul_dtype):
    li = pl.program_id(1)
    n_layers = pl.num_programs(1)
    Bblk, S, Dp = x_ref.shape
    M = Bblk * S
    H = n_heads
    hdp = hd_pad
    mm = matmul_dtype
    inv_n = 1.0 / float(S * d_real)            # joint-LN divisor uses REAL (S, D)

    # Load the embeddings into the layer-carried VMEM accumulator at layer 0.
    @pl.when(li == 0)
    def _():
        acc_ref[...] = x_ref[...].reshape(M, Dp)

    x = acc_ref[...]                           # (M, Dp) f32, padded lanes are 0

    if d_real < Dp:                            # mask padded lanes for the LN variance
        lane_mask = (jax.lax.broadcasted_iota(jnp.int32, (1, 1, Dp), 2)
                     < d_real).astype(jnp.float32)
    else:
        lane_mask = None

    def joint_layernorm(z2, g_ref, b_ref):
        # nn.LayerNorm((seq_len, h_dim)): per-sample stats over (S, D), two-pass.
        z3 = z2.reshape(Bblk, S, Dp)
        mu = z3.sum(axis=2, keepdims=True).sum(axis=1, keepdims=True) * inv_n
        zc = z3 - mu
        if lane_mask is not None:
            zc = zc * lane_mask                # padded lanes must not bias the variance
        var = (zc * zc).sum(axis=2, keepdims=True).sum(axis=1, keepdims=True) * inv_n
        zn = zc * jax.lax.rsqrt(var + EPS_LN) * g_ref[...] + b_ref[...]
        return zn.reshape(M, Dp)               # padded gamma/beta are 0 -> lanes stay 0

    # ---------------- LN1 + multi-head self-attention ------------------------
    x1 = joint_layernorm(x, ln1_g_ref, ln1_b_ref).astype(mm)
    qkv = jnp.dot(x1, wqkv_ref[0], preferred_element_type=jnp.float32) + bqkv_ref[0]
    qkv = qkv.astype(mm)                       # (M, 3*H*hdp), one cast

    attn = None
    for h in range(H):                         # 128-lane aligned slices, no stack/concat
        q = qkv[:, h * hdp:(h + 1) * hdp].reshape(Bblk, S, hdp)
        k = qkv[:, (H + h) * hdp:(H + h + 1) * hdp].reshape(Bblk, S, hdp)
        v = qkv[:, (2 * H + h) * hdp:(2 * H + h + 1) * hdp].reshape(Bblk, S, hdp)
        # 1/sqrt(head_dim) is folded into the q weights/bias at pack time.
        s = jnp.einsum('bqd,bkd->bqk', q, k, preferred_element_type=jnp.float32)
        s = s - jnp.max(s, axis=-1, keepdims=True)
        p = jnp.exp(s)
        p = p * pl.reciprocal(jnp.sum(p, axis=-1, keepdims=True), approx=True)
        # TODO(synk): attention dropout (train mode) treated as identity (eval mode).
        ctx = jnp.einsum('bqk,bkd->bqd', p.astype(mm), v,
                         preferred_element_type=jnp.float32)           # (Bblk, S, hdp)
        # Head concat folded into the out-projection: per-head (hdp, Dp) matmul,
        # summed over heads in f32 (the sum rides the contraction / accumulator).
        part = jnp.dot(ctx.reshape(M, hdp).astype(mm), wo_ref[0, h],
                       preferred_element_type=jnp.float32)             # (M, Dp)
        attn = part if attn is None else attn + part
    x = x + attn + bo_ref[0]                   # residual 1

    # ---------------- LN2 + PositionwiseFFN (SiLU) ----------------------------
    x2 = joint_layernorm(x, ln2_g_ref, ln2_b_ref).astype(mm)
    h1 = jnp.dot(x2, w1_ref[0], preferred_element_type=jnp.float32) + b1_ref[0]
    h1 = jax.nn.sigmoid(h1) * h1
    # TODO(synk): nn.Dropout() (train mode, p=0.5) treated as identity (eval mode).
    y = jnp.dot(h1.astype(mm), w2_ref[0], preferred_element_type=jnp.float32) + b2_ref[0]
    x = x + y                                  # residual 2

    acc_ref[...] = x                           # carry to the next layer grid step

    # ---------------- F.normalize(x, dim=2) after the last layer -------------
    @pl.when(li == n_layers - 1)
    def _():
        xo = x.reshape(Bblk, S, Dp)
        ss = jnp.sum(xo * xo, axis=-1, keepdims=True)   # padded lanes are 0 -> exact
        o_ref[...] = xo * jax.lax.rsqrt(jnp.maximum(ss, 1e-24))


# ----------------------------------------------------------------------------
# Pallas wrapper
# ----------------------------------------------------------------------------
def _round_up(v, m):
    return ((v + m - 1) // m) * m


def _pick_batch_block(batch, seq_len, target_rows=256):
    # Largest divisor of `batch` whose row count (Bblk * S) stays <= target_rows
    # (enough MXU M rows without blowing up VMEM / vregs).
    best = 1
    for d in range(1, batch + 1):
        if batch % d == 0 and d * seq_len <= max(target_rows, seq_len):
            best = d
    return best


def fused_transformer_l2norm(x, packed):
    tensors, meta = packed
    B, S, D = x.shape
    Dp, L = meta["d_pad"], meta["n_layers"]
    assert S == meta["seq_len"] and S % 8 == 0, "seq_len must be a multiple of 8"
    if Dp > D:
        x = jnp.pad(x, ((0, 0), (0, 0), (0, Dp - D)))   # lane-dense activations

    b_blk = _pick_batch_block(B, S)
    kernel = functools.partial(
        _bert_layer_kernel,
        n_heads=meta["n_heads"], d_real=meta["d_real"],
        hd_pad=meta["hd_pad"], matmul_dtype=meta["matmul_dtype"])

    act_spec = pl.BlockSpec((b_blk, S, Dp), lambda b, l: (b, 0, 0))
    in_specs = [act_spec]
    # Per-layer weight streaming: each weight block index follows the layer axis,
    # so only ~2 layers of weights are resident (double-buffered) at any time.
    for t in tensors:
        nd = t.ndim
        in_specs.append(pl.BlockSpec((1,) + t.shape[1:],
                                     lambda b, l, nd=nd: (l,) + (0,) * (nd - 1)))

    # Explicit scoped-VMEM budget: 2 pipeline buffers per streamed weight tensor
    # + double-buffered activation blocks + the layer-carry scratch + headroom.
    weight_block_bytes = sum(math.prod(t.shape[1:]) * t.dtype.itemsize for t in tensors)
    act_block_bytes = b_blk * S * Dp * 4
    vmem_limit = int(min(100 << 20,
                         max(32 << 20,
                             2 * weight_block_bytes + 5 * act_block_bytes + (8 << 20))))

    out = pl.pallas_call(
        kernel,
        out_shape=jax.ShapeDtypeStruct((B, S, Dp), jnp.float32),
        grid=(B // b_blk, L),
        in_specs=in_specs,
        out_specs=pl.BlockSpec((b_blk, S, Dp), lambda b, l: (b, 0, 0)),
        scratch_shapes=[pltpu.VMEM((b_blk * S, Dp), jnp.float32)],
        compiler_params=pltpu.CompilerParams(
            dimension_semantics=("parallel", "arbitrary"),
            vmem_limit_bytes=vmem_limit),
    )(x, *tensors)
    return out[:, :, :D]


# ----------------------------------------------------------------------------
# One-time parameter packing: transpose to (in, out), fold the attention scale
# into q, pad every matmul operand to 128-lane multiples (per-head dim to a
# full 128-lane group), split the out-projection per head, stack over layers,
# optionally cast matmul weights to bf16.
# ----------------------------------------------------------------------------
def pack_params(params, *, n_heads, matmul_dtype=jnp.bfloat16):
    _, pos_enc, layers = params
    S, D = pos_enc.shape
    H = n_heads
    hd = D // H
    Dp = _round_up(D, 128)
    hdp = _round_up(hd, 128)          # per-head dim -> full, vreg-aligned lane group
    Fp = _round_up(4 * D, 128)
    q_scale = 1.0 / (hd ** 0.5)

    def pad2(a, rows, cols):
        return jnp.pad(a, ((0, rows - a.shape[0]), (0, cols - a.shape[1])))

    stacked = [[] for _ in range(12)]
    for (ln1_g, ln1_b, wqkv, bqkv, wo, bo, ln2_g, ln2_b, w1, b1, w2, b2) in layers:
        wqkvT = wqkv.T                                       # (D, 3D), [q|k|v] head-major
        w_cols, b_cols = [], []
        for j in range(3):                                   # q, k, v
            scale = q_scale if j == 0 else 1.0               # fold 1/sqrt(hd) into q
            for h in range(H):
                sl = slice(j * D + h * hd, j * D + (h + 1) * hd)
                w_cols.append(pad2(wqkvT[:, sl] * scale, Dp, hdp))
                b_cols.append(jnp.pad(bqkv[:, sl] * scale, ((0, 0), (0, hdp - hd))))
        wqkv_p = jnp.concatenate(w_cols, axis=1).astype(matmul_dtype)   # (Dp, 3*H*hdp)
        bqkv_p = jnp.concatenate(b_cols, axis=1)                        # (1, 3*H*hdp)

        woT = wo.T                                           # (H*hd, D), head-major rows
        wo_p = jnp.stack([pad2(woT[h * hd:(h + 1) * hd, :], hdp, Dp) for h in range(H)],
                         axis=0).astype(matmul_dtype)        # (H, hdp, Dp)
        bo_p = jnp.pad(bo, ((0, 0), (0, Dp - D)))

        w1_p = pad2(w1.T, Dp, Fp).astype(matmul_dtype)       # (Dp, Fp)
        b1_p = jnp.pad(b1, ((0, 0), (0, Fp - 4 * D)))
        w2_p = pad2(w2.T, Fp, Dp).astype(matmul_dtype)       # (Fp, Dp)
        b2_p = jnp.pad(b2, ((0, 0), (0, Dp - D)))
        ln1_g_p = jnp.pad(ln1_g, ((0, 0), (0, Dp - D)))      # padded gamma/beta = 0
        ln1_b_p = jnp.pad(ln1_b, ((0, 0), (0, Dp - D)))
        ln2_g_p = jnp.pad(ln2_g, ((0, 0), (0, Dp - D)))
        ln2_b_p = jnp.pad(ln2_b, ((0, 0), (0, Dp - D)))

        for idx, a in enumerate((ln1_g_p, ln1_b_p, wqkv_p, bqkv_p, wo_p, bo_p,
                                 ln2_g_p, ln2_b_p, w1_p, b1_p, w2_p, b2_p)):
            stacked[idx].append(a)

    tensors = tuple(jnp.stack(s, axis=0) for s in stacked)   # leading layer axis
    meta = dict(n_layers=len(layers), n_heads=H, d_real=D, hd_pad=hdp, d_pad=Dp,
                f_pad=Fp, seq_len=S, matmul_dtype=matmul_dtype)
    return tensors, meta


# ----------------------------------------------------------------------------
# Model glue (tokenizer stand-in, parameter init, full forward)
# ----------------------------------------------------------------------------
def fake_vqvae_encode(img, vocab_size, stride=6):
    # TODO(synk): the real VQVAE encoder (class not provided; frozen weights
    # loaded from '../model/vqvae_hard_biggerset_011.pt') cannot be translated;
    # this deterministic stand-in produces a (B, H//stride, W//stride) int32
    # token map in [0, vocab_size), matching the shape contract of encode()[2].
    B, C, H, W = img.shape
    Hp, Wp = H // stride, W // stride
    pooled = img[:, :, :Hp * stride, :Wp * stride]
    pooled = pooled.reshape(B, C, Hp, stride, Wp, stride).mean(axis=(3, 5))
    feat = pooled.mean(axis=1)                                   # (B, Hp, Wp)
    ids = jnp.floor(jax.nn.sigmoid(feat * 3.0) * vocab_size).astype(jnp.int32)
    return ids % vocab_size


def init_params(key, vocab_size, seq_len, n_layers, n_heads, h_dim):
    keys = jax.random.split(key, 2 + n_layers)
    embedding = jax.random.normal(keys[0], (vocab_size + 1, h_dim), jnp.float32)
    pos_enc = jax.random.normal(keys[1], (seq_len, h_dim), jnp.float32)

    def linear(k, fan_out, fan_in):
        bound = 1.0 / (fan_in ** 0.5)
        kw, kb = jax.random.split(k)
        w = jax.random.uniform(kw, (fan_out, fan_in), jnp.float32, -bound, bound)
        b = jax.random.uniform(kb, (1, fan_out), jnp.float32, -bound, bound)
        return w, b

    layers = []
    for li in range(n_layers):
        lk = jax.random.split(keys[2 + li], 4)
        ln1_g = jnp.ones((seq_len, h_dim), jnp.float32)
        ln1_b = jnp.zeros((seq_len, h_dim), jnp.float32)
        ln2_g = jnp.ones((seq_len, h_dim), jnp.float32)
        ln2_b = jnp.zeros((seq_len, h_dim), jnp.float32)
        wqkv, bqkv = linear(lk[0], 3 * h_dim, h_dim)
        wo, bo = linear(lk[1], h_dim, h_dim)
        w1, b1 = linear(lk[2], 4 * h_dim, h_dim)
        w2, b2 = linear(lk[3], h_dim, 4 * h_dim)
        layers.append((ln1_g, ln1_b, wqkv, bqkv, wo, bo,
                       ln2_g, ln2_b, w1, b1, w2, b2))
    return embedding, pos_enc, layers


def vq_image_bert_forward(img, params, packed, mask_key, *, vocab_size):
    embedding, pos_enc, _ = params
    ids = fake_vqvae_encode(img, vocab_size)                     # (B, Hp, Wp)
    B = ids.shape[0]
    t = ids.reshape(B, -1)                                       # (B, S)
    e = jnp.take(embedding, t, axis=0)                           # (B, S, D)
    # torch.rand(t.shape) > 0.85  (randomness reproduced with a fixed JAX key)
    mask = jax.random.uniform(mask_key, t.shape) > 0.85
    t_m = jnp.where(mask, 8192, t)                               # mask id == vocab_size
    x = jnp.take(embedding, t_m, axis=0) + pos_enc               # + position_encoding
    x = fused_transformer_l2norm(x, packed)                      # all layers + L2 norm
    return x, t, e, t_m


# ----------------------------------------------------------------------------
# Pure-JAX reference (correctness check of the Pallas kernel)
# ----------------------------------------------------------------------------
def _ref_block(x, p, n_heads):
    ln1_g, ln1_b, wqkv, bqkv, wo, bo, ln2_g, ln2_b, w1, b1, w2, b2 = p
    B, S, D = x.shape
    hd = D // n_heads

    def ln(z, g, b):
        mu = z.mean(axis=(1, 2), keepdims=True)
        var = ((z - mu) ** 2).mean(axis=(1, 2), keepdims=True)
        return (z - mu) / jnp.sqrt(var + EPS_LN) * g + b

    x1 = ln(x, ln1_g, ln1_b)
    qkv = x1 @ wqkv.T + bqkv[0]
    q, k, v = qkv[..., :D], qkv[..., D:2 * D], qkv[..., 2 * D:]
    sp = lambda z: z.reshape(B, S, n_heads, hd).transpose(0, 2, 1, 3)
    s = jnp.einsum('bhsd,bhtd->bhst', sp(q), sp(k)) / (hd ** 0.5)
    a = jax.nn.softmax(s, axis=-1)
    o = jnp.einsum('bhst,bhtd->bhsd', a, sp(v)).transpose(0, 2, 1, 3).reshape(B, S, D)
    o = o @ wo.T + bo[0]
    x1r = o + x
    x2 = ln(x1r, ln2_g, ln2_b)
    h1 = x2 @ w1.T + b1[0]
    h1 = jax.nn.sigmoid(h1) * h1
    return h1 @ w2.T + b2[0] + x1r


def _ref_forward(img, params, mask_key, *, vocab_size, n_heads):
    embedding, pos_enc, layers = params
    ids = fake_vqvae_encode(img, vocab_size)
    B = ids.shape[0]
    t = ids.reshape(B, -1)
    mask = jax.random.uniform(mask_key, t.shape) > 0.85
    t_m = jnp.where(mask, 8192, t)
    x = jnp.take(embedding, t_m, axis=0) + pos_enc
    for p in layers:
        x = _ref_block(x, p, n_heads)
    nrm = jnp.sqrt(jnp.sum(x * x, axis=-1, keepdims=True))
    return x / jnp.maximum(nrm, 1e-12)


# ----------------------------------------------------------------------------
if __name__ == "__main__":
    # image (2, 3, 24, 24) -> stride-6 tokenizer -> (2, 4, 4) tokens -> S = 16;
    # h_dim = 32 (padded to 128 lanes), 4 heads (head dim padded to a full
    # 128-lane group), 2 layers streamed through the layer grid axis.
    vocab_size = 8192            # matches the hard-coded mask id 8192 (== vocab_size)
    seq_len = 16
    n_layers = 2
    n_heads = 4
    h_dim = 32

    root = jax.random.PRNGKey(0)
    k_img, k_params, k_mask = jax.random.split(root, 3)

    img = jax.random.normal(k_img, (2, 3, 24, 24), jnp.float32)   # NCHW
    params = init_params(k_params, vocab_size, seq_len, n_layers, n_heads, h_dim)
    ref = _ref_forward(img, params, k_mask, vocab_size=vocab_size, n_heads=n_heads)

    # --- f32 matmul path (v5e-friendly, zero casts): strict correctness check -
    packed_f32 = pack_params(params, n_heads=n_heads, matmul_dtype=jnp.float32)
    out, t, e, t_m = vq_image_bert_forward(img, params, packed_f32, k_mask,
                                           vocab_size=vocab_size)
    jax.block_until_ready((out, t, e, t_m))
    assert out.shape == (2, seq_len, h_dim)
    assert t.shape == (2, seq_len) and t_m.shape == (2, seq_len)
    assert e.shape == (2, seq_len, h_dim)
    assert jnp.allclose(out, ref, atol=1e-3, rtol=1e-3)

    # --- bf16 matmul path (v6e/v7x default; f32 accumulation & stats) ---------
    packed_bf16 = pack_params(params, n_heads=n_heads, matmul_dtype=jnp.bfloat16)
    out_bf16, _, _, _ = vq_image_bert_forward(img, params, packed_bf16, k_mask,
                                              vocab_size=vocab_size)
    jax.block_until_ready(out_bf16)
    assert jnp.allclose(out_bf16, ref, atol=2e-2, rtol=2e-2)   # bf16 rounding budget

    print("KERNEL_OK")
</pallas_src>

<mosaic_0001>
module attributes {stable_mosaic.version = 11 : i64} {
  func.func @_bert_layer_kernel(%arg0: i32, %arg1: i32, %arg2: memref<2x16x128xf32, #tpu.memory_space<vmem>>, %arg3: memref<1x16x128xf32, #tpu.memory_space<vmem>>, %arg4: memref<1x16x128xf32, #tpu.memory_space<vmem>>, %arg5: memref<1x128x1536xf32, #tpu.memory_space<vmem>>, %arg6: memref<1x1x1536xf32, #tpu.memory_space<vmem>>, %arg7: memref<1x4x128x128xf32, #tpu.memory_space<vmem>>, %arg8: memref<1x1x128xf32, #tpu.memory_space<vmem>>, %arg9: memref<1x16x128xf32, #tpu.memory_space<vmem>>, %arg10: memref<1x16x128xf32, #tpu.memory_space<vmem>>, %arg11: memref<1x128x128xf32, #tpu.memory_space<vmem>>, %arg12: memref<1x1x128xf32, #tpu.memory_space<vmem>>, %arg13: memref<1x128x128xf32, #tpu.memory_space<vmem>>, %arg14: memref<1x1x128xf32, #tpu.memory_space<vmem>>, %arg15: memref<2x16x128xf32, #tpu.memory_space<vmem>>, %arg16: memref<32x128xf32, #tpu.memory_space<vmem>>) attributes {dimension_semantics = [#tpu.dimension_semantics<parallel>, #tpu.dimension_semantics<arbitrary>], iteration_bounds = array<i64: 1, 2>, scalar_prefetch = 0 : i64, scratch_operands = 1 : i64, tpu.core_type = #tpu.core_type<tc>, window_params = [{transform_indices = @transform_0, window_bounds = array<i64: 2, 16, 128>}, {transform_indices = @transform_1, window_bounds = array<i64: 1, 16, 128>}, {transform_indices = @transform_2, window_bounds = array<i64: 1, 16, 128>}, {transform_indices = @transform_3, window_bounds = array<i64: 1, 128, 1536>}, {transform_indices = @transform_4, window_bounds = array<i64: 1, 1, 1536>}, {transform_indices = @transform_5, window_bounds = array<i64: 1, 4, 128, 128>}, {transform_indices = @transform_6, window_bounds = array<i64: 1, 1, 128>}, {transform_indices = @transform_7, window_bounds = array<i64: 1, 16, 128>}, {transform_indices = @transform_8, window_bounds = array<i64: 1, 16, 128>}, {transform_indices = @transform_9, window_bounds = array<i64: 1, 128, 128>}, {transform_indices = @transform_10, window_bounds = array<i64: 1, 1, 128>}, {transform_indices = @transform_11, window_bounds = array<i64: 1, 128, 128>}, {transform_indices = @transform_12, window_bounds = array<i64: 1, 1, 128>}, {transform_indices = @transform_13, window_bounds = array<i64: 2, 16, 128>}]} {
    %c0_i32 = arith.constant 0 : i32
    %0 = arith.cmpi eq, %arg1, %c0_i32 : i32
    %1 = arith.extui %0 : i1 to i32
    %c0_i32_0 = arith.constant 0 : i32
    %2 = arith.cmpi ne, %1, %c0_i32_0 : i32
    scf.if %2 {
      %c0_88 = arith.constant 0 : index
      %c0_89 = arith.constant 0 : index
      %c0_90 = arith.constant 0 : index
      %197 = vector.load %arg2[%c0_88, %c0_89, %c0_90] : memref<2x16x128xf32, #tpu.memory_space<vmem>>, vector<2x16x128xf32>
      %198 = vector.shape_cast %197 : vector<2x16x128xf32> to vector<32x128xf32>
      %c0_91 = arith.constant 0 : index
      %c0_92 = arith.constant 0 : index
      %199 = vector.load %arg16[%c0_91, %c0_92] : memref<32x128xf32, #tpu.memory_space<vmem>>, vector<32x128xf32>
      tpu.vector_store %arg16[%c0_91, %c0_92], %198 {strides = array<i32>} : memref<32x128xf32, #tpu.memory_space<vmem>>, vector<32x128xf32>,
    } else {
    }
    %c0 = arith.constant 0 : index
    %c0_1 = arith.constant 0 : index
    %3 = vector.load %arg16[%c0, %c0_1] : memref<32x128xf32, #tpu.memory_space<vmem>>, vector<32x128xf32>
    %4 = tpu.iota {dimensions = array<i32: 2>} : vector<1x1x128xi32>
    %c32_i32 = arith.constant 32 : i32
    %5 = vector.broadcast %c32_i32 : i32 to vector<1x1x128xi32>
    %6 = arith.cmpi slt, %4, %5 : vector<1x1x128xi32>
    %7 = arith.extui %6 : vector<1x1x128xi1> to vector<1x1x128xi32>
    %8 = arith.sitofp %7 : vector<1x1x128xi32> to vector<1x1x128xf32>
    %9 = vector.shape_cast %3 : vector<32x128xf32> to vector<2x16x128xf32>
    %cst = arith.constant dense<0.000000e+00> : vector<2x16xf32>
    %10 = vector.multi_reduction <add>, %9, %cst [2] : vector<2x16x128xf32> to vector<2x16xf32>
    %11 = vector.shape_cast %10 : vector<2x16xf32> to vector<2x16x1xf32>
    %cst_2 = arith.constant dense<0.000000e+00> : vector<2x1xf32>
    %12 = vector.multi_reduction <add>, %11, %cst_2 [1] : vector<2x16x1xf32> to vector<2x1xf32>
    %13 = vector.shape_cast %12 : vector<2x1xf32> to vector<2x1x1xf32>
    %cst_3 = arith.constant 0.001953125 : f32
    %14 = vector.broadcast %cst_3 : f32 to vector<2x1x1xf32>
    %15 = arith.mulf %13, %14 : vector<2x1x1xf32>
    %16 = vector.broadcast %15 : vector<2x1x1xf32> to vector<2x16x128xf32>
    %17 = arith.subf %9, %16 : vector<2x16x128xf32>
    %18 = vector.broadcast %8 : vector<1x1x128xf32> to vector<2x16x128xf32>
    %19 = arith.mulf %17, %18 : vector<2x16x128xf32>
    %20 = arith.mulf %19, %19 : vector<2x16x128xf32>
    %cst_4 = arith.constant dense<0.000000e+00> : vector<2x16xf32>
    %21 = vector.multi_reduction <add>, %20, %cst_4 [2] : vector<2x16x128xf32> to vector<2x16xf32>
    %22 = vector.shape_cast %21 : vector<2x16xf32> to vector<2x16x1xf32>
    %cst_5 = arith.constant dense<0.000000e+00> : vector<2x1xf32>
    %23 = vector.multi_reduction <add>, %22, %cst_5 [1] : vector<2x16x1xf32> to vector<2x1xf32>
    %24 = vector.shape_cast %23 : vector<2x1xf32> to vector<2x1x1xf32>
    %cst_6 = arith.constant 0.001953125 : f32
    %25 = vector.broadcast %cst_6 : f32 to vector<2x1x1xf32>
    %26 = arith.mulf %24, %25 : vector<2x1x1xf32>
    %cst_7 = arith.constant 9.99999974E-6 : f32
    %27 = vector.broadcast %cst_7 : f32 to vector<2x1x1xf32>
    %28 = arith.addf %26, %27 : vector<2x1x1xf32>
    %29 = math.rsqrt %28 : vector<2x1x1xf32>
    %30 = vector.broadcast %29 : vector<2x1x1xf32> to vector<2x16x128xf32>
    %31 = arith.mulf %19, %30 : vector<2x16x128xf32>
    %c0_8 = arith.constant 0 : index
    %c0_9 = arith.constant 0 : index
    %c0_10 = arith.constant 0 : index
    %32 = vector.load %arg3[%c0_8, %c0_9, %c0_10] : memref<1x16x128xf32, #tpu.memory_space<vmem>>, vector<1x16x128xf32>
    %33 = vector.broadcast %32 : vector<1x16x128xf32> to vector<2x16x128xf32>
    %34 = arith.mulf %31, %33 : vector<2x16x128xf32>
    %c0_11 = arith.constant 0 : index
    %c0_12 = arith.constant 0 : index
    %c0_13 = arith.constant 0 : index
    %35 = vector.load %arg4[%c0_11, %c0_12, %c0_13] : memref<1x16x128xf32, #tpu.memory_space<vmem>>, vector<1x16x128xf32>
    %36 = vector.broadcast %35 : vector<1x16x128xf32> to vector<2x16x128xf32>
    %37 = arith.addf %34, %36 : vector<2x16x128xf32>
    %38 = vector.shape_cast %37 : vector<2x16x128xf32> to vector<32x128xf32>
    %c0_14 = arith.constant 0 : index
    %c0_15 = arith.constant 0 : index
    %c0_16 = arith.constant 0 : index
    %39 = vector.load %arg5[%c0_14, %c0_15, %c0_16] : memref<1x128x1536xf32, #tpu.memory_space<vmem>>, vector<1x128x1536xf32>
    %40 = vector.shape_cast %39 : vector<1x128x1536xf32> to vector<128x1536xf32>
    %cst_17 = arith.constant dense<0.000000e+00> : vector<32x1536xf32>
    %41 = tpu.matmul %38, %40, %cst_17 {dimension_numbers = #tpu.dot_dimension_numbers<[1], [0], [0], [1], [0, 0, 1, 1], [], []>} : vector<32x128xf32>, vector<128x1536xf32>, vector<32x1536xf32> -> vector<32x1536xf32>
    %c0_18 = arith.constant 0 : index
    %c0_19 = arith.constant 0 : index
    %c0_20 = arith.constant 0 : index
    %42 = vector.load %arg6[%c0_18, %c0_19, %c0_20] : memref<1x1x1536xf32, #tpu.memory_space<vmem>>, vector<1x1x1536xf32>
    %43 = vector.shape_cast %42 : vector<1x1x1536xf32> to vector<1x1536xf32>
    %44 = vector.broadcast %43 : vector<1x1536xf32> to vector<32x1536xf32>
    %45 = arith.addf %41, %44 : vector<32x1536xf32>
    %46 = vector.extract_strided_slice %45 {offsets = [0, 0], sizes = [32, 128], strides = [1, 1]} : vector<32x1536xf32> to vector<32x128xf32>
    %47 = vector.shape_cast %46 : vector<32x128xf32> to vector<2x16x128xf32>
    %48 = vector.extract_strided_slice %45 {offsets = [0, 512], sizes = [32, 128], strides = [1, 1]} : vector<32x1536xf32> to vector<32x128xf32>
    %49 = vector.shape_cast %48 : vector<32x128xf32> to vector<2x16x128xf32>
    %50 = vector.extract_strided_slice %45 {offsets = [0, 1024], sizes = [32, 128], strides = [1, 1]} : vector<32x1536xf32> to vector<32x128xf32>
    %51 = vector.shape_cast %50 : vector<32x128xf32> to vector<2x16x128xf32>
    "tpu.trace_start"() <{level = 10 : i32, message = "bqd,bkd->bqk"}> : () -> ()
    %cst_21 = arith.constant dense<0.000000e+00> : vector<2x16x16xf32>
    %52 = tpu.matmul %47, %49, %cst_21 {dimension_numbers = #tpu.dot_dimension_numbers<[2], [2], [1], [1], [0, 0, 0, 1, 1, 1], [0], [0]>} : vector<2x16x128xf32>, vector<2x16x128xf32>, vector<2x16x16xf32> -> vector<2x16x16xf32>
    "tpu.trace_stop"() : () -> ()
    %cst_22 = arith.constant dense<0xFF800000> : vector<2x16xf32>
    %53 = vector.multi_reduction <maximumf>, %52, %cst_22 [2] : vector<2x16x16xf32> to vector<2x16xf32>
    %54 = vector.shape_cast %53 : vector<2x16xf32> to vector<2x16x1xf32>
    %55 = vector.broadcast %54 : vector<2x16x1xf32> to vector<2x16x16xf32>
    %56 = arith.subf %52, %55 : vector<2x16x16xf32>
    %57 = math.exp %56 : vector<2x16x16xf32>
    %cst_23 = arith.constant dense<0.000000e+00> : vector<2x16xf32>
    %58 = vector.multi_reduction <add>, %57, %cst_23 [2] : vector<2x16x16xf32> to vector<2x16xf32>
    %59 = vector.shape_cast %58 : vector<2x16xf32> to vector<2x16x1xf32>
    %60 = tpu.reciprocal %59 {approx = true} : vector<2x16x1xf32> -> vector<2x16x1xf32>
    %61 = vector.broadcast %60 : vector<2x16x1xf32> to vector<2x16x16xf32>
    %62 = arith.mulf %57, %61 : vector<2x16x16xf32>
    "tpu.trace_start"() <{level = 10 : i32, message = "bqk,bkd->bqd"}> : () -> ()
    %cst_24 = arith.constant dense<0.000000e+00> : vector<2x16x128xf32>
    %63 = tpu.matmul %62, %51, %cst_24 {dimension_numbers = #tpu.dot_dimension_numbers<[2], [1], [1], [2], [0, 0, 0, 1, 1, 2], [0], [0]>} : vector<2x16x16xf32>, vector<2x16x128xf32>, vector<2x16x128xf32> -> vector<2x16x128xf32>
    "tpu.trace_stop"() : () -> ()
    %64 = vector.shape_cast %63 : vector<2x16x128xf32> to vector<32x128xf32>
    %c0_25 = arith.constant 0 : index
    %c0_26 = arith.constant 0 : index
    %c0_27 = arith.constant 0 : index
    %c0_28 = arith.constant 0 : index
    %65 = vector.load %arg7[%c0_25, %c0_26, %c0_27, %c0_28] : memref<1x4x128x128xf32, #tpu.memory_space<vmem>>, vector<1x1x128x128xf32>
    %66 = vector.shape_cast %65 : vector<1x1x128x128xf32> to vector<128x128xf32>
    %cst_29 = arith.constant dense<0.000000e+00> : vector<32x128xf32>
    %67 = tpu.matmul %64, %66, %cst_29 {dimension_numbers = #tpu.dot_dimension_numbers<[1], [0], [0], [1], [0, 0, 1, 1], [], []>} : vector<32x128xf32>, vector<128x128xf32>, vector<32x128xf32> -> vector<32x128xf32>
    %68 = vector.extract_strided_slice %45 {offsets = [0, 128], sizes = [32, 128], strides = [1, 1]} : vector<32x1536xf32> to vector<32x128xf32>
    %69 = vector.shape_cast %68 : vector<32x128xf32> to vector<2x16x128xf32>
    %70 = vector.extract_strided_slice %45 {offsets = [0, 640], sizes = [32, 128], strides = [1, 1]} : vector<32x1536xf32> to vector<32x128xf32>
    %71 = vector.shape_cast %70 : vector<32x128xf32> to vector<2x16x128xf32>
    %72 = vector.extract_strided_slice %45 {offsets = [0, 1152], sizes = [32, 128], strides = [1, 1]} : vector<32x1536xf32> to vector<32x128xf32>
    %73 = vector.shape_cast %72 : vector<32x128xf32> to vector<2x16x128xf32>
    "tpu.trace_start"() <{level = 10 : i32, message = "bqd,bkd->bqk"}> : () -> ()
    %cst_30 = arith.constant dense<0.000000e+00> : vector<2x16x16xf32>
    %74 = tpu.matmul %69, %71, %cst_30 {dimension_numbers = #tpu.dot_dimension_numbers<[2], [2], [1], [1], [0, 0, 0, 1, 1, 1], [0], [0]>} : vector<2x16x128xf32>, vector<2x16x128xf32>, vector<2x16x16xf32> -> vector<2x16x16xf32>
    "tpu.trace_stop"() : () -> ()
    %cst_31 = arith.constant dense<0xFF800000> : vector<2x16xf32>
    %75 = vector.multi_reduction <maximumf>, %74, %cst_31 [2] : vector<2x16x16xf32> to vector<2x16xf32>
    %76 = vector.shape_cast %75 : vector<2x16xf32> to vector<2x16x1xf32>
    %77 = vector.broadcast %76 : vector<2x16x1xf32> to vector<2x16x16xf32>
    %78 = arith.subf %74, %77 : vector<2x16x16xf32>
    %79 = math.exp %78 : vector<2x16x16xf32>
    %cst_32 = arith.constant dense<0.000000e+00> : vector<2x16xf32>
    %80 = vector.multi_reduction <add>, %79, %cst_32 [2] : vector<2x16x16xf32> to vector<2x16xf32>
    %81 = vector.shape_cast %80 : vector<2x16xf32> to vector<2x16x1xf32>
    %82 = tpu.reciprocal %81 {approx = true} : vector<2x16x1xf32> -> vector<2x16x1xf32>
    %83 = vector.broadcast %82 : vector<2x16x1xf32> to vector<2x16x16xf32>
    %84 = arith.mulf %79, %83 : vector<2x16x16xf32>
    "tpu.trace_start"() <{level = 10 : i32, message = "bqk,bkd->bqd"}> : () -> ()
    %cst_33 = arith.constant dense<0.000000e+00> : vector<2x16x128xf32>
    %85 = tpu.matmul %84, %73, %cst_33 {dimension_numbers = #tpu.dot_dimension_numbers<[2], [1], [1], [2], [0, 0, 0, 1, 1, 2], [0], [0]>} : vector<2x16x16xf32>, vector<2x16x128xf32>, vector<2x16x128xf32> -> vector<2x16x128xf32>
    "tpu.trace_stop"() : () -> ()
    %86 = vector.shape_cast %85 : vector<2x16x128xf32> to vector<32x128xf32>
    %c0_34 = arith.constant 0 : index
    %c1 = arith.constant 1 : index
    %c0_35 = arith.constant 0 : index
    %c0_36 = arith.constant 0 : index
    %87 = vector.load %arg7[%c0_34, %c1, %c0_35, %c0_36] : memref<1x4x128x128xf32, #tpu.memory_space<vmem>>, vector<1x1x128x128xf32>
    %88 = vector.shape_cast %87 : vector<1x1x128x128xf32> to vector<128x128xf32>
    %cst_37 = arith.constant dense<0.000000e+00> : vector<32x128xf32>
    %89 = tpu.matmul %86, %88, %cst_37 {dimension_numbers = #tpu.dot_dimension_numbers<[1], [0], [0], [1], [0, 0, 1, 1], [], []>} : vector<32x128xf32>, vector<128x128xf32>, vector<32x128xf32> -> vector<32x128xf32>
    %90 = arith.addf %67, %89 : vector<32x128xf32>
    %91 = vector.extract_strided_slice %45 {offsets = [0, 256], sizes = [32, 128], strides = [1, 1]} : vector<32x1536xf32> to vector<32x128xf32>
    %92 = vector.shape_cast %91 : vector<32x128xf32> to vector<2x16x128xf32>
    %93 = vector.extract_strided_slice %45 {offsets = [0, 768], sizes = [32, 128], strides = [1, 1]} : vector<32x1536xf32> to vector<32x128xf32>
    %94 = vector.shape_cast %93 : vector<32x128xf32> to vector<2x16x128xf32>
    %95 = vector.extract_strided_slice %45 {offsets = [0, 1280], sizes = [32, 128], strides = [1, 1]} : vector<32x1536xf32> to vector<32x128xf32>
    %96 = vector.shape_cast %95 : vector<32x128xf32> to vector<2x16x128xf32>
    "tpu.trace_start"() <{level = 10 : i32, message = "bqd,bkd->bqk"}> : () -> ()
    %cst_38 = arith.constant dense<0.000000e+00> : vector<2x16x16xf32>
    %97 = tpu.matmul %92, %94, %cst_38 {dimension_numbers = #tpu.dot_dimension_numbers<[2], [2], [1], [1], [0, 0, 0, 1, 1, 1], [0], [0]>} : vector<2x16x128xf32>, vector<2x16x128xf32>, vector<2x16x16xf32> -> vector<2x16x16xf32>
    "tpu.trace_stop"() : () -> ()
    %cst_39 = arith.constant dense<0xFF800000> : vector<2x16xf32>
    %98 = vector.multi_reduction <maximumf>, %97, %cst_39 [2] : vector<2x16x16xf32> to vector<2x16xf32>
    %99 = vector.shape_cast %98 : vector<2x16xf32> to vector<2x16x1xf32>
    %100 = vector.broadcast %99 : vector<2x16x1xf32> to vector<2x16x16xf32>
    %101 = arith.subf %97, %100 : vector<2x16x16xf32>
    %102 = math.exp %101 : vector<2x16x16xf32>
    %cst_40 = arith.constant dense<0.000000e+00> : vector<2x16xf32>
    %103 = vector.multi_reduction <add>, %102, %cst_40 [2] : vector<2x16x16xf32> to vector<2x16xf32>
    %104 = vector.shape_cast %103 : vector<2x16xf32> to vector<2x16x1xf32>
    %105 = tpu.reciprocal %104 {approx = true} : vector<2x16x1xf32> -> vector<2x16x1xf32>
    %106 = vector.broadcast %105 : vector<2x16x1xf32> to vector<2x16x16xf32>
    %107 = arith.mulf %102, %106 : vector<2x16x16xf32>
    "tpu.trace_start"() <{level = 10 : i32, message = "bqk,bkd->bqd"}> : () -> ()
    %cst_41 = arith.constant dense<0.000000e+00> : vector<2x16x128xf32>
    %108 = tpu.matmul %107, %96, %cst_41 {dimension_numbers = #tpu.dot_dimension_numbers<[2], [1], [1], [2], [0, 0, 0, 1, 1, 2], [0], [0]>} : vector<2x16x16xf32>, vector<2x16x128xf32>, vector<2x16x128xf32> -> vector<2x16x128xf32>
    "tpu.trace_stop"() : () -> ()
    %109 = vector.shape_cast %108 : vector<2x16x128xf32> to vector<32x128xf32>
    %c0_42 = arith.constant 0 : index
    %c2 = arith.constant 2 : index
    %c0_43 = arith.constant 0 : index
    %c0_44 = arith.constant 0 : index
    %110 = vector.load %arg7[%c0_42, %c2, %c0_43, %c0_44] : memref<1x4x128x128xf32, #tpu.memory_space<vmem>>, vector<1x1x128x128xf32>
    %111 = vector.shape_cast %110 : vector<1x1x128x128xf32> to vector<128x128xf32>
    %cst_45 = arith.constant dense<0.000000e+00> : vector<32x128xf32>
    %112 = tpu.matmul %109, %111, %cst_45 {dimension_numbers = #tpu.dot_dimension_numbers<[1], [0], [0], [1], [0, 0, 1, 1], [], []>} : vector<32x128xf32>, vector<128x128xf32>, vector<32x128xf32> -> vector<32x128xf32>
    %113 = arith.addf %90, %112 : vector<32x128xf32>
    %114 = vector.extract_strided_slice %45 {offsets = [0, 384], sizes = [32, 128], strides = [1, 1]} : vector<32x1536xf32> to vector<32x128xf32>
    %115 = vector.shape_cast %114 : vector<32x128xf32> to vector<2x16x128xf32>
    %116 = vector.extract_strided_slice %45 {offsets = [0, 896], sizes = [32, 128], strides = [1, 1]} : vector<32x1536xf32> to vector<32x128xf32>
    %117 = vector.shape_cast %116 : vector<32x128xf32> to vector<2x16x128xf32>
    %118 = vector.extract_strided_slice %45 {offsets = [0, 1408], sizes = [32, 128], strides = [1, 1]} : vector<32x1536xf32> to vector<32x128xf32>
    %119 = vector.shape_cast %118 : vector<32x128xf32> to vector<2x16x128xf32>
    "tpu.trace_start"() <{level = 10 : i32, message = "bqd,bkd->bqk"}> : () -> ()
    %cst_46 = arith.constant dense<0.000000e+00> : vector<2x16x16xf32>
    %120 = tpu.matmul %115, %117, %cst_46 {dimension_numbers = #tpu.dot_dimension_numbers<[2], [2], [1], [1], [0, 0, 0, 1, 1, 1], [0], [0]>} : vector<2x16x128xf32>, vector<2x16x128xf32>, vector<2x16x16xf32> -> vector<2x16x16xf32>
    "tpu.trace_stop"() : () -> ()
    %cst_47 = arith.constant dense<0xFF800000> : vector<2x16xf32>
    %121 = vector.multi_reduction <maximumf>, %120, %cst_47 [2] : vector<2x16x16xf32> to vector<2x16xf32>
    %122 = vector.shape_cast %121 : vector<2x16xf32> to vector<2x16x1xf32>
    %123 = vector.broadcast %122 : vector<2x16x1xf32> to vector<2x16x16xf32>
    %124 = arith.subf %120, %123 : vector<2x16x16xf32>
    %125 = math.exp %124 : vector<2x16x16xf32>
    %cst_48 = arith.constant dense<0.000000e+00> : vector<2x16xf32>
    %126 = vector.multi_reduction <add>, %125, %cst_48 [2] : vector<2x16x16xf32> to vector<2x16xf32>
    %127 = vector.shape_cast %126 : vector<2x16xf32> to vector<2x16x1xf32>
    %128 = tpu.reciprocal %127 {approx = true} : vector<2x16x1xf32> -> vector<2x16x1xf32>
    %129 = vector.broadcast %128 : vector<2x16x1xf32> to vector<2x16x16xf32>
    %130 = arith.mulf %125, %129 : vector<2x16x16xf32>
    "tpu.trace_start"() <{level = 10 : i32, message = "bqk,bkd->bqd"}> : () -> ()
    %cst_49 = arith.constant dense<0.000000e+00> : vector<2x16x128xf32>
    %131 = tpu.matmul %130, %119, %cst_49 {dimension_numbers = #tpu.dot_dimension_numbers<[2], [1], [1], [2], [0, 0, 0, 1, 1, 2], [0], [0]>} : vector<2x16x16xf32>, vector<2x16x128xf32>, vector<2x16x128xf32> -> vector<2x16x128xf32>
    "tpu.trace_stop"() : () -> ()
    %132 = vector.shape_cast %131 : vector<2x16x128xf32> to vector<32x128xf32>
    %c0_50 = arith.constant 0 : index
    %c3 = arith.constant 3 : index
    %c0_51 = arith.constant 0 : index
    %c0_52 = arith.constant 0 : index
    %133 = vector.load %arg7[%c0_50, %c3, %c0_51, %c0_52] : memref<1x4x128x128xf32, #tpu.memory_space<vmem>>, vector<1x1x128x128xf32>
    %134 = vector.shape_cast %133 : vector<1x1x128x128xf32> to vector<128x128xf32>
    %cst_53 = arith.constant dense<0.000000e+00> : vector<32x128xf32>
    %135 = tpu.matmul %132, %134, %cst_53 {dimension_numbers = #tpu.dot_dimension_numbers<[1], [0], [0], [1], [0, 0, 1, 1], [], []>} : vector<32x128xf32>, vector<128x128xf32>, vector<32x128xf32> -> vector<32x128xf32>
    %136 = arith.addf %113, %135 : vector<32x128xf32>
    %137 = arith.addf %3, %136 : vector<32x128xf32>
    %c0_54 = arith.constant 0 : index
    %c0_55 = arith.constant 0 : index
    %c0_56 = arith.constant 0 : index
    %138 = vector.load %arg8[%c0_54, %c0_55, %c0_56] : memref<1x1x128xf32, #tpu.memory_space<vmem>>, vector<1x1x128xf32>
    %139 = vector.shape_cast %138 : vector<1x1x128xf32> to vector<1x128xf32>
    %140 = vector.broadcast %139 : vector<1x128xf32> to vector<32x128xf32>
    %141 = arith.addf %137, %140 : vector<32x128xf32>
    %142 = vector.shape_cast %141 : vector<32x128xf32> to vector<2x16x128xf32>
    %cst_57 = arith.constant dense<0.000000e+00> : vector<2x16xf32>
    %143 = vector.multi_reduction <add>, %142, %cst_57 [2] : vector<2x16x128xf32> to vector<2x16xf32>
    %144 = vector.shape_cast %143 : vector<2x16xf32> to vector<2x16x1xf32>
    %cst_58 = arith.constant dense<0.000000e+00> : vector<2x1xf32>
    %145 = vector.multi_reduction <add>, %144, %cst_58 [1] : vector<2x16x1xf32> to vector<2x1xf32>
    %146 = vector.shape_cast %145 : vector<2x1xf32> to vector<2x1x1xf32>
    %cst_59 = arith.constant 0.001953125 : f32
    %147 = vector.broadcast %cst_59 : f32 to vector<2x1x1xf32>
    %148 = arith.mulf %146, %147 : vector<2x1x1xf32>
    %149 = vector.broadcast %148 : vector<2x1x1xf32> to vector<2x16x128xf32>
    %150 = arith.subf %142, %149 : vector<2x16x128xf32>
    %151 = vector.broadcast %8 : vector<1x1x128xf32> to vector<2x16x128xf32>
    %152 = arith.mulf %150, %151 : vector<2x16x128xf32>
    %153 = arith.mulf %152, %152 : vector<2x16x128xf32>
    %cst_60 = arith.constant dense<0.000000e+00> : vector<2x16xf32>
    %154 = vector.multi_reduction <add>, %153, %cst_60 [2] : vector<2x16x128xf32> to vector<2x16xf32>
    %155 = vector.shape_cast %154 : vector<2x16xf32> to vector<2x16x1xf32>
    %cst_61 = arith.constant dense<0.000000e+00> : vector<2x1xf32>
    %156 = vector.multi_reduction <add>, %155, %cst_61 [1] : vector<2x16x1xf32> to vector<2x1xf32>
    %157 = vector.shape_cast %156 : vector<2x1xf32> to vector<2x1x1xf32>
    %cst_62 = arith.constant 0.001953125 : f32
    %158 = vector.broadcast %cst_62 : f32 to vector<2x1x1xf32>
    %159 = arith.mulf %157, %158 : vector<2x1x1xf32>
    %cst_63 = arith.constant 9.99999974E-6 : f32
    %160 = vector.broadcast %cst_63 : f32 to vector<2x1x1xf32>
    %161 = arith.addf %159, %160 : vector<2x1x1xf32>
    %162 = math.rsqrt %161 : vector<2x1x1xf32>
    %163 = vector.broadcast %162 : vector<2x1x1xf32> to vector<2x16x128xf32>
    %164 = arith.mulf %152, %163 : vector<2x16x128xf32>
    %c0_64 = arith.constant 0 : index
    %c0_65 = arith.constant 0 : index
    %c0_66 = arith.constant 0 : index
    %165 = vector.load %arg9[%c0_64, %c0_65, %c0_66] : memref<1x16x128xf32, #tpu.memory_space<vmem>>, vector<1x16x128xf32>
    %166 = vector.broadcast %165 : vector<1x16x128xf32> to vector<2x16x128xf32>
    %167 = arith.mulf %164, %166 : vector<2x16x128xf32>
    %c0_67 = arith.constant 0 : index
    %c0_68 = arith.constant 0 : index
    %c0_69 = arith.constant 0 : index
    %168 = vector.load %arg10[%c0_67, %c0_68, %c0_69] : memref<1x16x128xf32, #tpu.memory_space<vmem>>, vector<1x16x128xf32>
    %169 = vector.broadcast %168 : vector<1x16x128xf32> to vector<2x16x128xf32>
    %170 = arith.addf %167, %169 : vector<2x16x128xf32>
    %171 = vector.shape_cast %170 : vector<2x16x128xf32> to vector<32x128xf32>
    %c0_70 = arith.constant 0 : index
    %c0_71 = arith.constant 0 : index
    %c0_72 = arith.constant 0 : index
    %172 = vector.load %arg11[%c0_70, %c0_71, %c0_72] : memref<1x128x128xf32, #tpu.memory_space<vmem>>, vector<1x128x128xf32>
    %173 = vector.shape_cast %172 : vector<1x128x128xf32> to vector<128x128xf32>
    %cst_73 = arith.constant dense<0.000000e+00> : vector<32x128xf32>
    %174 = tpu.matmul %171, %173, %cst_73 {dimension_numbers = #tpu.dot_dimension_numbers<[1], [0], [0], [1], [0, 0, 1, 1], [], []>} : vector<32x128xf32>, vector<128x128xf32>, vector<32x128xf32> -> vector<32x128xf32>
    %c0_74 = arith.constant 0 : index
    %c0_75 = arith.constant 0 : index
    %c0_76 = arith.constant 0 : index
    %175 = vector.load %arg12[%c0_74, %c0_75, %c0_76] : memref<1x1x128xf32, #tpu.memory_space<vmem>>, vector<1x1x128xf32>
    %176 = vector.shape_cast %175 : vector<1x1x128xf32> to vector<1x128xf32>
    %177 = vector.broadcast %176 : vector<1x128xf32> to vector<32x128xf32>
    %178 = arith.addf %174, %177 : vector<32x128xf32>
    %179 = arith.negf %178 : vector<32x128xf32>
    %180 = math.exp %179 : vector<32x128xf32>
    %cst_77 = arith.constant 1.000000e+00 : f32
    %181 = vector.broadcast %cst_77 : f32 to vector<32x128xf32>
    %182 = arith.addf %181, %180 : vector<32x128xf32>
    %183 = arith.divf %181, %182 : vector<32x128xf32>
    %184 = arith.mulf %183, %178 : vector<32x128xf32>
    %c0_78 = arith.constant 0 : index
    %c0_79 = arith.constant 0 : index
    %c0_80 = arith.constant 0 : index
    %185 = vector.load %arg13[%c0_78, %c0_79, %c0_80] : memref<1x128x128xf32, #tpu.memory_space<vmem>>, vector<1x128x128xf32>
    %186 = vector.shape_cast %185 : vector<1x128x128xf32> to vector<128x128xf32>
    %cst_81 = arith.constant dense<0.000000e+00> : vector<32x128xf32>
    %187 = tpu.matmul %184, %186, %cst_81 {dimension_numbers = #tpu.dot_dimension_numbers<[1], [0], [0], [1], [0, 0, 1, 1], [], []>} : vector<32x128xf32>, vector<128x128xf32>, vector<32x128xf32> -> vector<32x128xf32>
    %c0_82 = arith.constant 0 : index
    %c0_83 = arith.constant 0 : index
    %c0_84 = arith.constant 0 : index
    %188 = vector.load %arg14[%c0_82, %c0_83, %c0_84] : memref<1x1x128xf32, #tpu.memory_space<vmem>>, vector<1x1x128xf32>
    %189 = vector.shape_cast %188 : vector<1x1x128xf32> to vector<1x128xf32>
    %190 = vector.broadcast %189 : vector<1x128xf32> to vector<32x128xf32>
    %191 = arith.addf %187, %190 : vector<32x128xf32>
    %192 = arith.addf %141, %191 : vector<32x128xf32>
    %c0_85 = arith.constant 0 : index
    %c0_86 = arith.constant 0 : index
    %193 = vector.load %arg16[%c0_85, %c0_86] : memref<32x128xf32, #tpu.memory_space<vmem>>, vector<32x128xf32>
    tpu.vector_store %arg16[%c0_85, %c0_86], %192 {strides = array<i32>} : memref<32x128xf32, #tpu.memory_space<vmem>>, vector<32x128xf32>,
    %c1_i32 = arith.constant 1 : i32
    %194 = arith.cmpi eq, %arg1, %c1_i32 : i32
    %195 = arith.extui %194 : i1 to i32
    %c0_i32_87 = arith.constant 0 : i32
    %196 = arith.cmpi ne, %195, %c0_i32_87 : i32
    scf.if %196 {
      %197 = vector.shape_cast %192 : vector<32x128xf32> to vector<2x16x128xf32>
      %198 = arith.mulf %197, %197 : vector<2x16x128xf32>
      %cst_88 = arith.constant dense<0.000000e+00> : vector<2x16xf32>
      %199 = vector.multi_reduction <add>, %198, %cst_88 [2] : vector<2x16x128xf32> to vector<2x16xf32>
      %200 = vector.shape_cast %199 : vector<2x16xf32> to vector<2x16x1xf32>
      %cst_89 = arith.constant 1.000000e-24 : f32
      %201 = vector.broadcast %cst_89 : f32 to vector<2x16x1xf32>
      %202 = arith.maximumf %200, %201 : vector<2x16x1xf32>
      %203 = math.rsqrt %202 : vector<2x16x1xf32>
      %204 = vector.broadcast %203 : vector<2x16x1xf32> to vector<2x16x128xf32>
      %205 = arith.mulf %197, %204 : vector<2x16x128xf32>
      %c0_90 = arith.constant 0 : index
      %c0_91 = arith.constant 0 : index
      %c0_92 = arith.constant 0 : index
      %206 = vector.load %arg15[%c0_90, %c0_91, %c0_92] : memref<2x16x128xf32, #tpu.memory_space<vmem>>, vector<2x16x128xf32>
      tpu.vector_store %arg15[%c0_90, %c0_91, %c0_92], %205 {strides = array<i32>} : memref<2x16x128xf32, #tpu.memory_space<vmem>>, vector<2x16x128xf32>,
    } else {
    }
    return
  }
  func.func @transform_0(%arg0: i32, %arg1: i32) -> (i32, i32, i32) {
    %c0_i32 = arith.constant 0 : i32
    %c0_i32_0 = arith.constant 0 : i32
    %c0_i32_1 = arith.constant 0 : i32
    return %arg0, %c0_i32, %c0_i32_0 : i32, i32, i32
  }
  func.func @transform_1(%arg0: i32, %arg1: i32) -> (i32, i32, i32) {
    %c0_i32 = arith.constant 0 : i32
    %c0_i32_0 = arith.constant 0 : i32
    %c0_i32_1 = arith.constant 0 : i32
    return %arg1, %c0_i32, %c0_i32_0 : i32, i32, i32
  }
  func.func @transform_2(%arg0: i32, %arg1: i32) -> (i32, i32, i32) {
    %c0_i32 = arith.constant 0 : i32
    %c0_i32_0 = arith.constant 0 : i32
    %c0_i32_1 = arith.constant 0 : i32
    return %arg1, %c0_i32, %c0_i32_0 : i32, i32, i32
  }
  func.func @transform_3(%arg0: i32, %arg1: i32) -> (i32, i32, i32) {
    %c0_i32 = arith.constant 0 : i32
    %c0_i32_0 = arith.constant 0 : i32
    %c0_i32_1 = arith.constant 0 : i32
    return %arg1, %c0_i32, %c0_i32_0 : i32, i32, i32
  }
  func.func @transform_4(%arg0: i32, %arg1: i32) -> (i32, i32, i32) {
    %c0_i32 = arith.constant 0 : i32
    %c0_i32_0 = arith.constant 0 : i32
    %c0_i32_1 = arith.constant 0 : i32
    return %arg1, %c0_i32, %c0_i32_0 : i32, i32, i32
  }
  func.func @transform_5(%arg0: i32, %arg1: i32) -> (i32, i32, i32, i32) {
    %c0_i32 = arith.constant 0 : i32
    %c0_i32_0 = arith.constant 0 : i32
    %c0_i32_1 = arith.constant 0 : i32
    %c0_i32_2 = arith.constant 0 : i32
    return %arg1, %c0_i32, %c0_i32_0, %c0_i32_1 : i32, i32, i32, i32
  }
  func.func @transform_6(%arg0: i32, %arg1: i32) -> (i32, i32, i32) {
    %c0_i32 = arith.constant 0 : i32
    %c0_i32_0 = arith.constant 0 : i32
    %c0_i32_1 = arith.constant 0 : i32
    return %arg1, %c0_i32, %c0_i32_0 : i32, i32, i32
  }
  func.func @transform_7(%arg0: i32, %arg1: i32) -> (i32, i32, i32) {
    %c0_i32 = arith.constant 0 : i32
    %c0_i32_0 = arith.constant 0 : i32
    %c0_i32_1 = arith.constant 0 : i32
    return %arg1, %c0_i32, %c0_i32_0 : i32, i32, i32
  }
  func.func @transform_8(%arg0: i32, %arg1: i32) -> (i32, i32, i32) {
    %c0_i32 = arith.constant 0 : i32
    %c0_i32_0 = arith.constant 0 : i32
    %c0_i32_1 = arith.constant 0 : i32
    return %arg1, %c0_i32, %c0_i32_0 : i32, i32, i32
  }
  func.func @transform_9(%arg0: i32, %arg1: i32) -> (i32, i32, i32) {
    %c0_i32 = arith.constant 0 : i32
    %c0_i32_0 = arith.constant 0 : i32
    %c0_i32_1 = arith.constant 0 : i32
    return %arg1, %c0_i32, %c0_i32_0 : i32, i32, i32
  }
  func.func @transform_10(%arg0: i32, %arg1: i32) -> (i32, i32, i32) {
    %c0_i32 = arith.constant 0 : i32
    %c0_i32_0 = arith.constant 0 : i32
    %c0_i32_1 = arith.constant 0 : i32
    return %arg1, %c0_i32, %c0_i32_0 : i32, i32, i32
  }
  func.func @transform_11(%arg0: i32, %arg1: i32) -> (i32, i32, i32) {
    %c0_i32 = arith.constant 0 : i32
    %c0_i32_0 = arith.constant 0 : i32
    %c0_i32_1 = arith.constant 0 : i32
    return %arg1, %c0_i32, %c0_i32_0 : i32, i32, i32
  }
  func.func @transform_12(%arg0: i32, %arg1: i32) -> (i32, i32, i32) {
    %c0_i32 = arith.constant 0 : i32
    %c0_i32_0 = arith.constant 0 : i32
    %c0_i32_1 = arith.constant 0 : i32
    return %arg1, %c0_i32, %c0_i32_0 : i32, i32, i32
  }
  func.func @transform_13(%arg0: i32, %arg1: i32) -> (i32, i32, i32) {
    %c0_i32 = arith.constant 0 : i32
    %c0_i32_0 = arith.constant 0 : i32
    %c0_i32_1 = arith.constant 0 : i32
    return %arg0, %c0_i32, %c0_i32_0 : i32, i32, i32
  }
}

</mosaic_0001>

<llo_original>
// kernel: tpu_custom_call.1
$region0: #{tpu_custom_call.1}
  #allocation0 [shape = 'u32[]', space=smem, size = 0x4, offset = 0x4, fixed_abs, tag = 'smem constant byte address 0x4 - core index']
  #allocation1 [shape = 'u32[144,128]{1,0:T(1,128)}', space=vmem, size = 0x12000, scoped, tag = 'internal scratch']
  #allocation2 [shape = 'f32[32,128]{1,0:T(8,128)}', space=vmem, size = 0x4000, scoped, tag = 'scratch operand']
  %s0 = inlined_call_operand.hbm [shape: f32[2,16,128], index: 0, kind: input, shape index: {}]
  %s1 = inlined_call_operand.hbm [shape: f32[2,16,128], index: 1, kind: input, shape index: {}]
  %s2 = inlined_call_operand.hbm [shape: f32[2,16,128], index: 2, kind: input, shape index: {}]
  %s3 = inlined_call_operand.hbm [shape: f32[2,128,1536], index: 3, kind: input, shape index: {}]
  %s4 = inlined_call_operand.hbm [shape: f32[2,1,1536], index: 4, kind: input, shape index: {}]
  %s5 = inlined_call_operand.hbm [shape: f32[2,4,128,128], index: 5, kind: input, shape index: {}]
  %s6 = inlined_call_operand.hbm [shape: f32[2,1,128], index: 6, kind: input, shape index: {}]
  %s7 = inlined_call_operand.hbm [shape: f32[2,16,128], index: 7, kind: input, shape index: {}]
  %s8 = inlined_call_operand.hbm [shape: f32[2,16,128], index: 8, kind: input, shape index: {}]
  %s9 = inlined_call_operand.hbm [shape: f32[2,128,128], index: 9, kind: input, shape index: {}]
  %s10 = inlined_call_operand.hbm [shape: f32[2,1,128], index: 10, kind: input, shape index: {}]
  %s11 = inlined_call_operand.hbm [shape: f32[2,128,128], index: 11, kind: input, shape index: {}]
  %s12 = inlined_call_operand.hbm [shape: f32[2,1,128], index: 12, kind: input, shape index: {}]
  %s13 = inlined_call_operand.hbm [shape: f32[2,16,128], index: 13, kind: output, shape index: {}]
  %s14 = sld [smem:[#allocation0]]
  $region145: #{tpu_custom_call.1} parent=0
    _
  %s16 = ssub.s32 1, %s14
  %s17 = scalar_select 0, %s16, %s14
  $region1: #{tpu_custom_call.1} parent=0
    #allocation3 [shape = 'u8[16384]{0}', space=vmem, size = 0x4000, scoped, tag = 'input window, operand 0, single buffered']
    #allocation4 [shape = 's32[2]{0}', space=sflag, size = 0x8, scoped, tag = 'scoped memory for tpu_custom_call.1']
    #allocation5 [shape = 's32[2]{0}', space=sflag, size = 0x8, scoped, tag = 'scoped memory for tpu_custom_call.1']
    #allocation6 [shape = 'u8[16384]{0}', space=vmem, size = 0x4000, scoped, tag = 'input window, operand 1']
    #allocation7 [shape = 's32[2]{0}', space=sflag, size = 0x8, scoped, tag = 'scoped memory for tpu_custom_call.1']
    #allocation8 [shape = 'u8[16384]{0}', space=vmem, size = 0x4000, scoped, tag = 'input window, operand 2']
    #allocation9 [shape = 'u8[1572864]{0}', space=vmem, size = 0x180000, scoped, tag = 'input window, operand 3']
    #allocation10 [shape = 's32[2]{0}', space=sflag, size = 0x8, scoped, tag = 'scoped memory for tpu_custom_call.1']
    #allocation11 [shape = 'u8[12288]{0}', space=vmem, size = 0x3000, scoped, tag = 'input window, operand 4']
    #allocation12 [shape = 'u8[524288]{0}', space=vmem, size = 0x80000, scoped, tag = 'input window, operand 5']
    #allocation13 [shape = 's32[2]{0}', space=sflag, size = 0x8, scoped, tag = 'scoped memory for tpu_custom_call.1']
    #allocation14 [shape = 'u8[1024]{0}', space=vmem, size = 0x400, scoped, tag = 'input window, operand 6']
    #allocation15 [shape = 'u8[16384]{0}', space=vmem, size = 0x4000, scoped, tag = 'input window, operand 7']
    #allocation16 [shape = 's32[2]{0}', space=sflag, size = 0x8, scoped, tag = 'scoped memory for tpu_custom_call.1']
    #allocation17 [shape = 'u8[16384]{0}', space=vmem, size = 0x4000, scoped, tag = 'input window, operand 8']
    #allocation18 [shape = 'u8[131072]{0}', space=vmem, size = 0x20000, scoped, tag = 'input window, operand 9']
    #allocation19 [shape = 's32[2]{0}', space=sflag, size = 0x8, scoped, tag = 'scoped memory for tpu_custom_call.1']
    #allocation20 [shape = 'u8[1024]{0}', space=vmem, size = 0x400, scoped, tag = 'input window, operand 10']
    #allocation21 [shape = 'u8[131072]{0}', space=vmem, size = 0x20000, scoped, tag = 'input window, operand 11']
    #allocation22 [shape = 's32[2]{0}', space=sflag, size = 0x8, scoped, tag = 'scoped memory for tpu_custom_call.1']
    #allocation23 [shape = 'u8[1024]{0}', space=vmem, size = 0x400, scoped, tag = 'input window, operand 12']
    #allocation24 [shape = 'u8[16384]{0}', space=vmem, size = 0x4000, scoped, tag = 'output window, operand 0, single buffered']
    %18 = vsyncpa [#allocation4], 0
    %19 = vsyncpa [#allocation7], 0
    %s20 = scalar_lea.sflag [#allocation7], 1
    %21 = vsyncpa %s20, 0
    %22 = vsyncpa [#allocation10], 0
    %s23 = scalar_lea.sflag [#allocation10], 1
    %24 = vsyncpa %s23, 0
    %25 = vsyncpa [#allocation13], 0
    %s26 = scalar_lea.sflag [#allocation13], 1
    %27 = vsyncpa %s26, 0
    %28 = vsyncpa [#allocation16], 0
    %s29 = scalar_lea.sflag [#allocation16], 1
    %30 = vsyncpa %s29, 0
    %31 = vsyncpa [#allocation19], 0
    %s32 = scalar_lea.sflag [#allocation19], 1
    %33 = vsyncpa %s32, 0
    %34 = vsyncpa [#allocation22], 0
    %s35 = scalar_lea.sflag [#allocation22], 1
    %36 = vsyncpa %s35, 0
    %37 = vsyncpa [#allocation5], 0
    loop: start=0, step=1, limit=4
    $region2: #{tpu_custom_call.1} parent=1 // loop_pre_header
      _
    $region3: #{tpu_custom_call.1} parent=1 // loop_header
      %s39 = sphi 0, %s43
      %p40 = scmp.ge.s32.totalorder %s39, 4
      %s46 = sphi 0, %s58
      %s47 = sphi 0, %s54
      %s48 = sphi 0, %s46
      %s49 = sphi 0, %s47
      %s50 = sphi 0, %s48
      %s51 = sphi 0, %s49
      %s61 = sphi 0, %s63
      %s64 = sphi 0, %s61
      %s65 = sphi 0, %s64
      %s81 = sphi 0, %s65
      %s87 = sphi 0, %s89
      %s90 = sphi 0, %s87
      %s91 = sphi 0, %s90
      %s107 = sphi 0, %s91
      %s113 = sphi 0, %s115
      %s116 = sphi 0, %s113
      %s117 = sphi 0, %s116
      %s133 = sphi 0, %s117
      %s139 = sphi 0, %s141
      %s142 = sphi 0, %s139
      %s143 = sphi 0, %s142
      %s159 = sphi 0, %s143
      %s165 = sphi 0, %s167
      %s168 = sphi 0, %s165
      %s169 = sphi 0, %s168
      %s185 = sphi 0, %s169
      %s191 = sphi 0, %s193
      %s194 = sphi 0, %s191
      %s195 = sphi 0, %s194
      %s211 = sphi 0, %s195
      %s217 = sphi 0, %s219
      %s220 = sphi 0, %s217
      %s221 = sphi 0, %s220
      %s237 = sphi 0, %s221
      %s243 = sphi 0, %s245
      %s246 = sphi 0, %s243
      %s247 = sphi 0, %s246
      %s263 = sphi 0, %s247
      %s269 = sphi 0, %s271
      %s272 = sphi 0, %s269
      %s273 = sphi 0, %s272
      %s289 = sphi 0, %s273
      %s295 = sphi 0, %s297
      %s298 = sphi 0, %s295
      %s299 = sphi 0, %s298
      %s315 = sphi 0, %s299
      %s321 = sphi 0, %s323
      %s324 = sphi 0, %s321
      %s325 = sphi 0, %s324
      %s341 = sphi 0, %s325
      %s347 = sphi 0, %s349
      %s350 = sphi 0, %s347
      %s351 = sphi 0, %s350
      %s367 = sphi 0, %s351
      %s373 = sphi 0, %s375
      %s376 = sphi 0, %s373
      %s377 = sphi 0, %s376
      %s393 = sphi 0, %s377
      %s399 = sphi 0, %s401
      %s402 = sphi 0, %s399
      %s403 = sphi 0, %s402
      %s419 = sphi 0, %s403
    $region4: #{tpu_custom_call.1} parent=1 // loop_header_branch
      %42 = sbr.rel (%p40) target = $region8
    $region5: #{tpu_custom_call.1} parent=1 // loop_body
      %s44 = ssub.s32 %s39, 1
      %s45 = ssub.s32 %s39, 2
      %s52 = sadd.s32 1, %s47
      %p53 = scmp.ge.s32.totalorder %s52, 2
      %s54 = scalar_select %p53, 0, %s52
      %s55 = sadd.s32 1, %s46
      %s56 = scalar_select %p53, %s55, %s46
      %p57 = scmp.ge.s32.totalorder %s56, 1
      %s58 = scalar_select %p57, 0, %s56
      %s59 = ssub.s32 %s46, %s58
      %p60 = scmp.eq.s32.totalorder %s59, 0
      %s62 = sadd.s32 %s61, 1
      %s63 = scalar_select %p60, %s61, %s62
      %p66 = pneg %p60
      %p67 = scmp.eq.s32.totalorder %s39, 1
      %p68 = por %p66, %p67
      %p69 = scmp.ne.s32.totalorder %s61, %s64
      %p70 = scmp.eq.s32.totalorder %s39, 0
      %p71 = por %p69, %p70
      %p72 = scmp.ne.s32.totalorder %s61, %s64
      %p73 = scmp.eq.s32.totalorder %s44, 1
      %p74 = por %p72, %p73
      %p75 = scmp.ne.s32.totalorder %s64, %s65
      %p76 = scmp.eq.s32.totalorder %s44, 0
      %p77 = por %p75, %p76
      %p78 = scmp.ne.s32.totalorder %s64, %s65
      %p79 = scmp.eq.s32.totalorder %s45, 1
      %p80 = por %p78, %p79
      %p82 = scmp.ne.s32.totalorder %s65, %s81
      %p83 = scmp.eq.s32.totalorder %s45, 0
      %p84 = por %p82, %p83
      %s85 = ssub.s32 %s47, %s54
      %p86 = scmp.eq.s32.totalorder %s85, 0
      %s88 = sadd.s32 %s87, 1
      %s89 = scalar_select %p86, %s87, %s88
      %p92 = pneg %p86
      %p93 = scmp.eq.s32.totalorder %s39, 1
      %p94 = por %p92, %p93
      %p95 = scmp.ne.s32.totalorder %s87, %s90
      %p96 = scmp.eq.s32.totalorder %s39, 0
      %p97 = por %p95, %p96
      %p98 = scmp.ne.s32.totalorder %s87, %s90
      %p99 = scmp.eq.s32.totalorder %s44, 1
      %p100 = por %p98, %p99
      %p101 = scmp.ne.s32.totalorder %s90, %s91
      %p102 = scmp.eq.s32.totalorder %s44, 0
      %p103 = por %p101, %p102
      %p104 = scmp.ne.s32.totalorder %s90, %s91
      %p105 = scmp.eq.s32.totalorder %s45, 1
      %p106 = por %p104, %p105
      %p108 = scmp.ne.s32.totalorder %s91, %s107
      %p109 = scmp.eq.s32.totalorder %s45, 0
      %p110 = por %p108, %p109
      %s111 = ssub.s32 %s47, %s54
      %p112 = scmp.eq.s32.totalorder %s111, 0
      %s114 = sadd.s32 %s113, 1
      %s115 = scalar_select %p112, %s113, %s114
      %p118 = pneg %p112
      %p119 = scmp.eq.s32.totalorder %s39, 1
      %p120 = por %p118, %p119
      %p121 = scmp.ne.s32.totalorder %s113, %s116
      %p122 = scmp.eq.s32.totalorder %s39, 0
      %p123 = por %p121, %p122
      %p124 = scmp.ne.s32.totalorder %s113, %s116
      %p125 = scmp.eq.s32.totalorder %s44, 1
      %p126 = por %p124, %p125
      %p127 = scmp.ne.s32.totalorder %s116, %s117
      %p128 = scmp.eq.s32.totalorder %s44, 0
      %p129 = por %p127, %p128
      %p130 = scmp.ne.s32.totalorder %s116, %s117
      %p131 = scmp.eq.s32.totalorder %s45, 1
      %p132 = por %p130, %p131
      %p134 = scmp.ne.s32.totalorder %s117, %s133
      %p135 = scmp.eq.s32.totalorder %s45, 0
      %p136 = por %p134, %p135
      %s137 = ssub.s32 %s47, %s54
      %p138 = scmp.eq.s32.totalorder %s137, 0
      %s140 = sadd.s32 %s139, 1
      %s141 = scalar_select %p138, %s139, %s140
      %p144 = pneg %p138
      %p145 = scmp.eq.s32.totalorder %s39, 1
      %p146 = por %p144, %p145
      %p147 = scmp.ne.s32.totalorder %s139, %s142
      %p148 = scmp.eq.s32.totalorder %s39, 0
      %p149 = por %p147, %p148
      %p150 = scmp.ne.s32.totalorder %s139, %s142
      %p151 = scmp.eq.s32.totalorder %s44, 1
      %p152 = por %p150, %p151
      %p153 = scmp.ne.s32.totalorder %s142, %s143
      %p154 = scmp.eq.s32.totalorder %s44, 0
      %p155 = por %p153, %p154
      %p156 = scmp.ne.s32.totalorder %s142, %s143
      %p157 = scmp.eq.s32.totalorder %s45, 1
      %p158 = por %p156, %p157
      %p160 = scmp.ne.s32.totalorder %s143, %s159
      %p161 = scmp.eq.s32.totalorder %s45, 0
      %p162 = por %p160, %p161
      %s163 = ssub.s32 %s47, %s54
      %p164 = scmp.eq.s32.totalorder %s163, 0
      %s166 = sadd.s32 %s165, 1
      %s167 = scalar_select %p164, %s165, %s166
      %p170 = pneg %p164
      %p171 = scmp.eq.s32.totalorder %s39, 1
      %p172 = por %p170, %p171
      %p173 = scmp.ne.s32.totalorder %s165, %s168
      %p174 = scmp.eq.s32.totalorder %s39, 0
      %p175 = por %p173, %p174
      %p176 = scmp.ne.s32.totalorder %s165, %s168
      %p177 = scmp.eq.s32.totalorder %s44, 1
      %p178 = por %p176, %p177
      %p179 = scmp.ne.s32.totalorder %s168, %s169
      %p180 = scmp.eq.s32.totalorder %s44, 0
      %p181 = por %p179, %p180
      %p182 = scmp.ne.s32.totalorder %s168, %s169
      %p183 = scmp.eq.s32.totalorder %s45, 1
      %p184 = por %p182, %p183
      %p186 = scmp.ne.s32.totalorder %s169, %s185
      %p187 = scmp.eq.s32.totalorder %s45, 0
      %p188 = por %p186, %p187
      %s189 = ssub.s32 %s47, %s54
      %p190 = scmp.eq.s32.totalorder %s189, 0
      %s192 = sadd.s32 %s191, 1
      %s193 = scalar_select %p190, %s191, %s192
      %p196 = pneg %p190
      %p197 = scmp.eq.s32.totalorder %s39, 1
      %p198 = por %p196, %p197
      %p199 = scmp.ne.s32.totalorder %s191, %s194
      %p200 = scmp.eq.s32.totalorder %s39, 0
      %p201 = por %p199, %p200
      %p202 = scmp.ne.s32.totalorder %s191, %s194
      %p203 = scmp.eq.s32.totalorder %s44, 1
      %p204 = por %p202, %p203
      %p205 = scmp.ne.s32.totalorder %s194, %s195
      %p206 = scmp.eq.s32.totalorder %s44, 0
      %p207 = por %p205, %p206
      %p208 = scmp.ne.s32.totalorder %s194, %s195
      %p209 = scmp.eq.s32.totalorder %s45, 1
      %p210 = por %p208, %p209
      %p212 = scmp.ne.s32.totalorder %s195, %s211
      %p213 = scmp.eq.s32.totalorder %s45, 0
      %p214 = por %p212, %p213
      %s215 = ssub.s32 %s47, %s54
      %p216 = scmp.eq.s32.totalorder %s215, 0
      %s218 = sadd.s32 %s217, 1
      %s219 = scalar_select %p216, %s217, %s218
      %p222 = pneg %p216
      %p223 = scmp.eq.s32.totalorder %s39, 1
      %p224 = por %p222, %p223
      %p225 = scmp.ne.s32.totalorder %s217, %s220
      %p226 = scmp.eq.s32.totalorder %s39, 0
      %p227 = por %p225, %p226
      %p228 = scmp.ne.s32.totalorder %s217, %s220
      %p229 = scmp.eq.s32.totalorder %s44, 1
      %p230 = por %p228, %p229
      %p231 = scmp.ne.s32.totalorder %s220, %s221
      %p232 = scmp.eq.s32.totalorder %s44, 0
      %p233 = por %p231, %p232
      %p234 = scmp.ne.s32.totalorder %s220, %s221
      %p235 = scmp.eq.s32.totalorder %s45, 1
      %p236 = por %p234, %p235
      %p238 = scmp.ne.s32.totalorder %s221, %s237
      %p239 = scmp.eq.s32.totalorder %s45, 0
      %p240 = por %p238, %p239
      %s241 = ssub.s32 %s47, %s54
      %p242 = scmp.eq.s32.totalorder %s241, 0
      %s244 = sadd.s32 %s243, 1
      %s245 = scalar_select %p242, %s243, %s244
      %p248 = pneg %p242
      %p249 = scmp.eq.s32.totalorder %s39, 1
      %p250 = por %p248, %p249
      %p251 = scmp.ne.s32.totalorder %s243, %s246
      %p252 = scmp.eq.s32.totalorder %s39, 0
      %p253 = por %p251, %p252
      %p254 = scmp.ne.s32.totalorder %s243, %s246
      %p255 = scmp.eq.s32.totalorder %s44, 1
      %p256 = por %p254, %p255
      %p257 = scmp.ne.s32.totalorder %s246, %s247
      %p258 = scmp.eq.s32.totalorder %s44, 0
      %p259 = por %p257, %p258
      %p260 = scmp.ne.s32.totalorder %s246, %s247
      %p261 = scmp.eq.s32.totalorder %s45, 1
      %p262 = por %p260, %p261
      %p264 = scmp.ne.s32.totalorder %s247, %s263
      %p265 = scmp.eq.s32.totalorder %s45, 0
      %p266 = por %p264, %p265
      %s267 = ssub.s32 %s47, %s54
      %p268 = scmp.eq.s32.totalorder %s267, 0
      %s270 = sadd.s32 %s269, 1
      %s271 = scalar_select %p268, %s269, %s270
      %p274 = pneg %p268
      %p275 = scmp.eq.s32.totalorder %s39, 1
      %p276 = por %p274, %p275
      %p277 = scmp.ne.s32.totalorder %s269, %s272
      %p278 = scmp.eq.s32.totalorder %s39, 0
      %p279 = por %p277, %p278
      %p280 = scmp.ne.s32.totalorder %s269, %s272
      %p281 = scmp.eq.s32.totalorder %s44, 1
      %p282 = por %p280, %p281
      %p283 = scmp.ne.s32.totalorder %s272, %s273
      %p284 = scmp.eq.s32.totalorder %s44, 0
      %p285 = por %p283, %p284
      %p286 = scmp.ne.s32.totalorder %s272, %s273
      %p287 = scmp.eq.s32.totalorder %s45, 1
      %p288 = por %p286, %p287
      %p290 = scmp.ne.s32.totalorder %s273, %s289
      %p291 = scmp.eq.s32.totalorder %s45, 0
      %p292 = por %p290, %p291
      %s293 = ssub.s32 %s47, %s54
      %p294 = scmp.eq.s32.totalorder %s293, 0
      %s296 = sadd.s32 %s295, 1
      %s297 = scalar_select %p294, %s295, %s296
      %p300 = pneg %p294
      %p301 = scmp.eq.s32.totalorder %s39, 1
      %p302 = por %p300, %p301
      %p303 = scmp.ne.s32.totalorder %s295, %s298
      %p304 = scmp.eq.s32.totalorder %s39, 0
      %p305 = por %p303, %p304
      %p306 = scmp.ne.s32.totalorder %s295, %s298
      %p307 = scmp.eq.s32.totalorder %s44, 1
      %p308 = por %p306, %p307
      %p309 = scmp.ne.s32.totalorder %s298, %s299
      %p310 = scmp.eq.s32.totalorder %s44, 0
      %p311 = por %p309, %p310
      %p312 = scmp.ne.s32.totalorder %s298, %s299
      %p313 = scmp.eq.s32.totalorder %s45, 1
      %p314 = por %p312, %p313
      %p316 = scmp.ne.s32.totalorder %s299, %s315
      %p317 = scmp.eq.s32.totalorder %s45, 0
      %p318 = por %p316, %p317
      %s319 = ssub.s32 %s47, %s54
      %p320 = scmp.eq.s32.totalorder %s319, 0
      %s322 = sadd.s32 %s321, 1
      %s323 = scalar_select %p320, %s321, %s322
      %p326 = pneg %p320
      %p327 = scmp.eq.s32.totalorder %s39, 1
      %p328 = por %p326, %p327
      %p329 = scmp.ne.s32.totalorder %s321, %s324
      %p330 = scmp.eq.s32.totalorder %s39, 0
      %p331 = por %p329, %p330
      %p332 = scmp.ne.s32.totalorder %s321, %s324
      %p333 = scmp.eq.s32.totalorder %s44, 1
      %p334 = por %p332, %p333
      %p335 = scmp.ne.s32.totalorder %s324, %s325
      %p336 = scmp.eq.s32.totalorder %s44, 0
      %p337 = por %p335, %p336
      %p338 = scmp.ne.s32.totalorder %s324, %s325
      %p339 = scmp.eq.s32.totalorder %s45, 1
      %p340 = por %p338, %p339
      %p342 = scmp.ne.s32.totalorder %s325, %s341
      %p343 = scmp.eq.s32.totalorder %s45, 0
      %p344 = por %p342, %p343
      %s345 = ssub.s32 %s47, %s54
      %p346 = scmp.eq.s32.totalorder %s345, 0
      %s348 = sadd.s32 %s347, 1
      %s349 = scalar_select %p346, %s347, %s348
      %p352 = pneg %p346
      %p353 = scmp.eq.s32.totalorder %s39, 1
      %p354 = por %p352, %p353
      %p355 = scmp.ne.s32.totalorder %s347, %s350
      %p356 = scmp.eq.s32.totalorder %s39, 0
      %p357 = por %p355, %p356
      %p358 = scmp.ne.s32.totalorder %s347, %s350
      %p359 = scmp.eq.s32.totalorder %s44, 1
      %p360 = por %p358, %p359
      %p361 = scmp.ne.s32.totalorder %s350, %s351
      %p362 = scmp.eq.s32.totalorder %s44, 0
      %p363 = por %p361, %p362
      %p364 = scmp.ne.s32.totalorder %s350, %s351
      %p365 = scmp.eq.s32.totalorder %s45, 1
      %p366 = por %p364, %p365
      %p368 = scmp.ne.s32.totalorder %s351, %s367
      %p369 = scmp.eq.s32.totalorder %s45, 0
      %p370 = por %p368, %p369
      %s371 = ssub.s32 %s47, %s54
      %p372 = scmp.eq.s32.totalorder %s371, 0
      %s374 = sadd.s32 %s373, 1
      %s375 = scalar_select %p372, %s373, %s374
      %p378 = pneg %p372
      %p379 = scmp.eq.s32.totalorder %s39, 1
      %p380 = por %p378, %p379
      %p381 = scmp.ne.s32.totalorder %s373, %s376
      %p382 = scmp.eq.s32.totalorder %s39, 0
      %p383 = por %p381, %p382
      %p384 = scmp.ne.s32.totalorder %s373, %s376
      %p385 = scmp.eq.s32.totalorder %s44, 1
      %p386 = por %p384, %p385
      %p387 = scmp.ne.s32.totalorder %s376, %s377
      %p388 = scmp.eq.s32.totalorder %s44, 0
      %p389 = por %p387, %p388
      %p390 = scmp.ne.s32.totalorder %s376, %s377
      %p391 = scmp.eq.s32.totalorder %s45, 1
      %p392 = por %p390, %p391
      %p394 = scmp.ne.s32.totalorder %s377, %s393
      %p395 = scmp.eq.s32.totalorder %s45, 0
      %p396 = por %p394, %p395
      %s397 = ssub.s32 %s46, %s58
      %p398 = scmp.eq.s32.totalorder %s397, 0
      %s400 = sadd.s32 %s399, 1
      %s401 = scalar_select %p398, %s399, %s400
      %p404 = pneg %p398
      %p405 = scmp.eq.s32.totalorder %s39, 1
      %p406 = por %p404, %p405
      %p407 = scmp.ne.s32.totalorder %s399, %s402
      %p408 = scmp.eq.s32.totalorder %s39, 0
      %p409 = por %p407, %p408
      %p410 = scmp.ne.s32.totalorder %s399, %s402
      %p411 = scmp.eq.s32.totalorder %s44, 1
      %p412 = por %p410, %p411
      %p413 = scmp.ne.s32.totalorder %s402, %s403
      %p414 = scmp.eq.s32.totalorder %s44, 0
      %p415 = por %p413, %p414
      %p416 = scmp.ne.s32.totalorder %s402, %s403
      %p417 = scmp.eq.s32.totalorder %s45, 1
      %p418 = por %p416, %p417
      %p420 = scmp.ne.s32.totalorder %s403, %s419
      %p421 = scmp.eq.s32.totalorder %s45, 0
      %p422 = por %p420, %p421
      %p423 = scmp.le.s32.totalorder 1, %s39
      %p424 = scmp.lt.s32.totalorder %s39, 3
      %p425 = pnand %p423, %p424
      %p426 = pneg %p425
      // Predicated region
      $region9: #{tpu_custom_call.1} parent=5 // pred_check
        _
      $region10: #{tpu_custom_call.1} parent=5 // pred_check_branch
        %428 = sbr.rel (%p425) target = $region12
      $region11: #{tpu_custom_call.1} parent=5 // pred_region
        %s429 = ssub.s32 %s39, 1
        // Predicated region
        $region13: #{tpu_custom_call.1} parent=11 // pred_check
          %p430 = pneg %p77
        $region14: #{tpu_custom_call.1} parent=11 // pred_check_branch
          %432 = sbr.rel (%p430) target = $region16
        $region15: #{tpu_custom_call.1} parent=11 // pred_region
          %s433 = smul.u32 2, %s48
          %s435 = ssub.s32 512, 512
          %436 = vsyncadd [#allocation4], %s435
          %s437 = smul.addr %s433, 2
          %s438 = smul.addr %s437, 128
          %s439 = scalar_lea.hbm %s0, %s438
          %s440 = sshll.u32 [#allocation3], 4
          %s441 = int_to_ptr.vmem [resolvable:$true] %s440
          %446 = dma.hbm_to_vmem [thread:$0]  %s439, 512, %s441, [#allocation4], 128, 128, 8
        $region16: #{tpu_custom_call.1} parent=11 // pred_fallthru
          _
      $region12: #{tpu_custom_call.1} parent=5 // pred_fallthru
        _
      %p447 = scmp.lt.s32.totalorder %s39, 2
      // Predicated region
      $region17: #{tpu_custom_call.1} parent=5 // pred_check
        %p448 = pneg %p447
      $region18: #{tpu_custom_call.1} parent=5 // pred_check_branch
        %450 = sbr.rel (%p448) target = $region20
      $region19: #{tpu_custom_call.1} parent=5 // pred_region
        // Predicated region
        $region21: #{tpu_custom_call.1} parent=19 // pred_check
          %p451 = pneg %p97
        $region22: #{tpu_custom_call.1} parent=19 // pred_check_branch
          %453 = sbr.rel (%p451) target = $region24
        $region23: #{tpu_custom_call.1} parent=19 // pred_region
          %s454 = sand.u32 %s39, 1
          %s455 = scalar_lea.sflag [#allocation7], %s454
          %s456 = sand.u32 %s87, 1
          %s457 = smul.addr %s456, 16
          %s458 = scalar_lea.vmem [#allocation6], %s457
          %s460 = ssub.s32 256, 256
          %461 = vsyncadd %s455, %s460
          %s462 = smul.addr %s47, 2
          %s463 = smul.addr %s462, 128
          %s464 = scalar_lea.hbm %s1, %s463
          %s465 = sshll.u32 %s458, 4
          %s466 = int_to_ptr.vmem [resolvable:$true] %s465
          %471 = dma.hbm_to_vmem [thread:$0]  %s464, 256, %s466, %s455, 128, 128, 8
        $region24: #{tpu_custom_call.1} parent=19 // pred_fallthru
          _
        // Predicated region
        $region25: #{tpu_custom_call.1} parent=19 // pred_check
          %p472 = pneg %p123
        $region26: #{tpu_custom_call.1} parent=19 // pred_check_branch
          %474 = sbr.rel (%p472) target = $region28
        $region27: #{tpu_custom_call.1} parent=19 // pred_region
          %s475 = sand.u32 %s39, 1
          %s476 = scalar_lea.sflag [#allocation7], %s475
          %s477 = sand.u32 %s113, 1
          %s478 = smul.addr %s477, 16
          %s479 = scalar_lea.vmem [#allocation8], %s478
          %s481 = ssub.s32 256, 256
          %482 = vsyncadd %s476, %s481
          %s483 = smul.addr %s47, 2
          %s484 = smul.addr %s483, 128
          %s485 = scalar_lea.hbm %s2, %s484
          %s486 = sshll.u32 %s479, 4
          %s487 = int_to_ptr.vmem [resolvable:$true] %s486
          %492 = dma.hbm_to_vmem [thread:$0]  %s485, 256, %s487, %s476, 128, 128, 8
        $region28: #{tpu_custom_call.1} parent=19 // pred_fallthru
          _
        // Predicated region
        $region29: #{tpu_custom_call.1} parent=19 // pred_check
          %p493 = pneg %p149
        $region30: #{tpu_custom_call.1} parent=19 // pred_check_branch
          %495 = sbr.rel (%p493) target = $region32
        $region31: #{tpu_custom_call.1} parent=19 // pred_region
          %s496 = sand.u32 %s39, 1
          %s497 = scalar_lea.sflag [#allocation10], %s496
          %s498 = sand.u32 %s139, 1
          %s499 = smul.addr %s498, 1536
          %s500 = scalar_lea.vmem [#allocation9], %s499
          %s502 = ssub.s32 24576, 24576
          %503 = vsyncadd %s497, %s502
          %s504 = smul.addr %s47, 192
          %s505 = smul.addr %s504, 128
          %s506 = scalar_lea.hbm %s3, %s505
          %s507 = sshll.u32 %s500, 4
          %s508 = int_to_ptr.vmem [resolvable:$true] %s507
          %513 = dma.hbm_to_vmem [thread:$0]  %s506, 24576, %s508, %s497, 1536, 1536, 96
        $region32: #{tpu_custom_call.1} parent=19 // pred_fallthru
          _
        // Predicated region
        $region33: #{tpu_custom_call.1} parent=19 // pred_check
          %p514 = pneg %p175
        $region34: #{tpu_custom_call.1} parent=19 // pred_check_branch
          %516 = sbr.rel (%p514) target = $region36
        $region35: #{tpu_custom_call.1} parent=19 // pred_region
          %s517 = sand.u32 %s39, 1
          %s518 = scalar_lea.sflag [#allocation10], %s517
          %s519 = sand.u32 %s165, 1
          %s520 = smul.addr %s519, 12
          %s521 = scalar_lea.vmem [#allocation11], %s520
          %s523 = ssub.s32 192, 192
          %524 = vsyncadd %s518, %s523
          %s525 = smul.addr %s47, 12
          %s526 = smul.addr %s525, 16
          %s527 = scalar_lea.hbm %s4, %s526
          %s529 = sshll.u32 %s521, 4
          %s530 = int_to_ptr.vmem [resolvable:$true] %s529
          %532 = dma.hbm_to_vmem [thread:$0]  %s527, 192, %s530, %s518
        $region36: #{tpu_custom_call.1} parent=19 // pred_fallthru
          _
        // Predicated region
        $region37: #{tpu_custom_call.1} parent=19 // pred_check
          %p533 = pneg %p201
        $region38: #{tpu_custom_call.1} parent=19 // pred_check_branch
          %535 = sbr.rel (%p533) target = $region40
        $region39: #{tpu_custom_call.1} parent=19 // pred_region
          %s536 = sand.u32 %s39, 1
          %s537 = scalar_lea.sflag [#allocation13], %s536
          %s538 = sand.u32 %s191, 1
          %s539 = smul.addr %s538, 512
          %s540 = scalar_lea.vmem [#allocation12], %s539
          %s542 = ssub.s32 8192, 8192
          %543 = vsyncadd %s537, %s542
          %s544 = smul.addr %s47, 64
          %s545 = smul.addr %s544, 128
          %s546 = scalar_lea.hbm %s5, %s545
          %s547 = sshll.u32 %s540, 4
          %s548 = int_to_ptr.vmem [resolvable:$true] %s547
          %553 = dma.hbm_to_vmem [thread:$0]  %s546, 8192, %s548, %s537, 128, 128, 8
        $region40: #{tpu_custom_call.1} parent=19 // pred_fallthru
          _
        // Predicated region
        $region41: #{tpu_custom_call.1} parent=19 // pred_check
          %p554 = pneg %p227
        $region42: #{tpu_custom_call.1} parent=19 // pred_check_branch
          %556 = sbr.rel (%p554) target = $region44
        $region43: #{tpu_custom_call.1} parent=19 // pred_region
          %s557 = sand.u32 %s39, 1
          %s558 = scalar_lea.sflag [#allocation13], %s557
          %s559 = sand.u32 %s217, 1
          %s560 = scalar_lea.vmem [#allocation14], %s559
          %s562 = ssub.s32 16, 16
          %563 = vsyncadd %s558, %s562
          %s564 = smul.addr %s47, 16
          %s565 = scalar_lea.hbm %s6, %s564
          %s567 = sshll.u32 %s560, 4
          %s568 = int_to_ptr.vmem [resolvable:$true] %s567
          %570 = dma.hbm_to_vmem [thread:$0]  %s565, 16, %s568, %s558
        $region44: #{tpu_custom_call.1} parent=19 // pred_fallthru
          _
        // Predicated region
        $region45: #{tpu_custom_call.1} parent=19 // pred_check
          %p571 = pneg %p253
        $region46: #{tpu_custom_call.1} parent=19 // pred_check_branch
          %573 = sbr.rel (%p571) target = $region48
        $region47: #{tpu_custom_call.1} parent=19 // pred_region
          %s574 = sand.u32 %s39, 1
          %s575 = scalar_lea.sflag [#allocation16], %s574
          %s576 = sand.u32 %s243, 1
          %s577 = smul.addr %s576, 16
          %s578 = scalar_lea.vmem [#allocation15], %s577
          %s580 = ssub.s32 256, 256
          %581 = vsyncadd %s575, %s580
          %s582 = smul.addr %s47, 2
          %s583 = smul.addr %s582, 128
          %s584 = scalar_lea.hbm %s7, %s583
          %s585 = sshll.u32 %s578, 4
          %s586 = int_to_ptr.vmem [resolvable:$true] %s585
          %591 = dma.hbm_to_vmem [thread:$0]  %s584, 256, %s586, %s575, 128, 128, 8
        $region48: #{tpu_custom_call.1} parent=19 // pred_fallthru
          _
        // Predicated region
        $region49: #{tpu_custom_call.1} parent=19 // pred_check
          %p592 = pneg %p279
        $region50: #{tpu_custom_call.1} parent=19 // pred_check_branch
          %594 = sbr.rel (%p592) target = $region52
        $region51: #{tpu_custom_call.1} parent=19 // pred_region
          %s595 = sand.u32 %s39, 1
          %s596 = scalar_lea.sflag [#allocation16], %s595
          %s597 = sand.u32 %s269, 1
          %s598 = smul.addr %s597, 16
          %s599 = scalar_lea.vmem [#allocation17], %s598
          %s601 = ssub.s32 256, 256
          %602 = vsyncadd %s596, %s601
          %s603 = smul.addr %s47, 2
          %s604 = smul.addr %s603, 128
          %s605 = scalar_lea.hbm %s8, %s604
          %s606 = sshll.u32 %s599, 4
          %s607 = int_to_ptr.vmem [resolvable:$true] %s606
          %612 = dma.hbm_to_vmem [thread:$0]  %s605, 256, %s607, %s596, 128, 128, 8
        $region52: #{tpu_custom_call.1} parent=19 // pred_fallthru
          _
        // Predicated region
        $region53: #{tpu_custom_call.1} parent=19 // pred_check
          %p613 = pneg %p305
        $region54: #{tpu_custom_call.1} parent=19 // pred_check_branch
          %615 = sbr.rel (%p613) target = $region56
        $region55: #{tpu_custom_call.1} parent=19 // pred_region
          %s616 = sand.u32 %s39, 1
          %s617 = scalar_lea.sflag [#allocation19], %s616
          %s618 = sand.u32 %s295, 1
          %s619 = smul.addr %s618, 128
          %s620 = scalar_lea.vmem [#allocation18], %s619
          %s622 = ssub.s32 2048, 2048
          %623 = vsyncadd %s617, %s622
          %s624 = smul.addr %s47, 16
          %s625 = smul.addr %s624, 128
          %s626 = scalar_lea.hbm %s9, %s625
          %s627 = sshll.u32 %s620, 4
          %s628 = int_to_ptr.vmem [resolvable:$true] %s627
          %633 = dma.hbm_to_vmem [thread:$0]  %s626, 2048, %s628, %s617, 128, 128, 8
        $region56: #{tpu_custom_call.1} parent=19 // pred_fallthru
          _
        // Predicated region
        $region57: #{tpu_custom_call.1} parent=19 // pred_check
          %p634 = pneg %p331
        $region58: #{tpu_custom_call.1} parent=19 // pred_check_branch
          %636 = sbr.rel (%p634) target = $region60
        $region59: #{tpu_custom_call.1} parent=19 // pred_region
          %s637 = sand.u32 %s39, 1
          %s638 = scalar_lea.sflag [#allocation19], %s637
          %s639 = sand.u32 %s321, 1
          %s640 = scalar_lea.vmem [#allocation20], %s639
          %s642 = ssub.s32 16, 16
          %643 = vsyncadd %s638, %s642
          %s644 = smul.addr %s47, 16
          %s645 = scalar_lea.hbm %s10, %s644
          %s647 = sshll.u32 %s640, 4
          %s648 = int_to_ptr.vmem [resolvable:$true] %s647
          %650 = dma.hbm_to_vmem [thread:$0]  %s645, 16, %s648, %s638
        $region60: #{tpu_custom_call.1} parent=19 // pred_fallthru
          _
        // Predicated region
        $region61: #{tpu_custom_call.1} parent=19 // pred_check
          %p651 = pneg %p357
        $region62: #{tpu_custom_call.1} parent=19 // pred_check_branch
          %653 = sbr.rel (%p651) target = $region64
        $region63: #{tpu_custom_call.1} parent=19 // pred_region
          %s654 = sand.u32 %s39, 1
          %s655 = scalar_lea.sflag [#allocation22], %s654
          %s656 = sand.u32 %s347, 1
          %s657 = smul.addr %s656, 128
          %s658 = scalar_lea.vmem [#allocation21], %s657
          %s660 = ssub.s32 2048, 2048
          %661 = vsyncadd %s655, %s660
          %s662 = smul.addr %s47, 16
          %s663 = smul.addr %s662, 128
          %s664 = scalar_lea.hbm %s11, %s663
          %s665 = sshll.u32 %s658, 4
          %s666 = int_to_ptr.vmem [resolvable:$true] %s665
          %671 = dma.hbm_to_vmem [thread:$0]  %s664, 2048, %s666, %s655, 128, 128, 8
        $region64: #{tpu_custom_call.1} parent=19 // pred_fallthru
          _
        // Predicated region
        $region65: #{tpu_custom_call.1} parent=19 // pred_check
          %p672 = pneg %p383
        $region66: #{tpu_custom_call.1} parent=19 // pred_check_branch
          %674 = sbr.rel (%p672) target = $region68
        $region67: #{tpu_custom_call.1} parent=19 // pred_region
          %s675 = sand.u32 %s39, 1
          %s676 = scalar_lea.sflag [#allocation22], %s675
          %s677 = sand.u32 %s373, 1
          %s678 = scalar_lea.vmem [#allocation23], %s677
          %s680 = ssub.s32 16, 16
          %681 = vsyncadd %s676, %s680
          %s682 = smul.addr %s47, 16
          %s683 = scalar_lea.hbm %s12, %s682
          %s685 = sshll.u32 %s678, 4
          %s686 = int_to_ptr.vmem [resolvable:$true] %s685
          %688 = dma.hbm_to_vmem [thread:$0]  %s683, 16, %s686, %s676
        $region68: #{tpu_custom_call.1} parent=19 // pred_fallthru
          _
      $region20: #{tpu_custom_call.1} parent=5 // pred_fallthru
        _
      %p689 = scmp.le.s32.totalorder 1, %s39
      %p690 = scmp.lt.s32.totalorder %s39, 3
      %p691 = pnand %p689, %p690
      %p692 = pneg %p691
      // Predicated region
      $region69: #{tpu_custom_call.1} parent=5 // pred_check
        _
      $region70: #{tpu_custom_call.1} parent=5 // pred_check_branch
        %694 = sbr.rel (%p691) target = $region72
      $region71: #{tpu_custom_call.1} parent=5 // pred_region
        %s695 = ssub.s32 %s39, 1
        // Predicated region
        $region73: #{tpu_custom_call.1} parent=71 // pred_check
          %p696 = pneg %p77
        $region74: #{tpu_custom_call.1} parent=71 // pred_check_branch
          %698 = sbr.rel (%p696) target = $region76
        $region75: #{tpu_custom_call.1} parent=71 // pred_region
          %699 = dma.done [#allocation4], 512
        $region76: #{tpu_custom_call.1} parent=71 // pred_fallthru
          _
        %s700 = sand.u32 %s44, 1
        %s701 = scalar_lea.sflag [#allocation7], %s700
        %s702 = sand.u32 %s90, 1
        %s703 = smul.addr %s702, 16
        %s704 = scalar_lea.vmem [#allocation6], %s703
        // Predicated region
        $region77: #{tpu_custom_call.1} parent=71 // pred_check
          %p705 = pneg %p103
        $region78: #{tpu_custom_call.1} parent=71 // pred_check_branch
          %707 = sbr.rel (%p705) target = $region80
        $region79: #{tpu_custom_call.1} parent=71 // pred_region
          %708 = dma.done %s701, 256
        $region80: #{tpu_custom_call.1} parent=71 // pred_fallthru
          _
        %s709 = sand.u32 %s44, 1
        %s710 = scalar_lea.sflag [#allocation7], %s709
        %s711 = sand.u32 %s116, 1
        %s712 = smul.addr %s711, 16
        %s713 = scalar_lea.vmem [#allocation8], %s712
        // Predicated region
        $region81: #{tpu_custom_call.1} parent=71 // pred_check
          %p714 = pneg %p129
        $region82: #{tpu_custom_call.1} parent=71 // pred_check_branch
          %716 = sbr.rel (%p714) target = $region84
        $region83: #{tpu_custom_call.1} parent=71 // pred_region
          %717 = dma.done %s710, 256
        $region84: #{tpu_custom_call.1} parent=71 // pred_fallthru
          _
        %s718 = sand.u32 %s44, 1
        %s719 = scalar_lea.sflag [#allocation10], %s718
        %s720 = sand.u32 %s142, 1
        %s721 = smul.addr %s720, 1536
        %s722 = scalar_lea.vmem [#allocation9], %s721
        // Predicated region
        $region85: #{tpu_custom_call.1} parent=71 // pred_check
          %p723 = pneg %p155
        $region86: #{tpu_custom_call.1} parent=71 // pred_check_branch
          %725 = sbr.rel (%p723) target = $region88
        $region87: #{tpu_custom_call.1} parent=71 // pred_region
          %726 = dma.done %s719, 24576
        $region88: #{tpu_custom_call.1} parent=71 // pred_fallthru
          _
        %s727 = sand.u32 %s44, 1
        %s728 = scalar_lea.sflag [#allocation10], %s727
        %s729 = sand.u32 %s168, 1
        %s730 = smul.addr %s729, 12
        %s731 = scalar_lea.vmem [#allocation11], %s730
        // Predicated region
        $region89: #{tpu_custom_call.1} parent=71 // pred_check
          %p732 = pneg %p181
        $region90: #{tpu_custom_call.1} parent=71 // pred_check_branch
          %734 = sbr.rel (%p732) target = $region92
        $region91: #{tpu_custom_call.1} parent=71 // pred_region
          %735 = dma.done %s728, 192
        $region92: #{tpu_custom_call.1} parent=71 // pred_fallthru
          _
        %s736 = sand.u32 %s44, 1
        %s737 = scalar_lea.sflag [#allocation13], %s736
        %s738 = sand.u32 %s194, 1
        %s739 = smul.addr %s738, 512
        %s740 = scalar_lea.vmem [#allocation12], %s739
        // Predicated region
        $region93: #{tpu_custom_call.1} parent=71 // pred_check
          %p741 = pneg %p207
        $region94: #{tpu_custom_call.1} parent=71 // pred_check_branch
          %743 = sbr.rel (%p741) target = $region96
        $region95: #{tpu_custom_call.1} parent=71 // pred_region
          %744 = dma.done %s737, 8192
        $region96: #{tpu_custom_call.1} parent=71 // pred_fallthru
          _
        %s745 = sand.u32 %s44, 1
        %s746 = scalar_lea.sflag [#allocation13], %s745
        %s747 = sand.u32 %s220, 1
        %s748 = scalar_lea.vmem [#allocation14], %s747
        // Predicated region
        $region97: #{tpu_custom_call.1} parent=71 // pred_check
          %p749 = pneg %p233
        $region98: #{tpu_custom_call.1} parent=71 // pred_check_branch
          %751 = sbr.rel (%p749) target = $region100
        $region99: #{tpu_custom_call.1} parent=71 // pred_region
          %752 = dma.done %s746, 16
        $region100: #{tpu_custom_call.1} parent=71 // pred_fallthru
          _
        %s753 = sand.u32 %s44, 1
        %s754 = scalar_lea.sflag [#allocation16], %s753
        %s755 = sand.u32 %s246, 1
        %s756 = smul.addr %s755, 16
        %s757 = scalar_lea.vmem [#allocation15], %s756
        // Predicated region
        $region101: #{tpu_custom_call.1} parent=71 // pred_check
          %p758 = pneg %p259
        $region102: #{tpu_custom_call.1} parent=71 // pred_check_branch
          %760 = sbr.rel (%p758) target = $region104
        $region103: #{tpu_custom_call.1} parent=71 // pred_region
          %761 = dma.done %s754, 256
        $region104: #{tpu_custom_call.1} parent=71 // pred_fallthru
          _
        %s762 = sand.u32 %s44, 1
        %s763 = scalar_lea.sflag [#allocation16], %s762
        %s764 = sand.u32 %s272, 1
        %s765 = smul.addr %s764, 16
        %s766 = scalar_lea.vmem [#allocation17], %s765
        // Predicated region
        $region105: #{tpu_custom_call.1} parent=71 // pred_check
          %p767 = pneg %p285
        $region106: #{tpu_custom_call.1} parent=71 // pred_check_branch
          %769 = sbr.rel (%p767) target = $region108
        $region107: #{tpu_custom_call.1} parent=71 // pred_region
          %770 = dma.done %s763, 256
        $region108: #{tpu_custom_call.1} parent=71 // pred_fallthru
          _
        %s771 = sand.u32 %s44, 1
        %s772 = scalar_lea.sflag [#allocation19], %s771
        %s773 = sand.u32 %s298, 1
        %s774 = smul.addr %s773, 128
        %s775 = scalar_lea.vmem [#allocation18], %s774
        // Predicated region
        $region109: #{tpu_custom_call.1} parent=71 // pred_check
          %p776 = pneg %p311
        $region110: #{tpu_custom_call.1} parent=71 // pred_check_branch
          %778 = sbr.rel (%p776) target = $region112
        $region111: #{tpu_custom_call.1} parent=71 // pred_region
          %779 = dma.done %s772, 2048
        $region112: #{tpu_custom_call.1} parent=71 // pred_fallthru
          _
        %s780 = sand.u32 %s44, 1
        %s781 = scalar_lea.sflag [#allocation19], %s780
        %s782 = sand.u32 %s324, 1
        %s783 = scalar_lea.vmem [#allocation20], %s782
        // Predicated region
        $region113: #{tpu_custom_call.1} parent=71 // pred_check
          %p784 = pneg %p337
        $region114: #{tpu_custom_call.1} parent=71 // pred_check_branch
          %786 = sbr.rel (%p784) target = $region116
        $region115: #{tpu_custom_call.1} parent=71 // pred_region
          %787 = dma.done %s781, 16
        $region116: #{tpu_custom_call.1} parent=71 // pred_fallthru
          _
        %s788 = sand.u32 %s44, 1
        %s789 = scalar_lea.sflag [#allocation22], %s788
        %s790 = sand.u32 %s350, 1
        %s791 = smul.addr %s790, 128
        %s792 = scalar_lea.vmem [#allocation21], %s791
        // Predicated region
        $region117: #{tpu_custom_call.1} parent=71 // pred_check
          %p793 = pneg %p363
        $region118: #{tpu_custom_call.1} parent=71 // pred_check_branch
          %795 = sbr.rel (%p793) target = $region120
        $region119: #{tpu_custom_call.1} parent=71 // pred_region
          %796 = dma.done %s789, 2048
        $region120: #{tpu_custom_call.1} parent=71 // pred_fallthru
          _
        %s797 = sand.u32 %s44, 1
        %s798 = scalar_lea.sflag [#allocation22], %s797
        %s799 = sand.u32 %s376, 1
        %s800 = scalar_lea.vmem [#allocation23], %s799
        // Predicated region
        $region121: #{tpu_custom_call.1} parent=71 // pred_check
          %p801 = pneg %p389
        $region122: #{tpu_custom_call.1} parent=71 // pred_check_branch
          %803 = sbr.rel (%p801) target = $region124
        $region123: #{tpu_custom_call.1} parent=71 // pred_region
          %804 = dma.done %s798, 16
        $region124: #{tpu_custom_call.1} parent=71 // pred_fallthru
          _
        %p805 = pneg %p77
        %p806 = pneg %p74
        %s807 = sand.u32 %s44, 1
        %s808 = scalar_lea.sflag [#allocation7], %s807
        %s809 = sand.u32 %s90, 1
        %s810 = smul.addr %s809, 16
        %s811 = scalar_lea.vmem [#allocation6], %s810
        %p812 = pneg %p103
        %p813 = pneg %p100
        %s814 = sand.u32 %s44, 1
        %s815 = scalar_lea.sflag [#allocation7], %s814
        %s816 = sand.u32 %s116, 1
        %s817 = smul.addr %s816, 16
        %s818 = scalar_lea.vmem [#allocation8], %s817
        %p819 = pneg %p129
        %p820 = pneg %p126
        %s821 = sand.u32 %s44, 1
        %s822 = scalar_lea.sflag [#allocation10], %s821
        %s823 = sand.u32 %s142, 1
        %s824 = smul.addr %s823, 1536
        %s825 = scalar_lea.vmem [#allocation9], %s824
        %p826 = pneg %p155
        %p827 = pneg %p152
        %s828 = sand.u32 %s44, 1
        %s829 = scalar_lea.sflag [#allocation10], %s828
        %s830 = sand.u32 %s168, 1
        %s831 = smul.addr %s830, 12
        %s832 = scalar_lea.vmem [#allocation11], %s831
        %p833 = pneg %p181
        %p834 = pneg %p178
        %s835 = sand.u32 %s44, 1
        %s836 = scalar_lea.sflag [#allocation13], %s835
        %s837 = sand.u32 %s194, 1
        %s838 = smul.addr %s837, 512
        %s839 = scalar_lea.vmem [#allocation12], %s838
        %p840 = pneg %p207
        %p841 = pneg %p204
        %s842 = sand.u32 %s44, 1
        %s843 = scalar_lea.sflag [#allocation13], %s842
        %s844 = sand.u32 %s220, 1
        %s845 = scalar_lea.vmem [#allocation14], %s844
        %p846 = pneg %p233
        %p847 = pneg %p230
        %s848 = sand.u32 %s44, 1
        %s849 = scalar_lea.sflag [#allocation16], %s848
        %s850 = sand.u32 %s246, 1
        %s851 = smul.addr %s850, 16
        %s852 = scalar_lea.vmem [#allocation15], %s851
        %p853 = pneg %p259
        %p854 = pneg %p256
        %s855 = sand.u32 %s44, 1
        %s856 = scalar_lea.sflag [#allocation16], %s855
        %s857 = sand.u32 %s272, 1
        %s858 = smul.addr %s857, 16
        %s859 = scalar_lea.vmem [#allocation17], %s858
        %p860 = pneg %p285
        %p861 = pneg %p282
        %s862 = sand.u32 %s44, 1
        %s863 = scalar_lea.sflag [#allocation19], %s862
        %s864 = sand.u32 %s298, 1
        %s865 = smul.addr %s864, 128
        %s866 = scalar_lea.vmem [#allocation18], %s865
        %p867 = pneg %p311
        %p868 = pneg %p308
        %s869 = sand.u32 %s44, 1
        %s870 = scalar_lea.sflag [#allocation19], %s869
        %s871 = sand.u32 %s324, 1
        %s872 = scalar_lea.vmem [#allocation20], %s871
        %p873 = pneg %p337
        %p874 = pneg %p334
        %s875 = sand.u32 %s44, 1
        %s876 = scalar_lea.sflag [#allocation22], %s875
        %s877 = sand.u32 %s350, 1
        %s878 = smul.addr %s877, 128
        %s879 = scalar_lea.vmem [#allocation21], %s878
        %p880 = pneg %p363
        %p881 = pneg %p360
        %s882 = sand.u32 %s44, 1
        %s883 = scalar_lea.sflag [#allocation22], %s882
        %s884 = sand.u32 %s376, 1
        %s885 = scalar_lea.vmem [#allocation23], %s884
        %p886 = pneg %p389
        %p887 = pneg %p386
        %p888 = pneg %p415
        %p889 = pneg %p412
        %s890 = smul.u32 2, %s48
        %s891 = smul.u32 2, %s48
        %p892 = scmp.eq.s32.totalorder %s49, 0
        // Predicated region
        $region125: #{tpu_custom_call.1} parent=71 // pred_check
          %p893 = pneg %p892
        $region126: #{tpu_custom_call.1} parent=71 // pred_check_branch
          %895 = sbr.rel (%p893) target = $region128
        $region127: #{tpu_custom_call.1} parent=71 // pred_region
          %v896 = vld [vmem:[#allocation3] sm:$0xff]
          %v897 = vld [vmem:[#allocation3 + $0x8] sm:$0xff]
          %v898 = vld [vmem:[#allocation3 + $0x10] sm:$0xff]
          %v899 = vld [vmem:[#allocation3 + $0x18] sm:$0xff]
          %900 = vst [vmem:[#allocation2] sm:$0xff] %v896
          %901 = vst [vmem:[#allocation2 + $0x8] sm:$0xff] %v897
          %902 = vst [vmem:[#allocation2 + $0x10] sm:$0xff] %v898
          %903 = vst [vmem:[#allocation2 + $0x18] sm:$0xff] %v899
        $region128: #{tpu_custom_call.1} parent=71 // pred_fallthru
          _
        %v904 = vld [vmem:[#allocation2] sm:$0xff]
        %v905 = vld [vmem:[#allocation2 + $0x8] sm:$0xff]
        %v906 = vld [vmem:[#allocation2 + $0x10] sm:$0xff]
        %v907 = vld [vmem:[#allocation2 + $0x18] sm:$0xff]
        %v908 = vlaneseq
        %v909 = vand.u32 %v908, 127
        %vm910 = vcmp.lt.s32.totalorder %v909, 32
        %v911 = vsel %vm910, 1, 0
        %v912 = vcvt.s32.f32 %v911
        %913 = vadd.xlane.f32.xlu0 %v904
        %v914 = vpop.xlane.xlu0 %913
        %915 = vadd.xlane.f32.xlu0 %v905
        %v916 = vpop.xlane.xlu0 %915
        %917 = vadd.xlane.f32.xlu0 %v906
        %v918 = vpop.xlane.xlu0 %917
        %919 = vadd.xlane.f32.xlu0 %v907
        %v920 = vpop.xlane.xlu0 %919
        %v921 = vadd.f32 %v914, %v916
        %v922 = vrot.slane %v921, 4
        %v923 = vadd.f32 %v921, %v922
        %v924 = vrot.slane %v923, 2
        %v925 = vadd.f32 %v923, %v924
        %v926 = vrot.slane %v925, 1
        %v927 = vadd.f32 %v925, %v926
        %v928 = vadd.f32 %v918, %v920
        %v929 = vrot.slane %v928, 4
        %v930 = vadd.f32 %v928, %v929
        %v931 = vrot.slane %v930, 2
        %v932 = vadd.f32 %v930, %v931
        %v933 = vrot.slane %v932, 1
        %v934 = vadd.f32 %v932, %v933
        %v935 = vmul.f32 %v927, 0.001953125
        %v936 = vmul.f32 %v934, 0.001953125
        %v937 = vsub.f32 %v904, %v935
        %v938 = vsub.f32 %v905, %v935
        %v939 = vsub.f32 %v906, %v936
        %v940 = vsub.f32 %v907, %v936
        %v941 = vmul.f32 %v937, %v912
        %v942 = vmul.f32 %v938, %v912
        %v943 = vmul.f32 %v939, %v912
        %v944 = vmul.f32 %v940, %v912
        %v945 = vmul.f32 %v941, %v941
        %v946 = vmul.f32 %v942, %v942
        %v947 = vmul.f32 %v943, %v943
        %v948 = vmul.f32 %v944, %v944
        %949 = vadd.xlane.f32.xlu0 %v945
        %v950 = vpop.xlane.xlu0 %949
        %951 = vadd.xlane.f32.xlu0 %v946
        %v952 = vpop.xlane.xlu0 %951
        %953 = vadd.xlane.f32.xlu0 %v947
        %v954 = vpop.xlane.xlu0 %953
        %955 = vadd.xlane.f32.xlu0 %v948
        %v956 = vpop.xlane.xlu0 %955
        %v957 = vadd.f32 %v950, %v952
        %v958 = vrot.slane %v957, 4
        %v959 = vadd.f32 %v957, %v958
        %v960 = vrot.slane %v959, 2
        %v961 = vadd.f32 %v959, %v960
        %v962 = vrot.slane %v961, 1
        %v963 = vadd.f32 %v961, %v962
        %v964 = vadd.f32 %v954, %v956
        %v965 = vrot.slane %v964, 4
        %v966 = vadd.f32 %v964, %v965
        %v967 = vrot.slane %v966, 2
        %v968 = vadd.f32 %v966, %v967
        %v969 = vrot.slane %v968, 1
        %v970 = vadd.f32 %v968, %v969
        %v971 = vmul.f32 %v963, 0.001953125
        %v972 = vmul.f32 %v970, 0.001953125
        %v973 = vadd.f32 %v971, 1e-05
        %v974 = vadd.f32 %v972, 1e-05
        %v975 = vrsqrt.pop %v973
        %v976 = vrsqrt.pop %v974
        %v977 = vmul.f32 %v941, %v975
        %v978 = vmul.f32 %v942, %v975
        %v979 = vmul.f32 %v943, %v976
        %v980 = vmul.f32 %v944, %v976
        %v981 = vld [vmem:[%s704] sm:$0xff]
        %v982 = vld [vmem:[%s704 + $0x8] sm:$0xff]
        %v983 = vmul.f32 %v977, %v981
        %v984 = vmul.f32 %v978, %v982
        %v985 = vmul.f32 %v979, %v981
        %v986 = vmul.f32 %v980, %v982
        %v987 = vld [vmem:[%s713] sm:$0xff]
        %v988 = vld [vmem:[%s713 + $0x8] sm:$0xff]
        %v989 = vadd.f32 %v983, %v987
        %v990 = vadd.f32 %v984, %v988
        %v991 = vadd.f32 %v985, %v987
        %v992 = vadd.f32 %v986, %v988
        %v993 = vld [vmem:[%s722] sm:$0xff]
        %v994 = vld [vmem:[%s722 + $0x8] sm:$0xff]
        %v995 = vld [vmem:[%s722 + $0x10] sm:$0xff]
        %v996 = vld [vmem:[%s722 + $0x18] sm:$0xff]
        %v997 = vld [vmem:[%s722 + $0x20] sm:$0xff]
        %v998 = vld [vmem:[%s722 + $0x28] sm:$0xff]
        %v999 = vld [vmem:[%s722 + $0x30] sm:$0xff]
        %v1000 = vld [vmem:[%s722 + $0x38] sm:$0xff]
        %v1001 = vld [vmem:[%s722 + $0x40] sm:$0xff]
        %v1002 = vld [vmem:[%s722 + $0x48] sm:$0xff]
        %v1003 = vld [vmem:[%s722 + $0x50] sm:$0xff]
        %v1004 = vld [vmem:[%s722 + $0x58] sm:$0xff]
        %v1005 = vld [vmem:[%s722 + $0x60] sm:$0xff]
        %v1006 = vld [vmem:[%s722 + $0x68] sm:$0xff]
        %v1007 = vld [vmem:[%s722 + $0x70] sm:$0xff]
        %v1008 = vld [vmem:[%s722 + $0x78] sm:$0xff]
        %v1009 = vld [vmem:[%s722 + $0x80] sm:$0xff]
        %v1010 = vld [vmem:[%s722 + $0x88] sm:$0xff]
        %v1011 = vld [vmem:[%s722 + $0x90] sm:$0xff]
        %v1012 = vld [vmem:[%s722 + $0x98] sm:$0xff]
        %v1013 = vld [vmem:[%s722 + $0xa0] sm:$0xff]
        %v1014 = vld [vmem:[%s722 + $0xa8] sm:$0xff]
        %v1015 = vld [vmem:[%s722 + $0xb0] sm:$0xff]
        %v1016 = vld [vmem:[%s722 + $0xb8] sm:$0xff]
        %v1017 = vld [vmem:[%s722 + $0xc0] sm:$0xff]
        %v1018 = vld [vmem:[%s722 + $0xc8] sm:$0xff]
        %v1019 = vld [vmem:[%s722 + $0xd0] sm:$0xff]
        %v1020 = vld [vmem:[%s722 + $0xd8] sm:$0xff]
        %v1021 = vld [vmem:[%s722 + $0xe0] sm:$0xff]
        %v1022 = vld [vmem:[%s722 + $0xe8] sm:$0xff]
        %v1023 = vld [vmem:[%s722 + $0xf0] sm:$0xff]
        %v1024 = vld [vmem:[%s722 + $0xf8] sm:$0xff]
        %v1025 = vld [vmem:[%s722 + $0x100] sm:$0xff]
        %v1026 = vld [vmem:[%s722 + $0x108] sm:$0xff]
        %v1027 = vld [vmem:[%s722 + $0x110] sm:$0xff]
        %v1028 = vld [vmem:[%s722 + $0x118] sm:$0xff]
        %v1029 = vld [vmem:[%s722 + $0x120] sm:$0xff]
        %v1030 = vld [vmem:[%s722 + $0x128] sm:$0xff]
        %v1031 = vld [vmem:[%s722 + $0x130] sm:$0xff]
        %v1032 = vld [vmem:[%s722 + $0x138] sm:$0xff]
        %v1033 = vld [vmem:[%s722 + $0x140] sm:$0xff]
        %v1034 = vld [vmem:[%s722 + $0x148] sm:$0xff]
        %v1035 = vld [vmem:[%s722 + $0x150] sm:$0xff]
        %v1036 = vld [vmem:[%s722 + $0x158] sm:$0xff]
        %v1037 = vld [vmem:[%s722 + $0x160] sm:$0xff]
        %v1038 = vld [vmem:[%s722 + $0x168] sm:$0xff]
        %v1039 = vld [vmem:[%s722 + $0x170] sm:$0xff]
        %v1040 = vld [vmem:[%s722 + $0x178] sm:$0xff]
        %v1041 = vld [vmem:[%s722 + $0x180] sm:$0xff]
        %v1042 = vld [vmem:[%s722 + $0x188] sm:$0xff]
        %v1043 = vld [vmem:[%s722 + $0x190] sm:$0xff]
        %v1044 = vld [vmem:[%s722 + $0x198] sm:$0xff]
        %v1045 = vld [vmem:[%s722 + $0x1a0] sm:$0xff]
        %v1046 = vld [vmem:[%s722 + $0x1a8] sm:$0xff]
        %v1047 = vld [vmem:[%s722 + $0x1b0] sm:$0xff]
        %v1048 = vld [vmem:[%s722 + $0x1b8] sm:$0xff]
        %v1049 = vld [vmem:[%s722 + $0x1c0] sm:$0xff]
        %v1050 = vld [vmem:[%s722 + $0x1c8] sm:$0xff]
        %v1051 = vld [vmem:[%s722 + $0x1d0] sm:$0xff]
        %v1052 = vld [vmem:[%s722 + $0x1d8] sm:$0xff]
        %v1053 = vld [vmem:[%s722 + $0x1e0] sm:$0xff]
        %v1054 = vld [vmem:[%s722 + $0x1e8] sm:$0xff]
        %v1055 = vld [vmem:[%s722 + $0x1f0] sm:$0xff]
        %v1056 = vld [vmem:[%s722 + $0x1f8] sm:$0xff]
        %v1057 = vld [vmem:[%s722 + $0x200] sm:$0xff]
        %v1058 = vld [vmem:[%s722 + $0x208] sm:$0xff]
        %v1059 = vld [vmem:[%s722 + $0x210] sm:$0xff]
        %v1060 = vld [vmem:[%s722 + $0x218] sm:$0xff]
        %v1061 = vld [vmem:[%s722 + $0x220] sm:$0xff]
        %v1062 = vld [vmem:[%s722 + $0x228] sm:$0xff]
        %v1063 = vld [vmem:[%s722 + $0x230] sm:$0xff]
        %v1064 = vld [vmem:[%s722 + $0x238] sm:$0xff]
        %v1065 = vld [vmem:[%s722 + $0x240] sm:$0xff]
        %v1066 = vld [vmem:[%s722 + $0x248] sm:$0xff]
        %v1067 = vld [vmem:[%s722 + $0x250] sm:$0xff]
        %v1068 = vld [vmem:[%s722 + $0x258] sm:$0xff]
        %v1069 = vld [vmem:[%s722 + $0x260] sm:$0xff]
        %v1070 = vld [vmem:[%s722 + $0x268] sm:$0xff]
        %v1071 = vld [vmem:[%s722 + $0x270] sm:$0xff]
        %v1072 = vld [vmem:[%s722 + $0x278] sm:$0xff]
        %v1073 = vld [vmem:[%s722 + $0x280] sm:$0xff]
        %v1074 = vld [vmem:[%s722 + $0x288] sm:$0xff]
        %v1075 = vld [vmem:[%s722 + $0x290] sm:$0xff]
        %v1076 = vld [vmem:[%s722 + $0x298] sm:$0xff]
        %v1077 = vld [vmem:[%s722 + $0x2a0] sm:$0xff]
        %v1078 = vld [vmem:[%s722 + $0x2a8] sm:$0xff]
        %v1079 = vld [vmem:[%s722 + $0x2b0] sm:$0xff]
        %v1080 = vld [vmem:[%s722 + $0x2b8] sm:$0xff]
        %v1081 = vld [vmem:[%s722 + $0x2c0] sm:$0xff]
        %v1082 = vld [vmem:[%s722 + $0x2c8] sm:$0xff]
        %v1083 = vld [vmem:[%s722 + $0x2d0] sm:$0xff]
        %v1084 = vld [vmem:[%s722 + $0x2d8] sm:$0xff]
        %v1085 = vld [vmem:[%s722 + $0x2e0] sm:$0xff]
        %v1086 = vld [vmem:[%s722 + $0x2e8] sm:$0xff]
        %v1087 = vld [vmem:[%s722 + $0x2f0] sm:$0xff]
        %v1088 = vld [vmem:[%s722 + $0x2f8] sm:$0xff]
        %v1089 = vld [vmem:[%s722 + $0x300] sm:$0xff]
        %v1090 = vld [vmem:[%s722 + $0x308] sm:$0xff]
        %v1091 = vld [vmem:[%s722 + $0x310] sm:$0xff]
        %v1092 = vld [vmem:[%s722 + $0x318] sm:$0xff]
        %v1093 = vld [vmem:[%s722 + $0x320] sm:$0xff]
        %v1094 = vld [vmem:[%s722 + $0x328] sm:$0xff]
        %v1095 = vld [vmem:[%s722 + $0x330] sm:$0xff]
        %v1096 = vld [vmem:[%s722 + $0x338] sm:$0xff]
        %v1097 = vld [vmem:[%s722 + $0x340] sm:$0xff]
        %v1098 = vld [vmem:[%s722 + $0x348] sm:$0xff]
        %v1099 = vld [vmem:[%s722 + $0x350] sm:$0xff]
        %v1100 = vld [vmem:[%s722 + $0x358] sm:$0xff]
        %v1101 = vld [vmem:[%s722 + $0x360] sm:$0xff]
        %v1102 = vld [vmem:[%s722 + $0x368] sm:$0xff]
        %v1103 = vld [vmem:[%s722 + $0x370] sm:$0xff]
        %v1104 = vld [vmem:[%s722 + $0x378] sm:$0xff]
        %v1105 = vld [vmem:[%s722 + $0x380] sm:$0xff]
        %v1106 = vld [vmem:[%s722 + $0x388] sm:$0xff]
        %v1107 = vld [vmem:[%s722 + $0x390] sm:$0xff]
        %v1108 = vld [vmem:[%s722 + $0x398] sm:$0xff]
        %v1109 = vld [vmem:[%s722 + $0x3a0] sm:$0xff]
        %v1110 = vld [vmem:[%s722 + $0x3a8] sm:$0xff]
        %v1111 = vld [vmem:[%s722 + $0x3b0] sm:$0xff]
        %v1112 = vld [vmem:[%s722 + $0x3b8] sm:$0xff]
        %v1113 = vld [vmem:[%s722 + $0x3c0] sm:$0xff]
        %v1114 = vld [vmem:[%s722 + $0x3c8] sm:$0xff]
        %v1115 = vld [vmem:[%s722 + $0x3d0] sm:$0xff]
        %v1116 = vld [vmem:[%s722 + $0x3d8] sm:$0xff]
        %v1117 = vld [vmem:[%s722 + $0x3e0] sm:$0xff]
        %v1118 = vld [vmem:[%s722 + $0x3e8] sm:$0xff]
        %v1119 = vld [vmem:[%s722 + $0x3f0] sm:$0xff]
        %v1120 = vld [vmem:[%s722 + $0x3f8] sm:$0xff]
        %v1121 = vld [vmem:[%s722 + $0x400] sm:$0xff]
        %v1122 = vld [vmem:[%s722 + $0x408] sm:$0xff]
        %v1123 = vld [vmem:[%s722 + $0x410] sm:$0xff]
        %v1124 = vld [vmem:[%s722 + $0x418] sm:$0xff]
        %v1125 = vld [vmem:[%s722 + $0x420] sm:$0xff]
        %v1126 = vld [vmem:[%s722 + $0x428] sm:$0xff]
        %v1127 = vld [vmem:[%s722 + $0x430] sm:$0xff]
        %v1128 = vld [vmem:[%s722 + $0x438] sm:$0xff]
        %v1129 = vld [vmem:[%s722 + $0x440] sm:$0xff]
        %v1130 = vld [vmem:[%s722 + $0x448] sm:$0xff]
        %v1131 = vld [vmem:[%s722 + $0x450] sm:$0xff]
        %v1132 = vld [vmem:[%s722 + $0x458] sm:$0xff]
        %v1133 = vld [vmem:[%s722 + $0x460] sm:$0xff]
        %v1134 = vld [vmem:[%s722 + $0x468] sm:$0xff]
        %v1135 = vld [vmem:[%s722 + $0x470] sm:$0xff]
        %v1136 = vld [vmem:[%s722 + $0x478] sm:$0xff]
        %v1137 = vld [vmem:[%s722 + $0x480] sm:$0xff]
        %v1138 = vld [vmem:[%s722 + $0x488] sm:$0xff]
        %v1139 = vld [vmem:[%s722 + $0x490] sm:$0xff]
        %v1140 = vld [vmem:[%s722 + $0x498] sm:$0xff]
        %v1141 = vld [vmem:[%s722 + $0x4a0] sm:$0xff]
        %v1142 = vld [vmem:[%s722 + $0x4a8] sm:$0xff]
        %v1143 = vld [vmem:[%s722 + $0x4b0] sm:$0xff]
        %v1144 = vld [vmem:[%s722 + $0x4b8] sm:$0xff]
        %v1145 = vld [vmem:[%s722 + $0x4c0] sm:$0xff]
        %v1146 = vld [vmem:[%s722 + $0x4c8] sm:$0xff]
        %v1147 = vld [vmem:[%s722 + $0x4d0] sm:$0xff]
        %v1148 = vld [vmem:[%s722 + $0x4d8] sm:$0xff]
        %v1149 = vld [vmem:[%s722 + $0x4e0] sm:$0xff]
        %v1150 = vld [vmem:[%s722 + $0x4e8] sm:$0xff]
        %v1151 = vld [vmem:[%s722 + $0x4f0] sm:$0xff]
        %v1152 = vld [vmem:[%s722 + $0x4f8] sm:$0xff]
        %v1153 = vld [vmem:[%s722 + $0x500] sm:$0xff]
        %v1154 = vld [vmem:[%s722 + $0x508] sm:$0xff]
        %v1155 = vld [vmem:[%s722 + $0x510] sm:$0xff]
        %v1156 = vld [vmem:[%s722 + $0x518] sm:$0xff]
        %v1157 = vld [vmem:[%s722 + $0x520] sm:$0xff]
        %v1158 = vld [vmem:[%s722 + $0x528] sm:$0xff]
        %v1159 = vld [vmem:[%s722 + $0x530] sm:$0xff]
        %v1160 = vld [vmem:[%s722 + $0x538] sm:$0xff]
        %v1161 = vld [vmem:[%s722 + $0x540] sm:$0xff]
        %v1162 = vld [vmem:[%s722 + $0x548] sm:$0xff]
        %v1163 = vld [vmem:[%s722 + $0x550] sm:$0xff]
        %v1164 = vld [vmem:[%s722 + $0x558] sm:$0xff]
        %v1165 = vld [vmem:[%s722 + $0x560] sm:$0xff]
        %v1166 = vld [vmem:[%s722 + $0x568] sm:$0xff]
        %v1167 = vld [vmem:[%s722 + $0x570] sm:$0xff]
        %v1168 = vld [vmem:[%s722 + $0x578] sm:$0xff]
        %v1169 = vld [vmem:[%s722 + $0x580] sm:$0xff]
        %v1170 = vld [vmem:[%s722 + $0x588] sm:$0xff]
        %v1171 = vld [vmem:[%s722 + $0x590] sm:$0xff]
        %v1172 = vld [vmem:[%s722 + $0x598] sm:$0xff]
        %v1173 = vld [vmem:[%s722 + $0x5a0] sm:$0xff]
        %v1174 = vld [vmem:[%s722 + $0x5a8] sm:$0xff]
        %v1175 = vld [vmem:[%s722 + $0x5b0] sm:$0xff]
        %v1176 = vld [vmem:[%s722 + $0x5b8] sm:$0xff]
        %v1177 = vld [vmem:[%s722 + $0x5c0] sm:$0xff]
        %v1178 = vld [vmem:[%s722 + $0x5c8] sm:$0xff]
        %v1179 = vld [vmem:[%s722 + $0x5d0] sm:$0xff]
        %v1180 = vld [vmem:[%s722 + $0x5d8] sm:$0xff]
        %v1181 = vld [vmem:[%s722 + $0x5e0] sm:$0xff]
        %v1182 = vld [vmem:[%s722 + $0x5e8] sm:$0xff]
        %v1183 = vld [vmem:[%s722 + $0x5f0] sm:$0xff]
        %v1184 = vld [vmem:[%s722 + $0x5f8] sm:$0xff]
        %v1185 = vld [vmem:[%s731] sm:$0xff]
        %v1186 = vld [vmem:[%s731 + $0x8] sm:$0xf]
        %v1189 = vlaneseq
        %v1190 = vshrl.u32 %v1189, 7
        %v1191 = vsub.s32 0, %v1190
        %v1192 = vrot.slane %v1185, %v1191
        %v1193 = vlaneseq
        %v1194 = vshrl.u32 %v1193, 7
        %v1195 = vsub.s32 1, %v1194
        %v1196 = vrot.slane %v1185, %v1195
        %v1197 = vlaneseq
        %v1198 = vshrl.u32 %v1197, 7
        %v1199 = vsub.s32 2, %v1198
        %v1200 = vrot.slane %v1185, %v1199
        %v1201 = vlaneseq
        %v1202 = vshrl.u32 %v1201, 7
        %v1203 = vsub.s32 3, %v1202
        %v1204 = vrot.slane %v1185, %v1203
        %v1205 = vlaneseq
        %v1206 = vshrl.u32 %v1205, 7
        %v1207 = vsub.s32 4, %v1206
        %v1208 = vrot.slane %v1185, %v1207
        %v1209 = vlaneseq
        %v1210 = vshrl.u32 %v1209, 7
        %v1211 = vsub.s32 5, %v1210
        %v1212 = vrot.slane %v1185, %v1211
        %v1213 = vlaneseq
        %v1214 = vshrl.u32 %v1213, 7
        %v1215 = vsub.s32 6, %v1214
        %v1216 = vrot.slane %v1185, %v1215
        %v1217 = vlaneseq
        %v1218 = vshrl.u32 %v1217, 7
        %v1219 = vsub.s32 7, %v1218
        %v1220 = vrot.slane %v1185, %v1219
        %v1221 = vlaneseq
        %v1222 = vshrl.u32 %v1221, 7
        %v1223 = vsub.s32 0, %v1222
        %v1224 = vrot.slane %v1186, %v1223
        %v1225 = vlaneseq
        %v1226 = vshrl.u32 %v1225, 7
        %v1227 = vsub.s32 1, %v1226
        %v1228 = vrot.slane %v1186, %v1227
        %v1229 = vlaneseq
        %v1230 = vshrl.u32 %v1229, 7
        %v1231 = vsub.s32 2, %v1230
        %v1232 = vrot.slane %v1186, %v1231
        %v1233 = vlaneseq
        %v1234 = vshrl.u32 %v1233, 7
        %v1235 = vsub.s32 3, %v1234
        %v1236 = vrot.slane %v1186, %v1235
        %1249 = vmatprep.subr.mxu0 %v994
        %1250 = vmatpush1.msra.mxu0 %v993
        %1251 = vmatprep.subr.mxu0 %v1006
        %1252 = vmatpush1.msra.mxu0 %v1005
        %1253 = vmatprep.subr.mxu0 %v1018
        %1254 = vmatpush1.msra.mxu0 %v1017
        %1255 = vmatprep.subr.mxu0 %v1030
        %1256 = vmatpush1.msra.mxu0 %v1029
        %1257 = vmatprep.subr.mxu0 %v1042
        %1258 = vmatpush1.msra.mxu0 %v1041
        %1259 = vmatprep.subr.mxu0 %v1054
        %1260 = vmatpush1.msra.mxu0 %v1053
        %1261 = vmatprep.subr.mxu0 %v1066
        %1262 = vmatpush1.msra.mxu0 %v1065
        %1263 = vmatprep.subr.mxu0 %v1078
        %1264 = vmatpush1.msra.mxu0 %v1077
        %1265 = vmatprep.subr.mxu0 %v1090
        %1266 = vmatpush1.msra.mxu0 %v1089
        %1267 = vmatprep.subr.mxu0 %v1102
        %1268 = vmatpush1.msra.mxu0 %v1101
        %1269 = vmatprep.subr.mxu0 %v1114
        %1270 = vmatpush1.msra.mxu0 %v1113
        %1271 = vmatprep.subr.mxu0 %v1126
        %1272 = vmatpush1.msra.mxu0 %v1125
        %1273 = vmatprep.subr.mxu0 %v1138
        %1274 = vmatpush1.msra.mxu0 %v1137
        %1275 = vmatprep.subr.mxu0 %v1150
        %1276 = vmatpush1.msra.mxu0 %v1149
        %1277 = vmatprep.subr.mxu0 %v1162
        %1278 = vmatpush1.msra.mxu0 %v1161
        %1279 = vmatprep.subr.mxu0 %v1174
        %1280 = vmatpush1.msra.mxu0 %v1173
        %1281 = vmatprep.subr.mxu0 0.0
        %1282 = vmatpush1.msra.mxu0 0.0
        %1283 = vmatprep.subr.mxu0 0.0
        %1284 = vmatpush1.msra.mxu0 0.0
        %1285 = vmatprep.subr.mxu0 0.0
        %1286 = vmatpush1.msra.mxu0 0.0
        %1287 = vmatprep.subr.mxu0 0.0
        %1288 = vmatpush1.msra.mxu0 0.0
        %1289 = vmatprep.subr.mxu0 0.0
        %1290 = vmatpush1.msra.mxu0 0.0
        %1291 = vmatprep.subr.mxu0 0.0
        %1292 = vmatpush1.msra.mxu0 0.0
        %1293 = vmatprep.subr.mxu0 0.0
        %1294 = vmatpush1.msra.mxu0 0.0
        %1295 = vmatprep.subr.mxu0 0.0
        %1296 = vmatpush1.msra.mxu0 0.0
        %1297 = vmatprep.subr.mxu0 0.0
        %1298 = vmatpush1.msra.mxu0 0.0
        %1299 = vmatprep.subr.mxu0 0.0
        %1300 = vmatpush1.msra.mxu0 0.0
        %1301 = vmatprep.subr.mxu0 0.0
        %1302 = vmatpush1.msra.mxu0 0.0
        %1303 = vmatprep.subr.mxu0 0.0
        %1304 = vmatpush1.msra.mxu0 0.0
        %1305 = vmatprep.subr.mxu0 0.0
        %1306 = vmatpush1.msra.mxu0 0.0
        %1307 = vmatprep.subr.mxu0 0.0
        %1308 = vmatpush1.msra.mxu0 0.0
        %1309 = vmatprep.subr.mxu0 0.0
        %1310 = vmatpush1.msra.mxu0 0.0
        %1311 = vmatprep.subr.mxu0 0.0
        %1312 = vmatpush1.msra.mxu0 0.0
        %1313 = vmatprep.mubr.f32.mxu0 0.0
        %1314 = vmatmul.mubr.f32.gmra.mrb[0].mxu0 %v989
        %v1315 = vpop.f32.mrb[0].mxu0
        %v1316 = vadd.f32 %v1192, %v1315
        %v1317 = vpop.f32.mrb[0].mxu0
        %v1318 = vadd.f32 %v1196, %v1317
        %1319 = vmatprep.mubr.f32.mxu0 0.0
        %1320 = vmatmul.mubr.f32.gmra.mrb[0].mxu0 %v990
        %v1321 = vpop.f32.mrb[0].mxu0
        %v1322 = vadd.f32 %v1192, %v1321
        %v1323 = vpop.f32.mrb[0].mxu0
        %v1324 = vadd.f32 %v1196, %v1323
        %1325 = vmatprep.mubr.f32.mxu0 0.0
        %1326 = vmatmul.mubr.f32.gmra.mrb[0].mxu0 %v991
        %v1327 = vpop.f32.mrb[0].mxu0
        %v1328 = vadd.f32 %v1192, %v1327
        %v1329 = vpop.f32.mrb[0].mxu0
        %v1330 = vadd.f32 %v1196, %v1329
        %1331 = vmatprep.mubr.f32.mxu0 0.0
        %1332 = vmatmul.mubr.f32.gmra.mrb[0].mxu0 %v992
        %v1333 = vpop.f32.mrb[0].mxu0
        %v1334 = vadd.f32 %v1192, %v1333
        %v1335 = vpop.f32.mrb[0].mxu0
        %v1336 = vadd.f32 %v1196, %v1335
        %1337 = vdwg.mxu0
        %1338 = vmatprep.subr.mxu0 %v996
        %1339 = vmatpush1.msra.mxu0 %v995
        %1340 = vmatprep.subr.mxu0 %v1008
        %1341 = vmatpush1.msra.mxu0 %v1007
        %1342 = vmatprep.subr.mxu0 %v1020
        %1343 = vmatpush1.msra.mxu0 %v1019
        %1344 = vmatprep.subr.mxu0 %v1032
        %1345 = vmatpush1.msra.mxu0 %v1031
        %1346 = vmatprep.subr.mxu0 %v1044
        %1347 = vmatpush1.msra.mxu0 %v1043
        %1348 = vmatprep.subr.mxu0 %v1056
        %1349 = vmatpush1.msra.mxu0 %v1055
        %1350 = vmatprep.subr.mxu0 %v1068
        %1351 = vmatpush1.msra.mxu0 %v1067
        %1352 = vmatprep.subr.mxu0 %v1080
        %1353 = vmatpush1.msra.mxu0 %v1079
        %1354 = vmatprep.subr.mxu0 %v1092
        %1355 = vmatpush1.msra.mxu0 %v1091
        %1356 = vmatprep.subr.mxu0 %v1104
        %1357 = vmatpush1.msra.mxu0 %v1103
        %1358 = vmatprep.subr.mxu0 %v1116
        %1359 = vmatpush1.msra.mxu0 %v1115
        %1360 = vmatprep.subr.mxu0 %v1128
        %1361 = vmatpush1.msra.mxu0 %v1127
        %1362 = vmatprep.subr.mxu0 %v1140
        %1363 = vmatpush1.msra.mxu0 %v1139
        %1364 = vmatprep.subr.mxu0 %v1152
        %1365 = vmatpush1.msra.mxu0 %v1151
        %1366 = vmatprep.subr.mxu0 %v1164
        %1367 = vmatpush1.msra.mxu0 %v1163
        %1368 = vmatprep.subr.mxu0 %v1176
        %1369 = vmatpush1.msra.mxu0 %v1175
        %1370 = vmatprep.subr.mxu0 0.0
        %1371 = vmatpush1.msra.mxu0 0.0
        %1372 = vmatprep.subr.mxu0 0.0
        %1373 = vmatpush1.msra.mxu0 0.0
        %1374 = vmatprep.subr.mxu0 0.0
        %1375 = vmatpush1.msra.mxu0 0.0
        %1376 = vmatprep.subr.mxu0 0.0
        %1377 = vmatpush1.msra.mxu0 0.0
        %1378 = vmatprep.subr.mxu0 0.0
        %1379 = vmatpush1.msra.mxu0 0.0
        %1380 = vmatprep.subr.mxu0 0.0
        %1381 = vmatpush1.msra.mxu0 0.0
        %1382 = vmatprep.subr.mxu0 0.0
        %1383 = vmatpush1.msra.mxu0 0.0
        %1384 = vmatprep.subr.mxu0 0.0
        %1385 = vmatpush1.msra.mxu0 0.0
        %1386 = vmatprep.subr.mxu0 0.0
        %1387 = vmatpush1.msra.mxu0 0.0
        %1388 = vmatprep.subr.mxu0 0.0
        %1389 = vmatpush1.msra.mxu0 0.0
        %1390 = vmatprep.subr.mxu0 0.0
        %1391 = vmatpush1.msra.mxu0 0.0
        %1392 = vmatprep.subr.mxu0 0.0
        %1393 = vmatpush1.msra.mxu0 0.0
        %1394 = vmatprep.subr.mxu0 0.0
        %1395 = vmatpush1.msra.mxu0 0.0
        %1396 = vmatprep.subr.mxu0 0.0
        %1397 = vmatpush1.msra.mxu0 0.0
        %1398 = vmatprep.subr.mxu0 0.0
        %1399 = vmatpush1.msra.mxu0 0.0
        %1400 = vmatprep.subr.mxu0 0.0
        %1401 = vmatpush1.msra.mxu0 0.0
        %1402 = vmatprep.mubr.f32.mxu0 0.0
        %1403 = vmatmul.mubr.f32.gmra.mrb[0].mxu0 %v989
        %v1404 = vpop.f32.mrb[0].mxu0
        %v1405 = vadd.f32 %v1200, %v1404
        %v1406 = vpop.f32.mrb[0].mxu0
        %v1407 = vadd.f32 %v1204, %v1406
        %1408 = vmatprep.mubr.f32.mxu0 0.0
        %1409 = vmatmul.mubr.f32.gmra.mrb[0].mxu0 %v990
        %v1410 = vpop.f32.mrb[0].mxu0
        %v1411 = vadd.f32 %v1200, %v1410
        %v1412 = vpop.f32.mrb[0].mxu0
        %v1413 = vadd.f32 %v1204, %v1412
        %1414 = vmatprep.mubr.f32.mxu0 0.0
        %1415 = vmatmul.mubr.f32.gmra.mrb[0].mxu0 %v991
        %v1416 = vpop.f32.mrb[0].mxu0
        %v1417 = vadd.f32 %v1200, %v1416
        %v1418 = vpop.f32.mrb[0].mxu0
        %v1419 = vadd.f32 %v1204, %v1418
        %1420 = vmatprep.mubr.f32.mxu0 0.0
        %1421 = vmatmul.mubr.f32.gmra.mrb[0].mxu0 %v992
        %v1422 = vpop.f32.mrb[0].mxu0
        %v1423 = vadd.f32 %v1200, %v1422
        %v1424 = vpop.f32.mrb[0].mxu0
        %v1425 = vadd.f32 %v1204, %v1424
        %1426 = vdwg.mxu0
        %1427 = vmatprep.subr.mxu0 %v998
        %1428 = vmatpush1.msra.mxu0 %v997
        %1429 = vmatprep.subr.mxu0 %v1010
        %1430 = vmatpush1.msra.mxu0 %v1009
        %1431 = vmatprep.subr.mxu0 %v1022
        %1432 = vmatpush1.msra.mxu0 %v1021
        %1433 = vmatprep.subr.mxu0 %v1034
        %1434 = vmatpush1.msra.mxu0 %v1033
        %1435 = vmatprep.subr.mxu0 %v1046
        %1436 = vmatpush1.msra.mxu0 %v1045
        %1437 = vmatprep.subr.mxu0 %v1058
        %1438 = vmatpush1.msra.mxu0 %v1057
        %1439 = vmatprep.subr.mxu0 %v1070
        %1440 = vmatpush1.msra.mxu0 %v1069
        %1441 = vmatprep.subr.mxu0 %v1082
        %1442 = vmatpush1.msra.mxu0 %v1081
        %1443 = vmatprep.subr.mxu0 %v1094
        %1444 = vmatpush1.msra.mxu0 %v1093
        %1445 = vmatprep.subr.mxu0 %v1106
        %1446 = vmatpush1.msra.mxu0 %v1105
        %1447 = vmatprep.subr.mxu0 %v1118
        %1448 = vmatpush1.msra.mxu0 %v1117
        %1449 = vmatprep.subr.mxu0 %v1130
        %1450 = vmatpush1.msra.mxu0 %v1129
        %1451 = vmatprep.subr.mxu0 %v1142
        %1452 = vmatpush1.msra.mxu0 %v1141
        %1453 = vmatprep.subr.mxu0 %v1154
        %1454 = vmatpush1.msra.mxu0 %v1153
        %1455 = vmatprep.subr.mxu0 %v1166
        %1456 = vmatpush1.msra.mxu0 %v1165
        %1457 = vmatprep.subr.mxu0 %v1178
        %1458 = vmatpush1.msra.mxu0 %v1177
        %1459 = vmatprep.subr.mxu0 0.0
        %1460 = vmatpush1.msra.mxu0 0.0
        %1461 = vmatprep.subr.mxu0 0.0
        %1462 = vmatpush1.msra.mxu0 0.0
        %1463 = vmatprep.subr.mxu0 0.0
        %1464 = vmatpush1.msra.mxu0 0.0
        %1465 = vmatprep.subr.mxu0 0.0
        %1466 = vmatpush1.msra.mxu0 0.0
        %1467 = vmatprep.subr.mxu0 0.0
        %1468 = vmatpush1.msra.mxu0 0.0
        %1469 = vmatprep.subr.mxu0 0.0
        %1470 = vmatpush1.msra.mxu0 0.0
        %1471 = vmatprep.subr.mxu0 0.0
        %1472 = vmatpush1.msra.mxu0 0.0
        %1473 = vmatprep.subr.mxu0 0.0
        %1474 = vmatpush1.msra.mxu0 0.0
        %1475 = vmatprep.subr.mxu0 0.0
        %1476 = vmatpush1.msra.mxu0 0.0
        %1477 = vmatprep.subr.mxu0 0.0
        %1478 = vmatpush1.msra.mxu0 0.0
        %1479 = vmatprep.subr.mxu0 0.0
        %1480 = vmatpush1.msra.mxu0 0.0
        %1481 = vmatprep.subr.mxu0 0.0
        %1482 = vmatpush1.msra.mxu0 0.0
        %1483 = vmatprep.subr.mxu0 0.0
        %1484 = vmatpush1.msra.mxu0 0.0
        %1485 = vmatprep.subr.mxu0 0.0
        %1486 = vmatpush1.msra.mxu0 0.0
        %1487 = vmatprep.subr.mxu0 0.0
        %1488 = vmatpush1.msra.mxu0 0.0
        %1489 = vmatprep.subr.mxu0 0.0
        %1490 = vmatpush1.msra.mxu0 0.0
        %1491 = vmatprep.mubr.f32.mxu0 0.0
        %1492 = vmatmul.mubr.f32.gmra.mrb[0].mxu0 %v989
        %v1493 = vpop.f32.mrb[0].mxu0
        %v1494 = vadd.f32 %v1208, %v1493
        %v1495 = vpop.f32.mrb[0].mxu0
        %v1496 = vadd.f32 %v1212, %v1495
        %1497 = vmatprep.mubr.f32.mxu0 0.0
        %1498 = vmatmul.mubr.f32.gmra.mrb[0].mxu0 %v990
        %v1499 = vpop.f32.mrb[0].mxu0
        %v1500 = vadd.f32 %v1208, %v1499
        %v1501 = vpop.f32.mrb[0].mxu0
        %v1502 = vadd.f32 %v1212, %v1501
        %1503 = vmatprep.mubr.f32.mxu0 0.0
        %1504 = vmatmul.mubr.f32.gmra.mrb[0].mxu0 %v991
        %v1505 = vpop.f32.mrb[0].mxu0
        %v1506 = vadd.f32 %v1208, %v1505
        %v1507 = vpop.f32.mrb[0].mxu0
        %v1508 = vadd.f32 %v1212, %v1507
        %1509 = vmatprep.mubr.f32.mxu0 0.0
        %1510 = vmatmul.mubr.f32.gmra.mrb[0].mxu0 %v992
        %v1511 = vpop.f32.mrb[0].mxu0
        %v1512 = vadd.f32 %v1208, %v1511
        %v1513 = vpop.f32.mrb[0].mxu0
        %v1514 = vadd.f32 %v1212, %v1513
        %1515 = vdwg.mxu0
        %1516 = vmatprep.subr.mxu0 %v1000
        %1517 = vmatpush1.msra.mxu0 %v999
        %1518 = vmatprep.subr.mxu0 %v1012
        %1519 = vmatpush1.msra.mxu0 %v1011
        %1520 = vmatprep.subr.mxu0 %v1024
        %1521 = vmatpush1.msra.mxu0 %v1023
        %1522 = vmatprep.subr.mxu0 %v1036
        %1523 = vmatpush1.msra.mxu0 %v1035
        %1524 = vmatprep.subr.mxu0 %v1048
        %1525 = vmatpush1.msra.mxu0 %v1047
        %1526 = vmatprep.subr.mxu0 %v1060
        %1527 = vmatpush1.msra.mxu0 %v1059
        %1528 = vmatprep.subr.mxu0 %v1072
        %1529 = vmatpush1.msra.mxu0 %v1071
        %1530 = vmatprep.subr.mxu0 %v1084
        %1531 = vmatpush1.msra.mxu0 %v1083
        %1532 = vmatprep.subr.mxu0 %v1096
        %1533 = vmatpush1.msra.mxu0 %v1095
        %1534 = vmatprep.subr.mxu0 %v1108
        %1535 = vmatpush1.msra.mxu0 %v1107
        %1536 = vmatprep.subr.mxu0 %v1120
        %1537 = vmatpush1.msra.mxu0 %v1119
        %1538 = vmatprep.subr.mxu0 %v1132
        %1539 = vmatpush1.msra.mxu0 %v1131
        %1540 = vmatprep.subr.mxu0 %v1144
        %1541 = vmatpush1.msra.mxu0 %v1143
        %1542 = vmatprep.subr.mxu0 %v1156
        %1543 = vmatpush1.msra.mxu0 %v1155
        %1544 = vmatprep.subr.mxu0 %v1168
        %1545 = vmatpush1.msra.mxu0 %v1167
        %1546 = vmatprep.subr.mxu0 %v1180
        %1547 = vmatpush1.msra.mxu0 %v1179
        %1548 = vmatprep.subr.mxu0 0.0
        %1549 = vmatpush1.msra.mxu0 0.0
        %1550 = vmatprep.subr.mxu0 0.0
        %1551 = vmatpush1.msra.mxu0 0.0
        %1552 = vmatprep.subr.mxu0 0.0
        %1553 = vmatpush1.msra.mxu0 0.0
        %1554 = vmatprep.subr.mxu0 0.0
        %1555 = vmatpush1.msra.mxu0 0.0
        %1556 = vmatprep.subr.mxu0 0.0
        %1557 = vmatpush1.msra.mxu0 0.0
        %1558 = vmatprep.subr.mxu0 0.0
        %1559 = vmatpush1.msra.mxu0 0.0
        %1560 = vmatprep.subr.mxu0 0.0
        %1561 = vmatpush1.msra.mxu0 0.0
        %1562 = vmatprep.subr.mxu0 0.0
        %1563 = vmatpush1.msra.mxu0 0.0
        %1564 = vmatprep.subr.mxu0 0.0
        %1565 = vmatpush1.msra.mxu0 0.0
        %1566 = vmatprep.subr.mxu0 0.0
        %1567 = vmatpush1.msra.mxu0 0.0
        %1568 = vmatprep.subr.mxu0 0.0
        %1569 = vmatpush1.msra.mxu0 0.0
        %1570 = vmatprep.subr.mxu0 0.0
        %1571 = vmatpush1.msra.mxu0 0.0
        %1572 = vmatprep.subr.mxu0 0.0
        %1573 = vmatpush1.msra.mxu0 0.0
        %1574 = vmatprep.subr.mxu0 0.0
        %1575 = vmatpush1.msra.mxu0 0.0
        %1576 = vmatprep.subr.mxu0 0.0
        %1577 = vmatpush1.msra.mxu0 0.0
        %1578 = vmatprep.subr.mxu0 0.0
        %1579 = vmatpush1.msra.mxu0 0.0
        %1580 = vmatprep.mubr.f32.mxu0 0.0
        %1581 = vmatmul.mubr.f32.gmra.mrb[0].mxu0 %v989
        %v1582 = vpop.f32.mrb[0].mxu0
        %v1583 = vadd.f32 %v1216, %v1582
        %v1584 = vpop.f32.mrb[0].mxu0
        %v1585 = vadd.f32 %v1220, %v1584
        %1586 = vmatprep.mubr.f32.mxu0 0.0
        %1587 = vmatmul.mubr.f32.gmra.mrb[0].mxu0 %v990
        %v1588 = vpop.f32.mrb[0].mxu0
        %v1589 = vadd.f32 %v1216, %v1588
        %v1590 = vpop.f32.mrb[0].mxu0
        %v1591 = vadd.f32 %v1220, %v1590
        %1592 = vmatprep.mubr.f32.mxu0 0.0
        %1593 = vmatmul.mubr.f32.gmra.mrb[0].mxu0 %v991
        %v1594 = vpop.f32.mrb[0].mxu0
        %v1595 = vadd.f32 %v1216, %v1594
        %v1596 = vpop.f32.mrb[0].mxu0
        %v1597 = vadd.f32 %v1220, %v1596
        %1598 = vmatprep.mubr.f32.mxu0 0.0
        %1599 = vmatmul.mubr.f32.gmra.mrb[0].mxu0 %v992
        %v1600 = vpop.f32.mrb[0].mxu0
        %v1601 = vadd.f32 %v1216, %v1600
        %v1602 = vpop.f32.mrb[0].mxu0
        %v1603 = vadd.f32 %v1220, %v1602
        %1604 = vdwg.mxu0
        %1605 = vmatprep.subr.mxu0 %v1002
        %1606 = vmatpush1.msra.mxu0 %v1001
        %1607 = vmatprep.subr.mxu0 %v1014
        %1608 = vmatpush1.msra.mxu0 %v1013
        %1609 = vmatprep.subr.mxu0 %v1026
        %1610 = vmatpush1.msra.mxu0 %v1025
        %1611 = vmatprep.subr.mxu0 %v1038
        %1612 = vmatpush1.msra.mxu0 %v1037
        %1613 = vmatprep.subr.mxu0 %v1050
        %1614 = vmatpush1.msra.mxu0 %v1049
        %1615 = vmatprep.subr.mxu0 %v1062
        %1616 = vmatpush1.msra.mxu0 %v1061
        %1617 = vmatprep.subr.mxu0 %v1074
        %1618 = vmatpush1.msra.mxu0 %v1073
        %1619 = vmatprep.subr.mxu0 %v1086
        %1620 = vmatpush1.msra.mxu0 %v1085
        %1621 = vmatprep.subr.mxu0 %v1098
        %1622 = vmatpush1.msra.mxu0 %v1097
        %1623 = vmatprep.subr.mxu0 %v1110
        %1624 = vmatpush1.msra.mxu0 %v1109
        %1625 = vmatprep.subr.mxu0 %v1122
        %1626 = vmatpush1.msra.mxu0 %v1121
        %1627 = vmatprep.subr.mxu0 %v1134
        %1628 = vmatpush1.msra.mxu0 %v1133
        %1629 = vmatprep.subr.mxu0 %v1146
        %1630 = vmatpush1.msra.mxu0 %v1145
        %1631 = vmatprep.subr.mxu0 %v1158
        %1632 = vmatpush1.msra.mxu0 %v1157
        %1633 = vmatprep.subr.mxu0 %v1170
        %1634 = vmatpush1.msra.mxu0 %v1169
        %1635 = vmatprep.subr.mxu0 %v1182
        %1636 = vmatpush1.msra.mxu0 %v1181
        %1637 = vmatprep.subr.mxu0 0.0
        %1638 = vmatpush1.msra.mxu0 0.0
        %1639 = vmatprep.subr.mxu0 0.0
        %1640 = vmatpush1.msra.mxu0 0.0
        %1641 = vmatprep.subr.mxu0 0.0
        %1642 = vmatpush1.msra.mxu0 0.0
        %1643 = vmatprep.subr.mxu0 0.0
        %1644 = vmatpush1.msra.mxu0 0.0
        %1645 = vmatprep.subr.mxu0 0.0
        %1646 = vmatpush1.msra.mxu0 0.0
        %1647 = vmatprep.subr.mxu0 0.0
        %1648 = vmatpush1.msra.mxu0 0.0
        %1649 = vmatprep.subr.mxu0 0.0
        %1650 = vmatpush1.msra.mxu0 0.0
        %1651 = vmatprep.subr.mxu0 0.0
        %1652 = vmatpush1.msra.mxu0 0.0
        %1653 = vmatprep.subr.mxu0 0.0
        %1654 = vmatpush1.msra.mxu0 0.0
        %1655 = vmatprep.subr.mxu0 0.0
        %1656 = vmatpush1.msra.mxu0 0.0
        %1657 = vmatprep.subr.mxu0 0.0
        %1658 = vmatpush1.msra.mxu0 0.0
        %1659 = vmatprep.subr.mxu0 0.0
        %1660 = vmatpush1.msra.mxu0 0.0
        %1661 = vmatprep.subr.mxu0 0.0
        %1662 = vmatpush1.msra.mxu0 0.0
        %1663 = vmatprep.subr.mxu0 0.0
        %1664 = vmatpush1.msra.mxu0 0.0
        %1665 = vmatprep.subr.mxu0 0.0
        %1666 = vmatpush1.msra.mxu0 0.0
        %1667 = vmatprep.subr.mxu0 0.0
        %1668 = vmatpush1.msra.mxu0 0.0
        %1669 = vmatprep.mubr.f32.mxu0 0.0
        %1670 = vmatmul.mubr.f32.gmra.mrb[0].mxu0 %v989
        %v1671 = vpop.f32.mrb[0].mxu0
        %v1672 = vadd.f32 %v1224, %v1671
        %v1673 = vpop.f32.mrb[0].mxu0
        %v1674 = vadd.f32 %v1228, %v1673
        %1675 = vmatprep.mubr.f32.mxu0 0.0
        %1676 = vmatmul.mubr.f32.gmra.mrb[0].mxu0 %v990
        %v1677 = vpop.f32.mrb[0].mxu0
        %v1678 = vadd.f32 %v1224, %v1677
        %v1679 = vpop.f32.mrb[0].mxu0
        %v1680 = vadd.f32 %v1228, %v1679
        %1681 = vmatprep.mubr.f32.mxu0 0.0
        %1682 = vmatmul.mubr.f32.gmra.mrb[0].mxu0 %v991
        %v1683 = vpop.f32.mrb[0].mxu0
        %v1684 = vadd.f32 %v1224, %v1683
        %v1685 = vpop.f32.mrb[0].mxu0
        %v1686 = vadd.f32 %v1228, %v1685
        %1687 = vmatprep.mubr.f32.mxu0 0.0
        %1688 = vmatmul.mubr.f32.gmra.mrb[0].mxu0 %v992
        %v1689 = vpop.f32.mrb[0].mxu0
        %v1690 = vadd.f32 %v1224, %v1689
        %v1691 = vpop.f32.mrb[0].mxu0
        %v1692 = vadd.f32 %v1228, %v1691
        %1693 = vdwg.mxu0
        %1694 = vmatprep.subr.mxu0 %v1004
        %1695 = vmatpush1.msra.mxu0 %v1003
        %1696 = vmatprep.subr.mxu0 %v1016
        %1697 = vmatpush1.msra.mxu0 %v1015
        %1698 = vmatprep.subr.mxu0 %v1028
        %1699 = vmatpush1.msra.mxu0 %v1027
        %1700 = vmatprep.subr.mxu0 %v1040
        %1701 = vmatpush1.msra.mxu0 %v1039
        %1702 = vmatprep.subr.mxu0 %v1052
        %1703 = vmatpush1.msra.mxu0 %v1051
        %1704 = vmatprep.subr.mxu0 %v1064
        %1705 = vmatpush1.msra.mxu0 %v1063
        %1706 = vmatprep.subr.mxu0 %v1076
        %1707 = vmatpush1.msra.mxu0 %v1075
        %1708 = vmatprep.subr.mxu0 %v1088
        %1709 = vmatpush1.msra.mxu0 %v1087
        %1710 = vmatprep.subr.mxu0 %v1100
        %1711 = vmatpush1.msra.mxu0 %v1099
        %1712 = vmatprep.subr.mxu0 %v1112
        %1713 = vmatpush1.msra.mxu0 %v1111
        %1714 = vmatprep.subr.mxu0 %v1124
        %1715 = vmatpush1.msra.mxu0 %v1123
        %1716 = vmatprep.subr.mxu0 %v1136
        %1717 = vmatpush1.msra.mxu0 %v1135
        %1718 = vmatprep.subr.mxu0 %v1148
        %1719 = vmatpush1.msra.mxu0 %v1147
        %1720 = vmatprep.subr.mxu0 %v1160
        %1721 = vmatpush1.msra.mxu0 %v1159
        %1722 = vmatprep.subr.mxu0 %v1172
        %1723 = vmatpush1.msra.mxu0 %v1171
        %1724 = vmatprep.subr.mxu0 %v1184
        %1725 = vmatpush1.msra.mxu0 %v1183
        %1726 = vmatprep.subr.mxu0 0.0
        %1727 = vmatpush1.msra.mxu0 0.0
        %1728 = vmatprep.subr.mxu0 0.0
        %1729 = vmatpush1.msra.mxu0 0.0
        %1730 = vmatprep.subr.mxu0 0.0
        %1731 = vmatpush1.msra.mxu0 0.0
        %1732 = vmatprep.subr.mxu0 0.0
        %1733 = vmatpush1.msra.mxu0 0.0
        %1734 = vmatprep.subr.mxu0 0.0
        %1735 = vmatpush1.msra.mxu0 0.0
        %1736 = vmatprep.subr.mxu0 0.0
        %1737 = vmatpush1.msra.mxu0 0.0
        %1738 = vmatprep.subr.mxu0 0.0
        %1739 = vmatpush1.msra.mxu0 0.0
        %1740 = vmatprep.subr.mxu0 0.0
        %1741 = vmatpush1.msra.mxu0 0.0
        %1742 = vmatprep.subr.mxu0 0.0
        %1743 = vmatpush1.msra.mxu0 0.0
        %1744 = vmatprep.subr.mxu0 0.0
        %1745 = vmatpush1.msra.mxu0 0.0
        %1746 = vmatprep.subr.mxu0 0.0
        %1747 = vmatpush1.msra.mxu0 0.0
        %1748 = vmatprep.subr.mxu0 0.0
        %1749 = vmatpush1.msra.mxu0 0.0
        %1750 = vmatprep.subr.mxu0 0.0
        %1751 = vmatpush1.msra.mxu0 0.0
        %1752 = vmatprep.subr.mxu0 0.0
        %1753 = vmatpush1.msra.mxu0 0.0
        %1754 = vmatprep.subr.mxu0 0.0
        %1755 = vmatpush1.msra.mxu0 0.0
        %1756 = vmatprep.subr.mxu0 0.0
        %1757 = vmatpush1.msra.mxu0 0.0
        %1758 = vmatprep.mubr.f32.mxu0 0.0
        %1759 = vmatmul.mubr.f32.gmra.mrb[0].mxu0 %v989
        %v1760 = vpop.f32.mrb[0].mxu0
        %v1761 = vadd.f32 %v1232, %v1760
        %v1762 = vpop.f32.mrb[0].mxu0
        %v1763 = vadd.f32 %v1236, %v1762
        %1764 = vmatprep.mubr.f32.mxu0 0.0
        %1765 = vmatmul.mubr.f32.gmra.mrb[0].mxu0 %v990
        %v1766 = vpop.f32.mrb[0].mxu0
        %v1767 = vadd.f32 %v1232, %v1766
        %v1768 = vpop.f32.mrb[0].mxu0
        %v1769 = vadd.f32 %v1236, %v1768
        %1770 = vmatprep.mubr.f32.mxu0 0.0
        %1771 = vmatmul.mubr.f32.gmra.mrb[0].mxu0 %v991
        %v1772 = vpop.f32.mrb[0].mxu0
        %v1773 = vadd.f32 %v1232, %v1772
        %v1774 = vpop.f32.mrb[0].mxu0
        %v1775 = vadd.f32 %v1236, %v1774
        %1776 = vmatprep.mubr.f32.mxu0 0.0
        %1777 = vmatmul.mubr.f32.gmra.mrb[0].mxu0 %v992
        %v1778 = vpop.f32.mrb[0].mxu0
        %v1779 = vadd.f32 %v1232, %v1778
        %v1780 = vpop.f32.mrb[0].mxu0
        %v1781 = vadd.f32 %v1236, %v1780
        %1782 = vdwg.mxu0
        %1783 = vmatprep.subr.mxu0 0.0
        %1784 = vmatpush1.xpose.msra.mxu0 %v1494
        %1785 = vmatprep.subr.mxu0 0.0
        %1786 = vmatpush1.xpose.msra.mxu0 %v1500
        %1787 = vmatprep.subr.mxu0 0.0
        %1788 = vmatpush1.xpose.msra.mxu0 0.0
        %1789 = vmatprep.subr.mxu0 0.0
        %1790 = vmatpush1.xpose.msra.mxu0 0.0
        %1791 = vmatprep.subr.mxu0 0.0
        %1792 = vmatpush1.xpose.msra.mxu0 0.0
        %1793 = vmatprep.subr.mxu0 0.0
        %1794 = vmatpush1.xpose.msra.mxu0 0.0
        %1795 = vmatprep.subr.mxu0 0.0
        %1796 = vmatpush1.xpose.msra.mxu0 0.0
        %1797 = vmatprep.subr.mxu0 0.0
        %1798 = vmatpush1.xpose.msra.mxu0 0.0
        %1799 = vmatprep.subr.mxu0 0.0
        %1800 = vmatpush1.xpose.msra.mxu0 0.0
        %1801 = vmatprep.subr.mxu0 0.0
        %1802 = vmatpush1.xpose.msra.mxu0 0.0
        %1803 = vmatprep.subr.mxu0 0.0
        %1804 = vmatpush1.xpose.msra.mxu0 0.0
        %1805 = vmatprep.subr.mxu0 0.0
        %1806 = vmatpush1.xpose.msra.mxu0 0.0
        %1807 = vmatprep.subr.mxu0 0.0
        %1808 = vmatpush1.xpose.msra.mxu0 0.0
        %1809 = vmatprep.subr.mxu0 0.0
        %1810 = vmatpush1.xpose.msra.mxu0 0.0
        %1811 = vmatprep.subr.mxu0 0.0
        %1812 = vmatpush1.xpose.msra.mxu0 0.0
        %1813 = vmatprep.subr.mxu0 0.0
        %1814 = vmatpush1.xpose.msra.mxu0 0.0
        %1815 = vmatprep.subr.mxu0 0.0
        %1816 = vmatpush1.xpose.msra.mxu0 0.0
        %1817 = vmatprep.subr.mxu0 0.0
        %1818 = vmatpush1.xpose.msra.mxu0 0.0
        %1819 = vmatprep.subr.mxu0 0.0
        %1820 = vmatpush1.xpose.msra.mxu0 0.0
        %1821 = vmatprep.subr.mxu0 0.0
        %1822 = vmatpush1.xpose.msra.mxu0 0.0
        %1823 = vmatprep.subr.mxu0 0.0
        %1824 = vmatpush1.xpose.msra.mxu0 0.0
        %1825 = vmatprep.subr.mxu0 0.0
        %1826 = vmatpush1.xpose.msra.mxu0 0.0
        %1827 = vmatprep.subr.mxu0 0.0
        %1828 = vmatpush1.xpose.msra.mxu0 0.0
        %1829 = vmatprep.subr.mxu0 0.0
        %1830 = vmatpush1.xpose.msra.mxu0 0.0
        %1831 = vmatprep.subr.mxu0 0.0
        %1832 = vmatpush1.xpose.msra.mxu0 0.0
        %1833 = vmatprep.subr.mxu0 0.0
        %1834 = vmatpush1.xpose.msra.mxu0 0.0
        %1835 = vmatprep.subr.mxu0 0.0
        %1836 = vmatpush1.xpose.msra.mxu0 0.0
        %1837 = vmatprep.subr.mxu0 0.0
        %1838 = vmatpush1.xpose.msra.mxu0 0.0
        %1839 = vmatprep.subr.mxu0 0.0
        %1840 = vmatpush1.xpose.msra.mxu0 0.0
        %1841 = vmatprep.subr.mxu0 0.0
        %1842 = vmatpush1.xpose.msra.mxu0 0.0
        %1843 = vmatprep.subr.mxu0 0.0
        %1844 = vmatpush1.xpose.msra.mxu0 0.0
        %1845 = vmatprep.subr.mxu0 0.0
        %1846 = vmatpush1.xpose.msra.mxu0 0.0
        %1847 = vmatprep.mubr.f32.mxu0 0.0
        %1848 = vmatmul.mubr.f32.gmra.mrb[0].mxu0 %v1316
        %v1849 = vpop.f32.mrb[0].mxu0
        %v1850 = vadd.f32 0.0, %v1849
        %v1851 = vpop.f32.mrb[0].mxu0
        %1852 = vmatprep.mubr.f32.mxu0 0.0
        %1853 = vmatmul.mubr.f32.gmra.mrb[0].mxu0 %v1322
        %v1854 = vpop.f32.mrb[0].mxu0
        %v1855 = vadd.f32 0.0, %v1854
        %v1856 = vpop.f32.mrb[0].mxu0
        %1857 = vdwg.mxu0
        %1858 = vmatprep.subr.mxu0 0.0
        %1859 = vmatpush1.xpose.msra.mxu0 %v1506
        %1860 = vmatprep.subr.mxu0 0.0
        %1861 = vmatpush1.xpose.msra.mxu0 %v1512
        %1862 = vmatprep.subr.mxu0 0.0
        %1863 = vmatpush1.xpose.msra.mxu0 0.0
        %1864 = vmatprep.subr.mxu0 0.0
        %1865 = vmatpush1.xpose.msra.mxu0 0.0
        %1866 = vmatprep.subr.mxu0 0.0
        %1867 = vmatpush1.xpose.msra.mxu0 0.0
        %1868 = vmatprep.subr.mxu0 0.0
        %1869 = vmatpush1.xpose.msra.mxu0 0.0
        %1870 = vmatprep.subr.mxu0 0.0
        %1871 = vmatpush1.xpose.msra.mxu0 0.0
        %1872 = vmatprep.subr.mxu0 0.0
        %1873 = vmatpush1.xpose.msra.mxu0 0.0
        %1874 = vmatprep.subr.mxu0 0.0
        %1875 = vmatpush1.xpose.msra.mxu0 0.0
        %1876 = vmatprep.subr.mxu0 0.0
        %1877 = vmatpush1.xpose.msra.mxu0 0.0
        %1878 = vmatprep.subr.mxu0 0.0
        %1879 = vmatpush1.xpose.msra.mxu0 0.0
        %1880 = vmatprep.subr.mxu0 0.0
        %1881 = vmatpush1.xpose.msra.mxu0 0.0
        %1882 = vmatprep.subr.mxu0 0.0
        %1883 = vmatpush1.xpose.msra.mxu0 0.0
        %1884 = vmatprep.subr.mxu0 0.0
        %1885 = vmatpush1.xpose.msra.mxu0 0.0
        %1886 = vmatprep.subr.mxu0 0.0
        %1887 = vmatpush1.xpose.msra.mxu0 0.0
        %1888 = vmatprep.subr.mxu0 0.0
        %1889 = vmatpush1.xpose.msra.mxu0 0.0
        %1890 = vmatprep.subr.mxu0 0.0
        %1891 = vmatpush1.xpose.msra.mxu0 0.0
        %1892 = vmatprep.subr.mxu0 0.0
        %1893 = vmatpush1.xpose.msra.mxu0 0.0
        %1894 = vmatprep.subr.mxu0 0.0
        %1895 = vmatpush1.xpose.msra.mxu0 0.0
        %1896 = vmatprep.subr.mxu0 0.0
        %1897 = vmatpush1.xpose.msra.mxu0 0.0
        %1898 = vmatprep.subr.mxu0 0.0
        %1899 = vmatpush1.xpose.msra.mxu0 0.0
        %1900 = vmatprep.subr.mxu0 0.0
        %1901 = vmatpush1.xpose.msra.mxu0 0.0
        %1902 = vmatprep.subr.mxu0 0.0
        %1903 = vmatpush1.xpose.msra.mxu0 0.0
        %1904 = vmatprep.subr.mxu0 0.0
        %1905 = vmatpush1.xpose.msra.mxu0 0.0
        %1906 = vmatprep.subr.mxu0 0.0
        %1907 = vmatpush1.xpose.msra.mxu0 0.0
        %1908 = vmatprep.subr.mxu0 0.0
        %1909 = vmatpush1.xpose.msra.mxu0 0.0
        %1910 = vmatprep.subr.mxu0 0.0
        %1911 = vmatpush1.xpose.msra.mxu0 0.0
        %1912 = vmatprep.subr.mxu0 0.0
        %1913 = vmatpush1.xpose.msra.mxu0 0.0
        %1914 = vmatprep.subr.mxu0 0.0
        %1915 = vmatpush1.xpose.msra.mxu0 0.0
        %1916 = vmatprep.subr.mxu0 0.0
        %1917 = vmatpush1.xpose.msra.mxu0 0.0
        %1918 = vmatprep.subr.mxu0 0.0
        %1919 = vmatpush1.xpose.msra.mxu0 0.0
        %1920 = vmatprep.subr.mxu0 0.0
        %1921 = vmatpush1.xpose.msra.mxu0 0.0
        %1922 = vmatprep.mubr.f32.mxu0 0.0
        %1923 = vmatmul.mubr.f32.gmra.mrb[0].mxu0 %v1328
        %v1924 = vpop.f32.mrb[0].mxu0
        %v1925 = vadd.f32 0.0, %v1924
        %v1926 = vpop.f32.mrb[0].mxu0
        %1927 = vmatprep.mubr.f32.mxu0 0.0
        %1928 = vmatmul.mubr.f32.gmra.mrb[0].mxu0 %v1334
        %v1929 = vpop.f32.mrb[0].mxu0
        %v1930 = vadd.f32 0.0, %v1929
        %v1931 = vpop.f32.mrb[0].mxu0
        %1932 = vdwg.mxu0
        %vm1933 = vcmask 130048
        %v1934 = vsel %vm1933, %v1850, -inf
        %1935 = vmax.xlane.f32.xlu0 %v1934
        %v1936 = vpop.xlane.xlu0 %1935
        %v1937 = vsel %vm1933, %v1855, -inf
        %1938 = vmax.xlane.f32.xlu0 %v1937
        %v1939 = vpop.xlane.xlu0 %1938
        %v1940 = vsel %vm1933, %v1925, -inf
        %1941 = vmax.xlane.f32.xlu0 %v1940
        %v1942 = vpop.xlane.xlu0 %1941
        %v1943 = vsel %vm1933, %v1930, -inf
        %1944 = vmax.xlane.f32.xlu0 %v1943
        %v1945 = vpop.xlane.xlu0 %1944
        %v1946 = vsub.f32 %v1850, %v1936
        %v1947 = vsub.f32 %v1855, %v1939
        %v1948 = vsub.f32 %v1925, %v1942
        %v1949 = vsub.f32 %v1930, %v1945
        %v1950 = vmul.f32 %v1946, 1.442695
        %v1951 = vpow.pop %v1950
        %v1952 = vmul.f32 %v1947, 1.442695
        %v1953 = vpow.pop %v1952
        %v1954 = vmul.f32 %v1948, 1.442695
        %v1955 = vpow.pop %v1954
        %v1956 = vmul.f32 %v1949, 1.442695
        %v1957 = vpow.pop %v1956
        %v1958 = vsel %vm1933, %v1951, 0.0
        %1959 = vadd.xlane.f32.xlu0 %v1958
        %v1960 = vpop.xlane.xlu0 %1959
        %v1961 = vsel %vm1933, %v1953, 0.0
        %1962 = vadd.xlane.f32.xlu0 %v1961
        %v1963 = vpop.xlane.xlu0 %1962
        %v1964 = vsel %vm1933, %v1955, 0.0
        %1965 = vadd.xlane.f32.xlu0 %v1964
        %v1966 = vpop.xlane.xlu0 %1965
        %v1967 = vsel %vm1933, %v1957, 0.0
        %1968 = vadd.xlane.f32.xlu0 %v1967
        %v1969 = vpop.xlane.xlu0 %1968
        %v1970 = vrcp.pop %v1960
        %v1971 = vrcp.pop %v1963
        %v1972 = vrcp.pop %v1966
        %v1973 = vrcp.pop %v1969
        %v1974 = vmul.f32 %v1951, %v1970
        %v1975 = vmul.f32 %v1953, %v1971
        %v1976 = vmul.f32 %v1955, %v1972
        %v1977 = vmul.f32 %v1957, %v1973
        %v1979 = vsel %vm1933, %v1974, 0
        %v1982 = vsel %vm1933, %v1975, 0
        %1984 = vmatprep.subr.mxu0 0.0
        %1985 = vmatpush1.msra.mxu0 %v1672
        %1986 = vmatprep.subr.mxu0 0.0
        %1987 = vmatpush1.msra.mxu0 %v1678
        %1988 = vmatprep.subr.mxu0 0.0
        %1989 = vmatpush1.msra.mxu0 0.0
        %1990 = vmatprep.subr.mxu0 0.0
        %1991 = vmatpush1.msra.mxu0 0.0
        %1992 = vmatprep.subr.mxu0 0.0
        %1993 = vmatpush1.msra.mxu0 0.0
        %1994 = vmatprep.subr.mxu0 0.0
        %1995 = vmatpush1.msra.mxu0 0.0
        %1996 = vmatprep.subr.mxu0 0.0
        %1997 = vmatpush1.msra.mxu0 0.0
        %1998 = vmatprep.subr.mxu0 0.0
        %1999 = vmatpush1.msra.mxu0 0.0
        %2000 = vmatprep.subr.mxu0 0.0
        %2001 = vmatpush1.msra.mxu0 0.0
        %2002 = vmatprep.subr.mxu0 0.0
        %2003 = vmatpush1.msra.mxu0 0.0
        %2004 = vmatprep.subr.mxu0 0.0
        %2005 = vmatpush1.msra.mxu0 0.0
        %2006 = vmatprep.subr.mxu0 0.0
        %2007 = vmatpush1.msra.mxu0 0.0
        %2008 = vmatprep.subr.mxu0 0.0
        %2009 = vmatpush1.msra.mxu0 0.0
        %2010 = vmatprep.subr.mxu0 0.0
        %2011 = vmatpush1.msra.mxu0 0.0
        %2012 = vmatprep.subr.mxu0 0.0
        %2013 = vmatpush1.msra.mxu0 0.0
        %2014 = vmatprep.subr.mxu0 0.0
        %2015 = vmatpush1.msra.mxu0 0.0
        %2016 = vmatprep.subr.mxu0 0.0
        %2017 = vmatpush1.msra.mxu0 0.0
        %2018 = vmatprep.subr.mxu0 0.0
        %2019 = vmatpush1.msra.mxu0 0.0
        %2020 = vmatprep.subr.mxu0 0.0
        %2021 = vmatpush1.msra.mxu0 0.0
        %2022 = vmatprep.subr.mxu0 0.0
        %2023 = vmatpush1.msra.mxu0 0.0
        %2024 = vmatprep.subr.mxu0 0.0
        %2025 = vmatpush1.msra.mxu0 0.0
        %2026 = vmatprep.subr.mxu0 0.0
        %2027 = vmatpush1.msra.mxu0 0.0
        %2028 = vmatprep.subr.mxu0 0.0
        %2029 = vmatpush1.msra.mxu0 0.0
        %2030 = vmatprep.subr.mxu0 0.0
        %2031 = vmatpush1.msra.mxu0 0.0
        %2032 = vmatprep.subr.mxu0 0.0
        %2033 = vmatpush1.msra.mxu0 0.0
        %2034 = vmatprep.subr.mxu0 0.0
        %2035 = vmatpush1.msra.mxu0 0.0
        %2036 = vmatprep.subr.mxu0 0.0
        %2037 = vmatpush1.msra.mxu0 0.0
        %2038 = vmatprep.subr.mxu0 0.0
        %2039 = vmatpush1.msra.mxu0 0.0
        %2040 = vmatprep.subr.mxu0 0.0
        %2041 = vmatpush1.msra.mxu0 0.0
        %2042 = vmatprep.subr.mxu0 0.0
        %2043 = vmatpush1.msra.mxu0 0.0
        %2044 = vmatprep.subr.mxu0 0.0
        %2045 = vmatpush1.msra.mxu0 0.0
        %2046 = vmatprep.subr.mxu0 0.0
        %2047 = vmatpush1.msra.mxu0 0.0
        %2048 = vmatprep.mubr.f32.mxu0 0.0
        %2049 = vmatmul.mubr.f32.gmra.mrb[0].mxu0 %v1979
        %v2050 = vpop.f32.mrb[0].mxu0
        %v2051 = vadd.f32 0.0, %v2050
        %v2052 = vpop.f32.mrb[0].mxu0
        %2053 = vmatprep.mubr.f32.mxu0 0.0
        %2054 = vmatmul.mubr.f32.gmra.mrb[0].mxu0 %v1982
        %v2055 = vpop.f32.mrb[0].mxu0
        %v2056 = vadd.f32 0.0, %v2055
        %v2057 = vpop.f32.mrb[0].mxu0
        %2058 = vdwg.mxu0
        %v2060 = vsel %vm1933, %v1976, 0
        %v2063 = vsel %vm1933, %v1977, 0
        %2065 = vmatprep.subr.mxu0 0.0
        %2066 = vmatpush1.msra.mxu0 %v1684
        %2067 = vmatprep.subr.mxu0 0.0
        %2068 = vmatpush1.msra.mxu0 %v1690
        %2069 = vmatprep.subr.mxu0 0.0
        %2070 = vmatpush1.msra.mxu0 0.0
        %2071 = vmatprep.subr.mxu0 0.0
        %2072 = vmatpush1.msra.mxu0 0.0
        %2073 = vmatprep.subr.mxu0 0.0
        %2074 = vmatpush1.msra.mxu0 0.0
        %2075 = vmatprep.subr.mxu0 0.0
        %2076 = vmatpush1.msra.mxu0 0.0
        %2077 = vmatprep.subr.mxu0 0.0
        %2078 = vmatpush1.msra.mxu0 0.0
        %2079 = vmatprep.subr.mxu0 0.0
        %2080 = vmatpush1.msra.mxu0 0.0
        %2081 = vmatprep.subr.mxu0 0.0
        %2082 = vmatpush1.msra.mxu0 0.0
        %2083 = vmatprep.subr.mxu0 0.0
        %2084 = vmatpush1.msra.mxu0 0.0
        %2085 = vmatprep.subr.mxu0 0.0
        %2086 = vmatpush1.msra.mxu0 0.0
        %2087 = vmatprep.subr.mxu0 0.0
        %2088 = vmatpush1.msra.mxu0 0.0
        %2089 = vmatprep.subr.mxu0 0.0
        %2090 = vmatpush1.msra.mxu0 0.0
        %2091 = vmatprep.subr.mxu0 0.0
        %2092 = vmatpush1.msra.mxu0 0.0
        %2093 = vmatprep.subr.mxu0 0.0
        %2094 = vmatpush1.msra.mxu0 0.0
        %2095 = vmatprep.subr.mxu0 0.0
        %2096 = vmatpush1.msra.mxu0 0.0
        %2097 = vmatprep.subr.mxu0 0.0
        %2098 = vmatpush1.msra.mxu0 0.0
        %2099 = vmatprep.subr.mxu0 0.0
        %2100 = vmatpush1.msra.mxu0 0.0
        %2101 = vmatprep.subr.mxu0 0.0
        %2102 = vmatpush1.msra.mxu0 0.0
        %2103 = vmatprep.subr.mxu0 0.0
        %2104 = vmatpush1.msra.mxu0 0.0
        %2105 = vmatprep.subr.mxu0 0.0
        %2106 = vmatpush1.msra.mxu0 0.0
        %2107 = vmatprep.subr.mxu0 0.0
        %2108 = vmatpush1.msra.mxu0 0.0
        %2109 = vmatprep.subr.mxu0 0.0
        %2110 = vmatpush1.msra.mxu0 0.0
        %2111 = vmatprep.subr.mxu0 0.0
        %2112 = vmatpush1.msra.mxu0 0.0
        %2113 = vmatprep.subr.mxu0 0.0
        %2114 = vmatpush1.msra.mxu0 0.0
        %2115 = vmatprep.subr.mxu0 0.0
        %2116 = vmatpush1.msra.mxu0 0.0
        %2117 = vmatprep.subr.mxu0 0.0
        %2118 = vmatpush1.msra.mxu0 0.0
        %2119 = vmatprep.subr.mxu0 0.0
        %2120 = vmatpush1.msra.mxu0 0.0
        %2121 = vmatprep.subr.mxu0 0.0
        %2122 = vmatpush1.msra.mxu0 0.0
        %2123 = vmatprep.subr.mxu0 0.0
        %2124 = vmatpush1.msra.mxu0 0.0
        %2125 = vmatprep.subr.mxu0 0.0
        %2126 = vmatpush1.msra.mxu0 0.0
        %2127 = vmatprep.subr.mxu0 0.0
        %2128 = vmatpush1.msra.mxu0 0.0
        %2129 = vmatprep.mubr.f32.mxu0 0.0
        %2130 = vmatmul.mubr.f32.gmra.mrb[0].mxu0 %v2060
        %v2131 = vpop.f32.mrb[0].mxu0
        %v2132 = vadd.f32 0.0, %v2131
        %v2133 = vpop.f32.mrb[0].mxu0
        %2134 = vmatprep.mubr.f32.mxu0 0.0
        %2135 = vmatmul.mubr.f32.gmra.mrb[0].mxu0 %v2063
        %v2136 = vpop.f32.mrb[0].mxu0
        %v2137 = vadd.f32 0.0, %v2136
        %v2138 = vpop.f32.mrb[0].mxu0
        %2139 = vdwg.mxu0
        %v2140 = vld [vmem:[%s740] sm:$0xff]
        %v2141 = vld [vmem:[%s740 + $0x8] sm:$0xff]
        %v2142 = vld [vmem:[%s740 + $0x10] sm:$0xff]
        %v2143 = vld [vmem:[%s740 + $0x18] sm:$0xff]
        %v2144 = vld [vmem:[%s740 + $0x20] sm:$0xff]
        %v2145 = vld [vmem:[%s740 + $0x28] sm:$0xff]
        %v2146 = vld [vmem:[%s740 + $0x30] sm:$0xff]
        %v2147 = vld [vmem:[%s740 + $0x38] sm:$0xff]
        %v2148 = vld [vmem:[%s740 + $0x40] sm:$0xff]
        %v2149 = vld [vmem:[%s740 + $0x48] sm:$0xff]
        %v2150 = vld [vmem:[%s740 + $0x50] sm:$0xff]
        %v2151 = vld [vmem:[%s740 + $0x58] sm:$0xff]
        %v2152 = vld [vmem:[%s740 + $0x60] sm:$0xff]
        %v2153 = vld [vmem:[%s740 + $0x68] sm:$0xff]
        %v2154 = vld [vmem:[%s740 + $0x70] sm:$0xff]
        %v2155 = vld [vmem:[%s740 + $0x78] sm:$0xff]
        %2156 = vmatprep.subr.mxu0 0.0
        %2157 = vmatpush1.xpose.msra.mxu0 %v1496
        %2158 = vmatprep.subr.mxu0 0.0
        %2159 = vmatpush1.xpose.msra.mxu0 %v1502
        %2160 = vmatprep.subr.mxu0 0.0
        %2161 = vmatpush1.xpose.msra.mxu0 0.0
        %2162 = vmatprep.subr.mxu0 0.0
        %2163 = vmatpush1.xpose.msra.mxu0 0.0
        %2164 = vmatprep.subr.mxu0 0.0
        %2165 = vmatpush1.xpose.msra.mxu0 0.0
        %2166 = vmatprep.subr.mxu0 0.0
        %2167 = vmatpush1.xpose.msra.mxu0 0.0
        %2168 = vmatprep.subr.mxu0 0.0
        %2169 = vmatpush1.xpose.msra.mxu0 0.0
        %2170 = vmatprep.subr.mxu0 0.0
        %2171 = vmatpush1.xpose.msra.mxu0 0.0
        %2172 = vmatprep.subr.mxu0 0.0
        %2173 = vmatpush1.xpose.msra.mxu0 0.0
        %2174 = vmatprep.subr.mxu0 0.0
        %2175 = vmatpush1.xpose.msra.mxu0 0.0
        %2176 = vmatprep.subr.mxu0 0.0
        %2177 = vmatpush1.xpose.msra.mxu0 0.0
        %2178 = vmatprep.subr.mxu0 0.0
        %2179 = vmatpush1.xpose.msra.mxu0 0.0
        %2180 = vmatprep.subr.mxu0 0.0
        %2181 = vmatpush1.xpose.msra.mxu0 0.0
        %2182 = vmatprep.subr.mxu0 0.0
        %2183 = vmatpush1.xpose.msra.mxu0 0.0
        %2184 = vmatprep.subr.mxu0 0.0
        %2185 = vmatpush1.xpose.msra.mxu0 0.0
        %2186 = vmatprep.subr.mxu0 0.0
        %2187 = vmatpush1.xpose.msra.mxu0 0.0
        %2188 = vmatprep.subr.mxu0 0.0
        %2189 = vmatpush1.xpose.msra.mxu0 0.0
        %2190 = vmatprep.subr.mxu0 0.0
        %2191 = vmatpush1.xpose.msra.mxu0 0.0
        %2192 = vmatprep.subr.mxu0 0.0
        %2193 = vmatpush1.xpose.msra.mxu0 0.0
        %2194 = vmatprep.subr.mxu0 0.0
        %2195 = vmatpush1.xpose.msra.mxu0 0.0
        %2196 = vmatprep.subr.mxu0 0.0
        %2197 = vmatpush1.xpose.msra.mxu0 0.0
        %2198 = vmatprep.subr.mxu0 0.0
        %2199 = vmatpush1.xpose.msra.mxu0 0.0
        %2200 = vmatprep.subr.mxu0 0.0
        %2201 = vmatpush1.xpose.msra.mxu0 0.0
        %2202 = vmatprep.subr.mxu0 0.0
        %2203 = vmatpush1.xpose.msra.mxu0 0.0
        %2204 = vmatprep.subr.mxu0 0.0
        %2205 = vmatpush1.xpose.msra.mxu0 0.0
        %2206 = vmatprep.subr.mxu0 0.0
        %2207 = vmatpush1.xpose.msra.mxu0 0.0
        %2208 = vmatprep.subr.mxu0 0.0
        %2209 = vmatpush1.xpose.msra.mxu0 0.0
        %2210 = vmatprep.subr.mxu0 0.0
        %2211 = vmatpush1.xpose.msra.mxu0 0.0
        %2212 = vmatprep.subr.mxu0 0.0
        %2213 = vmatpush1.xpose.msra.mxu0 0.0
        %2214 = vmatprep.subr.mxu0 0.0
        %2215 = vmatpush1.xpose.msra.mxu0 0.0
        %2216 = vmatprep.subr.mxu0 0.0
        %2217 = vmatpush1.xpose.msra.mxu0 0.0
        %2218 = vmatprep.subr.mxu0 0.0
        %2219 = vmatpush1.xpose.msra.mxu0 0.0
        %2220 = vmatprep.mubr.f32.mxu0 0.0
        %2221 = vmatmul.mubr.f32.gmra.mrb[0].mxu0 %v1318
        %v2222 = vpop.f32.mrb[0].mxu0
        %v2223 = vadd.f32 0.0, %v2222
        %v2224 = vpop.f32.mrb[0].mxu0
        %2225 = vmatprep.mubr.f32.mxu0 0.0
        %2226 = vmatmul.mubr.f32.gmra.mrb[0].mxu0 %v1324
        %v2227 = vpop.f32.mrb[0].mxu0
        %v2228 = vadd.f32 0.0, %v2227
        %v2229 = vpop.f32.mrb[0].mxu0
        %2230 = vdwg.mxu0
        %2231 = vmatprep.subr.mxu0 0.0
        %2232 = vmatpush1.xpose.msra.mxu0 %v1508
        %2233 = vmatprep.subr.mxu0 0.0
        %2234 = vmatpush1.xpose.msra.mxu0 %v1514
        %2235 = vmatprep.subr.mxu0 0.0
        %2236 = vmatpush1.xpose.msra.mxu0 0.0
        %2237 = vmatprep.subr.mxu0 0.0
        %2238 = vmatpush1.xpose.msra.mxu0 0.0
        %2239 = vmatprep.subr.mxu0 0.0
        %2240 = vmatpush1.xpose.msra.mxu0 0.0
        %2241 = vmatprep.subr.mxu0 0.0
        %2242 = vmatpush1.xpose.msra.mxu0 0.0
        %2243 = vmatprep.subr.mxu0 0.0
        %2244 = vmatpush1.xpose.msra.mxu0 0.0
        %2245 = vmatprep.subr.mxu0 0.0
        %2246 = vmatpush1.xpose.msra.mxu0 0.0
        %2247 = vmatprep.subr.mxu0 0.0
        %2248 = vmatpush1.xpose.msra.mxu0 0.0
        %2249 = vmatprep.subr.mxu0 0.0
        %2250 = vmatpush1.xpose.msra.mxu0 0.0
        %2251 = vmatprep.subr.mxu0 0.0
        %2252 = vmatpush1.xpose.msra.mxu0 0.0
        %2253 = vmatprep.subr.mxu0 0.0
        %2254 = vmatpush1.xpose.msra.mxu0 0.0
        %2255 = vmatprep.subr.mxu0 0.0
        %2256 = vmatpush1.xpose.msra.mxu0 0.0
        %2257 = vmatprep.subr.mxu0 0.0
        %2258 = vmatpush1.xpose.msra.mxu0 0.0
        %2259 = vmatprep.subr.mxu0 0.0
        %2260 = vmatpush1.xpose.msra.mxu0 0.0
        %2261 = vmatprep.subr.mxu0 0.0
        %2262 = vmatpush1.xpose.msra.mxu0 0.0
        %2263 = vmatprep.subr.mxu0 0.0
        %2264 = vmatpush1.xpose.msra.mxu0 0.0
        %2265 = vmatprep.subr.mxu0 0.0
        %2266 = vmatpush1.xpose.msra.mxu0 0.0
        %2267 = vmatprep.subr.mxu0 0.0
        %2268 = vmatpush1.xpose.msra.mxu0 0.0
        %2269 = vmatprep.subr.mxu0 0.0
        %2270 = vmatpush1.xpose.msra.mxu0 0.0
        %2271 = vmatprep.subr.mxu0 0.0
        %2272 = vmatpush1.xpose.msra.mxu0 0.0
        %2273 = vmatprep.subr.mxu0 0.0
        %2274 = vmatpush1.xpose.msra.mxu0 0.0
        %2275 = vmatprep.subr.mxu0 0.0
        %2276 = vmatpush1.xpose.msra.mxu0 0.0
        %2277 = vmatprep.subr.mxu0 0.0
        %2278 = vmatpush1.xpose.msra.mxu0 0.0
        %2279 = vmatprep.subr.mxu0 0.0
        %2280 = vmatpush1.xpose.msra.mxu0 0.0
        %2281 = vmatprep.subr.mxu0 0.0
        %2282 = vmatpush1.xpose.msra.mxu0 0.0
        %2283 = vmatprep.subr.mxu0 0.0
        %2284 = vmatpush1.xpose.msra.mxu0 0.0
        %2285 = vmatprep.subr.mxu0 0.0
        %2286 = vmatpush1.xpose.msra.mxu0 0.0
        %2287 = vmatprep.subr.mxu0 0.0
        %2288 = vmatpush1.xpose.msra.mxu0 0.0
        %2289 = vmatprep.subr.mxu0 0.0
        %2290 = vmatpush1.xpose.msra.mxu0 0.0
        %2291 = vmatprep.subr.mxu0 0.0
        %2292 = vmatpush1.xpose.msra.mxu0 0.0
        %2293 = vmatprep.subr.mxu0 0.0
        %2294 = vmatpush1.xpose.msra.mxu0 0.0
        %2295 = vmatprep.mubr.f32.mxu0 0.0
        %2296 = vmatmul.mubr.f32.gmra.mrb[0].mxu0 %v1330
        %v2297 = vpop.f32.mrb[0].mxu0
        %v2298 = vadd.f32 0.0, %v2297
        %v2299 = vpop.f32.mrb[0].mxu0
        %2300 = vmatprep.mubr.f32.mxu0 0.0
        %2301 = vmatmul.mubr.f32.gmra.mrb[0].mxu0 %v1336
        %v2302 = vpop.f32.mrb[0].mxu0
        %v2303 = vadd.f32 0.0, %v2302
        %v2304 = vpop.f32.mrb[0].mxu0
        %2305 = vdwg.mxu0
        %v2306 = vsel %vm1933, %v2223, -inf
        %2307 = vmax.xlane.f32.xlu0 %v2306
        %v2308 = vpop.xlane.xlu0 %2307
        %v2309 = vsel %vm1933, %v2228, -inf
        %2310 = vmax.xlane.f32.xlu0 %v2309
        %v2311 = vpop.xlane.xlu0 %2310
        %v2312 = vsel %vm1933, %v2298, -inf
        %2313 = vmax.xlane.f32.xlu0 %v2312
        %v2314 = vpop.xlane.xlu0 %2313
        %v2315 = vsel %vm1933, %v2303, -inf
        %2316 = vmax.xlane.f32.xlu0 %v2315
        %v2317 = vpop.xlane.xlu0 %2316
        %v2318 = vsub.f32 %v2223, %v2308
        %v2319 = vsub.f32 %v2228, %v2311
        %v2320 = vsub.f32 %v2298, %v2314
        %v2321 = vsub.f32 %v2303, %v2317
        %v2322 = vmul.f32 %v2318, 1.442695
        %v2323 = vpow.pop %v2322
        %v2324 = vmul.f32 %v2319, 1.442695
        %v2325 = vpow.pop %v2324
        %v2326 = vmul.f32 %v2320, 1.442695
        %v2327 = vpow.pop %v2326
        %v2328 = vmul.f32 %v2321, 1.442695
        %v2329 = vpow.pop %v2328
        %v2330 = vsel %vm1933, %v2323, 0.0
        %2331 = vadd.xlane.f32.xlu0 %v2330
        %v2332 = vpop.xlane.xlu0 %2331
        %v2333 = vsel %vm1933, %v2325, 0.0
        %2334 = vadd.xlane.f32.xlu0 %v2333
        %v2335 = vpop.xlane.xlu0 %2334
        %v2336 = vsel %vm1933, %v2327, 0.0
        %2337 = vadd.xlane.f32.xlu0 %v2336
        %v2338 = vpop.xlane.xlu0 %2337
        %v2339 = vsel %vm1933, %v2329, 0.0
        %2340 = vadd.xlane.f32.xlu0 %v2339
        %v2341 = vpop.xlane.xlu0 %2340
        %v2342 = vrcp.pop %v2332
        %v2343 = vrcp.pop %v2335
        %v2344 = vrcp.pop %v2338
        %v2345 = vrcp.pop %v2341
        %v2346 = vmul.f32 %v2323, %v2342
        %v2347 = vmul.f32 %v2325, %v2343
        %v2348 = vmul.f32 %v2327, %v2344
        %v2349 = vmul.f32 %v2329, %v2345
        %v2351 = vsel %vm1933, %v2346, 0
        %v2354 = vsel %vm1933, %v2347, 0
        %2356 = vmatprep.subr.mxu0 0.0
        %2357 = vmatpush1.msra.mxu0 %v1674
        %2358 = vmatprep.subr.mxu0 0.0
        %2359 = vmatpush1.msra.mxu0 %v1680
        %2360 = vmatprep.subr.mxu0 0.0
        %2361 = vmatpush1.msra.mxu0 0.0
        %2362 = vmatprep.subr.mxu0 0.0
        %2363 = vmatpush1.msra.mxu0 0.0
        %2364 = vmatprep.subr.mxu0 0.0
        %2365 = vmatpush1.msra.mxu0 0.0
        %2366 = vmatprep.subr.mxu0 0.0
        %2367 = vmatpush1.msra.mxu0 0.0
        %2368 = vmatprep.subr.mxu0 0.0
        %2369 = vmatpush1.msra.mxu0 0.0
        %2370 = vmatprep.subr.mxu0 0.0
        %2371 = vmatpush1.msra.mxu0 0.0
        %2372 = vmatprep.subr.mxu0 0.0
        %2373 = vmatpush1.msra.mxu0 0.0
        %2374 = vmatprep.subr.mxu0 0.0
        %2375 = vmatpush1.msra.mxu0 0.0
        %2376 = vmatprep.subr.mxu0 0.0
        %2377 = vmatpush1.msra.mxu0 0.0
        %2378 = vmatprep.subr.mxu0 0.0
        %2379 = vmatpush1.msra.mxu0 0.0
        %2380 = vmatprep.subr.mxu0 0.0
        %2381 = vmatpush1.msra.mxu0 0.0
        %2382 = vmatprep.subr.mxu0 0.0
        %2383 = vmatpush1.msra.mxu0 0.0
        %2384 = vmatprep.subr.mxu0 0.0
        %2385 = vmatpush1.msra.mxu0 0.0
        %2386 = vmatprep.subr.mxu0 0.0
        %2387 = vmatpush1.msra.mxu0 0.0
        %2388 = vmatprep.subr.mxu0 0.0
        %2389 = vmatpush1.msra.mxu0 0.0
        %2390 = vmatprep.subr.mxu0 0.0
        %2391 = vmatpush1.msra.mxu0 0.0
        %2392 = vmatprep.subr.mxu0 0.0
        %2393 = vmatpush1.msra.mxu0 0.0
        %2394 = vmatprep.subr.mxu0 0.0
        %2395 = vmatpush1.msra.mxu0 0.0
        %2396 = vmatprep.subr.mxu0 0.0
        %2397 = vmatpush1.msra.mxu0 0.0
        %2398 = vmatprep.subr.mxu0 0.0
        %2399 = vmatpush1.msra.mxu0 0.0
        %2400 = vmatprep.subr.mxu0 0.0
        %2401 = vmatpush1.msra.mxu0 0.0
        %2402 = vmatprep.subr.mxu0 0.0
        %2403 = vmatpush1.msra.mxu0 0.0
        %2404 = vmatprep.subr.mxu0 0.0
        %2405 = vmatpush1.msra.mxu0 0.0
        %2406 = vmatprep.subr.mxu0 0.0
        %2407 = vmatpush1.msra.mxu0 0.0
        %2408 = vmatprep.subr.mxu0 0.0
        %2409 = vmatpush1.msra.mxu0 0.0
        %2410 = vmatprep.subr.mxu0 0.0
        %2411 = vmatpush1.msra.mxu0 0.0
        %2412 = vmatprep.subr.mxu0 0.0
        %2413 = vmatpush1.msra.mxu0 0.0
        %2414 = vmatprep.subr.mxu0 0.0
        %2415 = vmatpush1.msra.mxu0 0.0
        %2416 = vmatprep.subr.mxu0 0.0
        %2417 = vmatpush1.msra.mxu0 0.0
        %2418 = vmatprep.subr.mxu0 0.0
        %2419 = vmatpush1.msra.mxu0 0.0
        %2420 = vmatprep.mubr.f32.mxu0 0.0
        %2421 = vmatmul.mubr.f32.gmra.mrb[0].mxu0 %v2351
        %v2422 = vpop.f32.mrb[0].mxu0
        %v2423 = vadd.f32 0.0, %v2422
        %v2424 = vpop.f32.mrb[0].mxu0
        %2425 = vmatprep.mubr.f32.mxu0 0.0
        %2426 = vmatmul.mubr.f32.gmra.mrb[0].mxu0 %v2354
        %v2427 = vpop.f32.mrb[0].mxu0
        %v2428 = vadd.f32 0.0, %v2427
        %v2429 = vpop.f32.mrb[0].mxu0
        %2430 = vdwg.mxu0
        %v2432 = vsel %vm1933, %v2348, 0
        %v2435 = vsel %vm1933, %v2349, 0
        %2437 = vmatprep.subr.mxu0 0.0
        %2438 = vmatpush1.msra.mxu0 %v1686
        %2439 = vmatprep.subr.mxu0 0.0
        %2440 = vmatpush1.msra.mxu0 %v1692
        %2441 = vmatprep.subr.mxu0 0.0
        %2442 = vmatpush1.msra.mxu0 0.0
        %2443 = vmatprep.subr.mxu0 0.0
        %2444 = vmatpush1.msra.mxu0 0.0
        %2445 = vmatprep.subr.mxu0 0.0
        %2446 = vmatpush1.msra.mxu0 0.0
        %2447 = vmatprep.subr.mxu0 0.0
        %2448 = vmatpush1.msra.mxu0 0.0
        %2449 = vmatprep.subr.mxu0 0.0
        %2450 = vmatpush1.msra.mxu0 0.0
        %2451 = vmatprep.subr.mxu0 0.0
        %2452 = vmatpush1.msra.mxu0 0.0
        %2453 = vmatprep.subr.mxu0 0.0
        %2454 = vmatpush1.msra.mxu0 0.0
        %2455 = vmatprep.subr.mxu0 0.0
        %2456 = vmatpush1.msra.mxu0 0.0
        %2457 = vmatprep.subr.mxu0 0.0
        %2458 = vmatpush1.msra.mxu0 0.0
        %2459 = vmatprep.subr.mxu0 0.0
        %2460 = vmatpush1.msra.mxu0 0.0
        %2461 = vmatprep.subr.mxu0 0.0
        %2462 = vmatpush1.msra.mxu0 0.0
        %2463 = vmatprep.subr.mxu0 0.0
        %2464 = vmatpush1.msra.mxu0 0.0
        %2465 = vmatprep.subr.mxu0 0.0
        %2466 = vmatpush1.msra.mxu0 0.0
        %2467 = vmatprep.subr.mxu0 0.0
        %2468 = vmatpush1.msra.mxu0 0.0
        %2469 = vmatprep.subr.mxu0 0.0
        %2470 = vmatpush1.msra.mxu0 0.0
        %2471 = vmatprep.subr.mxu0 0.0
        %2472 = vmatpush1.msra.mxu0 0.0
        %2473 = vmatprep.subr.mxu0 0.0
        %2474 = vmatpush1.msra.mxu0 0.0
        %2475 = vmatprep.subr.mxu0 0.0
        %2476 = vmatpush1.msra.mxu0 0.0
        %2477 = vmatprep.subr.mxu0 0.0
        %2478 = vmatpush1.msra.mxu0 0.0
        %2479 = vmatprep.subr.mxu0 0.0
        %2480 = vmatpush1.msra.mxu0 0.0
        %2481 = vmatprep.subr.mxu0 0.0
        %2482 = vmatpush1.msra.mxu0 0.0
        %2483 = vmatprep.subr.mxu0 0.0
        %2484 = vmatpush1.msra.mxu0 0.0
        %2485 = vmatprep.subr.mxu0 0.0
        %2486 = vmatpush1.msra.mxu0 0.0
        %2487 = vmatprep.subr.mxu0 0.0
        %2488 = vmatpush1.msra.mxu0 0.0
        %2489 = vmatprep.subr.mxu0 0.0
        %2490 = vmatpush1.msra.mxu0 0.0
        %2491 = vmatprep.subr.mxu0 0.0
        %2492 = vmatpush1.msra.mxu0 0.0
        %2493 = vmatprep.subr.mxu0 0.0
        %2494 = vmatpush1.msra.mxu0 0.0
        %2495 = vmatprep.subr.mxu0 0.0
        %2496 = vmatpush1.msra.mxu0 0.0
        %2497 = vmatprep.subr.mxu0 0.0
        %2498 = vmatpush1.msra.mxu0 0.0
        %2499 = vmatprep.subr.mxu0 0.0
        %2500 = vmatpush1.msra.mxu0 0.0
        %2501 = vmatprep.mubr.f32.mxu0 0.0
        %2502 = vmatmul.mubr.f32.gmra.mrb[0].mxu0 %v2432
        %v2503 = vpop.f32.mrb[0].mxu0
        %v2504 = vadd.f32 0.0, %v2503
        %v2505 = vpop.f32.mrb[0].mxu0
        %2506 = vmatprep.mubr.f32.mxu0 0.0
        %2507 = vmatmul.mubr.f32.gmra.mrb[0].mxu0 %v2435
        %v2508 = vpop.f32.mrb[0].mxu0
        %v2509 = vadd.f32 0.0, %v2508
        %v2510 = vpop.f32.mrb[0].mxu0
        %2511 = vdwg.mxu0
        %s2512 = scalar_lea.vmem %s740, 128 [#allocation12]
        %v2513 = vld [vmem:[%s2512] sm:$0xff]
        %v2514 = vld [vmem:[%s2512 + $0x8] sm:$0xff]
        %v2515 = vld [vmem:[%s2512 + $0x10] sm:$0xff]
        %v2516 = vld [vmem:[%s2512 + $0x18] sm:$0xff]
        %v2517 = vld [vmem:[%s2512 + $0x20] sm:$0xff]
        %v2518 = vld [vmem:[%s2512 + $0x28] sm:$0xff]
        %v2519 = vld [vmem:[%s2512 + $0x30] sm:$0xff]
        %v2520 = vld [vmem:[%s2512 + $0x38] sm:$0xff]
        %v2521 = vld [vmem:[%s2512 + $0x40] sm:$0xff]
        %v2522 = vld [vmem:[%s2512 + $0x48] sm:$0xff]
        %v2523 = vld [vmem:[%s2512 + $0x50] sm:$0xff]
        %v2524 = vld [vmem:[%s2512 + $0x58] sm:$0xff]
        %v2525 = vld [vmem:[%s2512 + $0x60] sm:$0xff]
        %v2526 = vld [vmem:[%s2512 + $0x68] sm:$0xff]
        %v2527 = vld [vmem:[%s2512 + $0x70] sm:$0xff]
        %v2528 = vld [vmem:[%s2512 + $0x78] sm:$0xff]
        %2529 = vmatprep.subr.mxu0 0.0
        %2530 = vmatpush1.msra.mxu0 %v2513
        %2531 = vmatprep.subr.mxu0 0.0
        %2532 = vmatpush1.msra.mxu0 %v2514
        %2533 = vmatprep.subr.mxu0 0.0
        %2534 = vmatpush1.msra.mxu0 %v2515
        %2535 = vmatprep.subr.mxu0 0.0
        %2536 = vmatpush1.msra.mxu0 %v2516
        %2537 = vmatprep.subr.mxu0 0.0
        %2538 = vmatpush1.msra.mxu0 %v2517
        %2539 = vmatprep.subr.mxu0 0.0
        %2540 = vmatpush1.msra.mxu0 %v2518
        %2541 = vmatprep.subr.mxu0 0.0
        %2542 = vmatpush1.msra.mxu0 %v2519
        %2543 = vmatprep.subr.mxu0 0.0
        %2544 = vmatpush1.msra.mxu0 %v2520
        %2545 = vmatprep.subr.mxu0 0.0
        %2546 = vmatpush1.msra.mxu0 %v2521
        %2547 = vmatprep.subr.mxu0 0.0
        %2548 = vmatpush1.msra.mxu0 %v2522
        %2549 = vmatprep.subr.mxu0 0.0
        %2550 = vmatpush1.msra.mxu0 %v2523
        %2551 = vmatprep.subr.mxu0 0.0
        %2552 = vmatpush1.msra.mxu0 %v2524
        %2553 = vmatprep.subr.mxu0 0.0
        %2554 = vmatpush1.msra.mxu0 %v2525
        %2555 = vmatprep.subr.mxu0 0.0
        %2556 = vmatpush1.msra.mxu0 %v2526
        %2557 = vmatprep.subr.mxu0 0.0
        %2558 = vmatpush1.msra.mxu0 %v2527
        %2559 = vmatprep.subr.mxu0 0.0
        %2560 = vmatpush1.msra.mxu0 %v2528
        %2561 = vmatprep.subr.mxu0 0.0
        %2562 = vmatpush1.msra.mxu0 0.0
        %2563 = vmatprep.subr.mxu0 0.0
        %2564 = vmatpush1.msra.mxu0 0.0
        %2565 = vmatprep.subr.mxu0 0.0
        %2566 = vmatpush1.msra.mxu0 0.0
        %2567 = vmatprep.subr.mxu0 0.0
        %2568 = vmatpush1.msra.mxu0 0.0
        %2569 = vmatprep.subr.mxu0 0.0
        %2570 = vmatpush1.msra.mxu0 0.0
        %2571 = vmatprep.subr.mxu0 0.0
        %2572 = vmatpush1.msra.mxu0 0.0
        %2573 = vmatprep.subr.mxu0 0.0
        %2574 = vmatpush1.msra.mxu0 0.0
        %2575 = vmatprep.subr.mxu0 0.0
        %2576 = vmatpush1.msra.mxu0 0.0
        %2577 = vmatprep.subr.mxu0 0.0
        %2578 = vmatpush1.msra.mxu0 0.0
        %2579 = vmatprep.subr.mxu0 0.0
        %2580 = vmatpush1.msra.mxu0 0.0
        %2581 = vmatprep.subr.mxu0 0.0
        %2582 = vmatpush1.msra.mxu0 0.0
        %2583 = vmatprep.subr.mxu0 0.0
        %2584 = vmatpush1.msra.mxu0 0.0
        %2585 = vmatprep.subr.mxu0 0.0
        %2586 = vmatpush1.msra.mxu0 0.0
        %2587 = vmatprep.subr.mxu0 0.0
        %2588 = vmatpush1.msra.mxu0 0.0
        %2589 = vmatprep.subr.mxu0 0.0
        %2590 = vmatpush1.msra.mxu0 0.0
        %2591 = vmatprep.subr.mxu0 0.0
        %2592 = vmatpush1.msra.mxu0 0.0
        %2593 = vmatprep.mubr.f32.mxu0 0.0
        %2594 = vmatmul.mubr.f32.gmra.mrb[0].mxu0 %v2423
        %v2595 = vpop.f32.mrb[0].mxu0
        %v2596 = vadd.f32 0.0, %v2595
        %v2597 = vpop.f32.mrb[0].mxu0
        %2598 = vmatprep.mubr.f32.mxu0 0.0
        %2599 = vmatmul.mubr.f32.gmra.mrb[0].mxu0 %v2428
        %v2600 = vpop.f32.mrb[0].mxu0
        %v2601 = vadd.f32 0.0, %v2600
        %v2602 = vpop.f32.mrb[0].mxu0
        %2603 = vmatprep.mubr.f32.mxu0 0.0
        %2604 = vmatmul.mubr.f32.gmra.mrb[0].mxu0 %v2504
        %v2605 = vpop.f32.mrb[0].mxu0
        %v2606 = vadd.f32 0.0, %v2605
        %v2607 = vpop.f32.mrb[0].mxu0
        %2608 = vmatprep.mubr.f32.mxu0 0.0
        %2609 = vmatmul.mubr.f32.gmra.mrb[0].mxu0 %v2509
        %v2610 = vpop.f32.mrb[0].mxu0
        %v2611 = vadd.f32 0.0, %v2610
        %v2612 = vpop.f32.mrb[0].mxu0
        %2613 = vdwg.mxu0
        %2614 = vmatprep.subr.mxu0 0.0
        %2615 = vmatpush1.msra.mxu0 %v2140
        %2616 = vmatprep.subr.mxu0 0.0
        %2617 = vmatpush1.msra.mxu0 %v2141
        %2618 = vmatprep.subr.mxu0 0.0
        %2619 = vmatpush1.msra.mxu0 %v2142
        %2620 = vmatprep.subr.mxu0 0.0
        %2621 = vmatpush1.msra.mxu0 %v2143
        %2622 = vmatprep.subr.mxu0 0.0
        %2623 = vmatpush1.msra.mxu0 %v2144
        %2624 = vmatprep.subr.mxu0 0.0
        %2625 = vmatpush1.msra.mxu0 %v2145
        %2626 = vmatprep.subr.mxu0 0.0
        %2627 = vmatpush1.msra.mxu0 %v2146
        %2628 = vmatprep.subr.mxu0 0.0
        %2629 = vmatpush1.msra.mxu0 %v2147
        %2630 = vmatprep.subr.mxu0 0.0
        %2631 = vmatpush1.msra.mxu0 %v2148
        %2632 = vmatprep.subr.mxu0 0.0
        %2633 = vmatpush1.msra.mxu0 %v2149
        %2634 = vmatprep.subr.mxu0 0.0
        %2635 = vmatpush1.msra.mxu0 %v2150
        %2636 = vmatprep.subr.mxu0 0.0
        %2637 = vmatpush1.msra.mxu0 %v2151
        %2638 = vmatprep.subr.mxu0 0.0
        %2639 = vmatpush1.msra.mxu0 %v2152
        %2640 = vmatprep.subr.mxu0 0.0
        %2641 = vmatpush1.msra.mxu0 %v2153
        %2642 = vmatprep.subr.mxu0 0.0
        %2643 = vmatpush1.msra.mxu0 %v2154
        %2644 = vmatprep.subr.mxu0 0.0
        %2645 = vmatpush1.msra.mxu0 %v2155
        %2646 = vmatprep.subr.mxu0 0.0
        %2647 = vmatpush1.msra.mxu0 0.0
        %2648 = vmatprep.subr.mxu0 0.0
        %2649 = vmatpush1.msra.mxu0 0.0
        %2650 = vmatprep.subr.mxu0 0.0
        %2651 = vmatpush1.msra.mxu0 0.0
        %2652 = vmatprep.subr.mxu0 0.0
        %2653 = vmatpush1.msra.mxu0 0.0
        %2654 = vmatprep.subr.mxu0 0.0
        %2655 = vmatpush1.msra.mxu0 0.0
        %2656 = vmatprep.subr.mxu0 0.0
        %2657 = vmatpush1.msra.mxu0 0.0
        %2658 = vmatprep.subr.mxu0 0.0
        %2659 = vmatpush1.msra.mxu0 0.0
        %2660 = vmatprep.subr.mxu0 0.0
        %2661 = vmatpush1.msra.mxu0 0.0
        %2662 = vmatprep.subr.mxu0 0.0
        %2663 = vmatpush1.msra.mxu0 0.0
        %2664 = vmatprep.subr.mxu0 0.0
        %2665 = vmatpush1.msra.mxu0 0.0
        %2666 = vmatprep.subr.mxu0 0.0
        %2667 = vmatpush1.msra.mxu0 0.0
        %2668 = vmatprep.subr.mxu0 0.0
        %2669 = vmatpush1.msra.mxu0 0.0
        %2670 = vmatprep.subr.mxu0 0.0
        %2671 = vmatpush1.msra.mxu0 0.0
        %2672 = vmatprep.subr.mxu0 0.0
        %2673 = vmatpush1.msra.mxu0 0.0
        %2674 = vmatprep.subr.mxu0 0.0
        %2675 = vmatpush1.msra.mxu0 0.0
        %2676 = vmatprep.subr.mxu0 0.0
        %2677 = vmatpush1.msra.mxu0 0.0
        %2678 = vmatprep.mubr.f32.mxu0 0.0
        %2679 = vmatmul.mubr.f32.gmra.mrb[0].mxu0 %v2051
        %v2680 = vpop.f32.mrb[0].mxu0
        %v2681 = vadd.f32 %v2596, %v2680
        %v2682 = vpop.f32.mrb[0].mxu0
        %2683 = vmatprep.mubr.f32.mxu0 0.0
        %2684 = vmatmul.mubr.f32.gmra.mrb[0].mxu0 %v2056
        %v2685 = vpop.f32.mrb[0].mxu0
        %v2686 = vadd.f32 %v2601, %v2685
        %v2687 = vpop.f32.mrb[0].mxu0
        %2688 = vmatprep.mubr.f32.mxu0 0.0
        %2689 = vmatmul.mubr.f32.gmra.mrb[0].mxu0 %v2132
        %v2690 = vpop.f32.mrb[0].mxu0
        %v2691 = vadd.f32 %v2606, %v2690
        %v2692 = vpop.f32.mrb[0].mxu0
        %2693 = vmatprep.mubr.f32.mxu0 0.0
        %2694 = vmatmul.mubr.f32.gmra.mrb[0].mxu0 %v2137
        %v2695 = vpop.f32.mrb[0].mxu0
        %v2696 = vadd.f32 %v2611, %v2695
        %v2697 = vpop.f32.mrb[0].mxu0
        %2698 = vdwg.mxu0
        %2699 = vmatprep.subr.mxu0 0.0
        %2700 = vmatpush1.xpose.msra.mxu0 %v1583
        %2701 = vmatprep.subr.mxu0 0.0
        %2702 = vmatpush1.xpose.msra.mxu0 %v1589
        %2703 = vmatprep.subr.mxu0 0.0
        %2704 = vmatpush1.xpose.msra.mxu0 0.0
        %2705 = vmatprep.subr.mxu0 0.0
        %2706 = vmatpush1.xpose.msra.mxu0 0.0
        %2707 = vmatprep.subr.mxu0 0.0
        %2708 = vmatpush1.xpose.msra.mxu0 0.0
        %2709 = vmatprep.subr.mxu0 0.0
        %2710 = vmatpush1.xpose.msra.mxu0 0.0
        %2711 = vmatprep.subr.mxu0 0.0
        %2712 = vmatpush1.xpose.msra.mxu0 0.0
        %2713 = vmatprep.subr.mxu0 0.0
        %2714 = vmatpush1.xpose.msra.mxu0 0.0
        %2715 = vmatprep.subr.mxu0 0.0
        %2716 = vmatpush1.xpose.msra.mxu0 0.0
        %2717 = vmatprep.subr.mxu0 0.0
        %2718 = vmatpush1.xpose.msra.mxu0 0.0
        %2719 = vmatprep.subr.mxu0 0.0
        %2720 = vmatpush1.xpose.msra.mxu0 0.0
        %2721 = vmatprep.subr.mxu0 0.0
        %2722 = vmatpush1.xpose.msra.mxu0 0.0
        %2723 = vmatprep.subr.mxu0 0.0
        %2724 = vmatpush1.xpose.msra.mxu0 0.0
        %2725 = vmatprep.subr.mxu0 0.0
        %2726 = vmatpush1.xpose.msra.mxu0 0.0
        %2727 = vmatprep.subr.mxu0 0.0
        %2728 = vmatpush1.xpose.msra.mxu0 0.0
        %2729 = vmatprep.subr.mxu0 0.0
        %2730 = vmatpush1.xpose.msra.mxu0 0.0
        %2731 = vmatprep.subr.mxu0 0.0
        %2732 = vmatpush1.xpose.msra.mxu0 0.0
        %2733 = vmatprep.subr.mxu0 0.0
        %2734 = vmatpush1.xpose.msra.mxu0 0.0
        %2735 = vmatprep.subr.mxu0 0.0
        %2736 = vmatpush1.xpose.msra.mxu0 0.0
        %2737 = vmatprep.subr.mxu0 0.0
        %2738 = vmatpush1.xpose.msra.mxu0 0.0
        %2739 = vmatprep.subr.mxu0 0.0
        %2740 = vmatpush1.xpose.msra.mxu0 0.0
        %2741 = vmatprep.subr.mxu0 0.0
        %2742 = vmatpush1.xpose.msra.mxu0 0.0
        %2743 = vmatprep.subr.mxu0 0.0
        %2744 = vmatpush1.xpose.msra.mxu0 0.0
        %2745 = vmatprep.subr.mxu0 0.0
        %2746 = vmatpush1.xpose.msra.mxu0 0.0
        %2747 = vmatprep.subr.mxu0 0.0
        %2748 = vmatpush1.xpose.msra.mxu0 0.0
        %2749 = vmatprep.subr.mxu0 0.0
        %2750 = vmatpush1.xpose.msra.mxu0 0.0
        %2751 = vmatprep.subr.mxu0 0.0
        %2752 = vmatpush1.xpose.msra.mxu0 0.0
        %2753 = vmatprep.subr.mxu0 0.0
        %2754 = vmatpush1.xpose.msra.mxu0 0.0
        %2755 = vmatprep.subr.mxu0 0.0
        %2756 = vmatpush1.xpose.msra.mxu0 0.0
        %2757 = vmatprep.subr.mxu0 0.0
        %2758 = vmatpush1.xpose.msra.mxu0 0.0
        %2759 = vmatprep.subr.mxu0 0.0
        %2760 = vmatpush1.xpose.msra.mxu0 0.0
        %2761 = vmatprep.subr.mxu0 0.0
        %2762 = vmatpush1.xpose.msra.mxu0 0.0
        %2763 = vmatprep.mubr.f32.mxu0 0.0
        %2764 = vmatmul.mubr.f32.gmra.mrb[0].mxu0 %v1405
        %v2765 = vpop.f32.mrb[0].mxu0
        %v2766 = vadd.f32 0.0, %v2765
        %v2767 = vpop.f32.mrb[0].mxu0
        %2768 = vmatprep.mubr.f32.mxu0 0.0
        %2769 = vmatmul.mubr.f32.gmra.mrb[0].mxu0 %v1411
        %v2770 = vpop.f32.mrb[0].mxu0
        %v2771 = vadd.f32 0.0, %v2770
        %v2772 = vpop.f32.mrb[0].mxu0
        %2773 = vdwg.mxu0
        %2774 = vmatprep.subr.mxu0 0.0
        %2775 = vmatpush1.xpose.msra.mxu0 %v1595
        %2776 = vmatprep.subr.mxu0 0.0
        %2777 = vmatpush1.xpose.msra.mxu0 %v1601
        %2778 = vmatprep.subr.mxu0 0.0
        %2779 = vmatpush1.xpose.msra.mxu0 0.0
        %2780 = vmatprep.subr.mxu0 0.0
        %2781 = vmatpush1.xpose.msra.mxu0 0.0
        %2782 = vmatprep.subr.mxu0 0.0
        %2783 = vmatpush1.xpose.msra.mxu0 0.0
        %2784 = vmatprep.subr.mxu0 0.0
        %2785 = vmatpush1.xpose.msra.mxu0 0.0
        %2786 = vmatprep.subr.mxu0 0.0
        %2787 = vmatpush1.xpose.msra.mxu0 0.0
        %2788 = vmatprep.subr.mxu0 0.0
        %2789 = vmatpush1.xpose.msra.mxu0 0.0
        %2790 = vmatprep.subr.mxu0 0.0
        %2791 = vmatpush1.xpose.msra.mxu0 0.0
        %2792 = vmatprep.subr.mxu0 0.0
        %2793 = vmatpush1.xpose.msra.mxu0 0.0
        %2794 = vmatprep.subr.mxu0 0.0
        %2795 = vmatpush1.xpose.msra.mxu0 0.0
        %2796 = vmatprep.subr.mxu0 0.0
        %2797 = vmatpush1.xpose.msra.mxu0 0.0
        %2798 = vmatprep.subr.mxu0 0.0
        %2799 = vmatpush1.xpose.msra.mxu0 0.0
        %2800 = vmatprep.subr.mxu0 0.0
        %2801 = vmatpush1.xpose.msra.mxu0 0.0
        %2802 = vmatprep.subr.mxu0 0.0
        %2803 = vmatpush1.xpose.msra.mxu0 0.0
        %2804 = vmatprep.subr.mxu0 0.0
        %2805 = vmatpush1.xpose.msra.mxu0 0.0
        %2806 = vmatprep.subr.mxu0 0.0
        %2807 = vmatpush1.xpose.msra.mxu0 0.0
        %2808 = vmatprep.subr.mxu0 0.0
        %2809 = vmatpush1.xpose.msra.mxu0 0.0
        %2810 = vmatprep.subr.mxu0 0.0
        %2811 = vmatpush1.xpose.msra.mxu0 0.0
        %2812 = vmatprep.subr.mxu0 0.0
        %2813 = vmatpush1.xpose.msra.mxu0 0.0
        %2814 = vmatprep.subr.mxu0 0.0
        %2815 = vmatpush1.xpose.msra.mxu0 0.0
        %2816 = vmatprep.subr.mxu0 0.0
        %2817 = vmatpush1.xpose.msra.mxu0 0.0
        %2818 = vmatprep.subr.mxu0 0.0
        %2819 = vmatpush1.xpose.msra.mxu0 0.0
        %2820 = vmatprep.subr.mxu0 0.0
        %2821 = vmatpush1.xpose.msra.mxu0 0.0
        %2822 = vmatprep.subr.mxu0 0.0
        %2823 = vmatpush1.xpose.msra.mxu0 0.0
        %2824 = vmatprep.subr.mxu0 0.0
        %2825 = vmatpush1.xpose.msra.mxu0 0.0
        %2826 = vmatprep.subr.mxu0 0.0
        %2827 = vmatpush1.xpose.msra.mxu0 0.0
        %2828 = vmatprep.subr.mxu0 0.0
        %2829 = vmatpush1.xpose.msra.mxu0 0.0
        %2830 = vmatprep.subr.mxu0 0.0
        %2831 = vmatpush1.xpose.msra.mxu0 0.0
        %2832 = vmatprep.subr.mxu0 0.0
        %2833 = vmatpush1.xpose.msra.mxu0 0.0
        %2834 = vmatprep.subr.mxu0 0.0
        %2835 = vmatpush1.xpose.msra.mxu0 0.0
        %2836 = vmatprep.subr.mxu0 0.0
        %2837 = vmatpush1.xpose.msra.mxu0 0.0
        %2838 = vmatprep.mubr.f32.mxu0 0.0
        %2839 = vmatmul.mubr.f32.gmra.mrb[0].mxu0 %v1417
        %v2840 = vpop.f32.mrb[0].mxu0
        %v2841 = vadd.f32 0.0, %v2840
        %v2842 = vpop.f32.mrb[0].mxu0
        %2843 = vmatprep.mubr.f32.mxu0 0.0
        %2844 = vmatmul.mubr.f32.gmra.mrb[0].mxu0 %v1423
        %v2845 = vpop.f32.mrb[0].mxu0
        %v2846 = vadd.f32 0.0, %v2845
        %v2847 = vpop.f32.mrb[0].mxu0
        %2848 = vdwg.mxu0
        %v2849 = vsel %vm1933, %v2766, -inf
        %2850 = vmax.xlane.f32.xlu0 %v2849
        %v2851 = vpop.xlane.xlu0 %2850
        %v2852 = vsel %vm1933, %v2771, -inf
        %2853 = vmax.xlane.f32.xlu0 %v2852
        %v2854 = vpop.xlane.xlu0 %2853
        %v2855 = vsel %vm1933, %v2841, -inf
        %2856 = vmax.xlane.f32.xlu0 %v2855
        %v2857 = vpop.xlane.xlu0 %2856
        %v2858 = vsel %vm1933, %v2846, -inf
        %2859 = vmax.xlane.f32.xlu0 %v2858
        %v2860 = vpop.xlane.xlu0 %2859
        %v2861 = vsub.f32 %v2766, %v2851
        %v2862 = vsub.f32 %v2771, %v2854
        %v2863 = vsub.f32 %v2841, %v2857
        %v2864 = vsub.f32 %v2846, %v2860
        %v2865 = vmul.f32 %v2861, 1.442695
        %v2866 = vpow.pop %v2865
        %v2867 = vmul.f32 %v2862, 1.442695
        %v2868 = vpow.pop %v2867
        %v2869 = vmul.f32 %v2863, 1.442695
        %v2870 = vpow.pop %v2869
        %v2871 = vmul.f32 %v2864, 1.442695
        %v2872 = vpow.pop %v2871
        %v2873 = vsel %vm1933, %v2866, 0.0
        %2874 = vadd.xlane.f32.xlu0 %v2873
        %v2875 = vpop.xlane.xlu0 %2874
        %v2876 = vsel %vm1933, %v2868, 0.0
        %2877 = vadd.xlane.f32.xlu0 %v2876
        %v2878 = vpop.xlane.xlu0 %2877
        %v2879 = vsel %vm1933, %v2870, 0.0
        %2880 = vadd.xlane.f32.xlu0 %v2879
        %v2881 = vpop.xlane.xlu0 %2880
        %v2882 = vsel %vm1933, %v2872, 0.0
        %2883 = vadd.xlane.f32.xlu0 %v2882
        %v2884 = vpop.xlane.xlu0 %2883
        %v2885 = vrcp.pop %v2875
        %v2886 = vrcp.pop %v2878
        %v2887 = vrcp.pop %v2881
        %v2888 = vrcp.pop %v2884
        %v2889 = vmul.f32 %v2866, %v2885
        %v2890 = vmul.f32 %v2868, %v2886
        %v2891 = vmul.f32 %v2870, %v2887
        %v2892 = vmul.f32 %v2872, %v2888
        %v2894 = vsel %vm1933, %v2889, 0
        %v2897 = vsel %vm1933, %v2890, 0
        %2899 = vmatprep.subr.mxu0 0.0
        %2900 = vmatpush1.msra.mxu0 %v1761
        %2901 = vmatprep.subr.mxu0 0.0
        %2902 = vmatpush1.msra.mxu0 %v1767
        %2903 = vmatprep.subr.mxu0 0.0
        %2904 = vmatpush1.msra.mxu0 0.0
        %2905 = vmatprep.subr.mxu0 0.0
        %2906 = vmatpush1.msra.mxu0 0.0
        %2907 = vmatprep.subr.mxu0 0.0
        %2908 = vmatpush1.msra.mxu0 0.0
        %2909 = vmatprep.subr.mxu0 0.0
        %2910 = vmatpush1.msra.mxu0 0.0
        %2911 = vmatprep.subr.mxu0 0.0
        %2912 = vmatpush1.msra.mxu0 0.0
        %2913 = vmatprep.subr.mxu0 0.0
        %2914 = vmatpush1.msra.mxu0 0.0
        %2915 = vmatprep.subr.mxu0 0.0
        %2916 = vmatpush1.msra.mxu0 0.0
        %2917 = vmatprep.subr.mxu0 0.0
        %2918 = vmatpush1.msra.mxu0 0.0
        %2919 = vmatprep.subr.mxu0 0.0
        %2920 = vmatpush1.msra.mxu0 0.0
        %2921 = vmatprep.subr.mxu0 0.0
        %2922 = vmatpush1.msra.mxu0 0.0
        %2923 = vmatprep.subr.mxu0 0.0
        %2924 = vmatpush1.msra.mxu0 0.0
        %2925 = vmatprep.subr.mxu0 0.0
        %2926 = vmatpush1.msra.mxu0 0.0
        %2927 = vmatprep.subr.mxu0 0.0
        %2928 = vmatpush1.msra.mxu0 0.0
        %2929 = vmatprep.subr.mxu0 0.0
        %2930 = vmatpush1.msra.mxu0 0.0
        %2931 = vmatprep.subr.mxu0 0.0
        %2932 = vmatpush1.msra.mxu0 0.0
        %2933 = vmatprep.subr.mxu0 0.0
        %2934 = vmatpush1.msra.mxu0 0.0
        %2935 = vmatprep.subr.mxu0 0.0
        %2936 = vmatpush1.msra.mxu0 0.0
        %2937 = vmatprep.subr.mxu0 0.0
        %2938 = vmatpush1.msra.mxu0 0.0
        %2939 = vmatprep.subr.mxu0 0.0
        %2940 = vmatpush1.msra.mxu0 0.0
        %2941 = vmatprep.subr.mxu0 0.0
        %2942 = vmatpush1.msra.mxu0 0.0
        %2943 = vmatprep.subr.mxu0 0.0
        %2944 = vmatpush1.msra.mxu0 0.0
        %2945 = vmatprep.subr.mxu0 0.0
        %2946 = vmatpush1.msra.mxu0 0.0
        %2947 = vmatprep.subr.mxu0 0.0
        %2948 = vmatpush1.msra.mxu0 0.0
        %2949 = vmatprep.subr.mxu0 0.0
        %2950 = vmatpush1.msra.mxu0 0.0
        %2951 = vmatprep.subr.mxu0 0.0
        %2952 = vmatpush1.msra.mxu0 0.0
        %2953 = vmatprep.subr.mxu0 0.0
        %2954 = vmatpush1.msra.mxu0 0.0
        %2955 = vmatprep.subr.mxu0 0.0
        %2956 = vmatpush1.msra.mxu0 0.0
        %2957 = vmatprep.subr.mxu0 0.0
        %2958 = vmatpush1.msra.mxu0 0.0
        %2959 = vmatprep.subr.mxu0 0.0
        %2960 = vmatpush1.msra.mxu0 0.0
        %2961 = vmatprep.subr.mxu0 0.0
        %2962 = vmatpush1.msra.mxu0 0.0
        %2963 = vmatprep.mubr.f32.mxu0 0.0
        %2964 = vmatmul.mubr.f32.gmra.mrb[0].mxu0 %v2894
        %v2965 = vpop.f32.mrb[0].mxu0
        %v2966 = vadd.f32 0.0, %v2965
        %v2967 = vpop.f32.mrb[0].mxu0
        %2968 = vmatprep.mubr.f32.mxu0 0.0
        %2969 = vmatmul.mubr.f32.gmra.mrb[0].mxu0 %v2897
        %v2970 = vpop.f32.mrb[0].mxu0
        %v2971 = vadd.f32 0.0, %v2970
        %v2972 = vpop.f32.mrb[0].mxu0
        %2973 = vdwg.mxu0
        %v2975 = vsel %vm1933, %v2891, 0
        %v2978 = vsel %vm1933, %v2892, 0
        %2980 = vmatprep.subr.mxu0 0.0
        %2981 = vmatpush1.msra.mxu0 %v1773
        %2982 = vmatprep.subr.mxu0 0.0
        %2983 = vmatpush1.msra.mxu0 %v1779
        %2984 = vmatprep.subr.mxu0 0.0
        %2985 = vmatpush1.msra.mxu0 0.0
        %2986 = vmatprep.subr.mxu0 0.0
        %2987 = vmatpush1.msra.mxu0 0.0
        %2988 = vmatprep.subr.mxu0 0.0
        %2989 = vmatpush1.msra.mxu0 0.0
        %2990 = vmatprep.subr.mxu0 0.0
        %2991 = vmatpush1.msra.mxu0 0.0
        %2992 = vmatprep.subr.mxu0 0.0
        %2993 = vmatpush1.msra.mxu0 0.0
        %2994 = vmatprep.subr.mxu0 0.0
        %2995 = vmatpush1.msra.mxu0 0.0
        %2996 = vmatprep.subr.mxu0 0.0
        %2997 = vmatpush1.msra.mxu0 0.0
        %2998 = vmatprep.subr.mxu0 0.0
        %2999 = vmatpush1.msra.mxu0 0.0
        %3000 = vmatprep.subr.mxu0 0.0
        %3001 = vmatpush1.msra.mxu0 0.0
        %3002 = vmatprep.subr.mxu0 0.0
        %3003 = vmatpush1.msra.mxu0 0.0
        %3004 = vmatprep.subr.mxu0 0.0
        %3005 = vmatpush1.msra.mxu0 0.0
        %3006 = vmatprep.subr.mxu0 0.0
        %3007 = vmatpush1.msra.mxu0 0.0
        %3008 = vmatprep.subr.mxu0 0.0
        %3009 = vmatpush1.msra.mxu0 0.0
        %3010 = vmatprep.subr.mxu0 0.0
        %3011 = vmatpush1.msra.mxu0 0.0
        %3012 = vmatprep.subr.mxu0 0.0
        %3013 = vmatpush1.msra.mxu0 0.0
        %3014 = vmatprep.subr.mxu0 0.0
        %3015 = vmatpush1.msra.mxu0 0.0
        %3016 = vmatprep.subr.mxu0 0.0
        %3017 = vmatpush1.msra.mxu0 0.0
        %3018 = vmatprep.subr.mxu0 0.0
        %3019 = vmatpush1.msra.mxu0 0.0
        %3020 = vmatprep.subr.mxu0 0.0
        %3021 = vmatpush1.msra.mxu0 0.0
        %3022 = vmatprep.subr.mxu0 0.0
        %3023 = vmatpush1.msra.mxu0 0.0
        %3024 = vmatprep.subr.mxu0 0.0
        %3025 = vmatpush1.msra.mxu0 0.0
        %3026 = vmatprep.subr.mxu0 0.0
        %3027 = vmatpush1.msra.mxu0 0.0
        %3028 = vmatprep.subr.mxu0 0.0
        %3029 = vmatpush1.msra.mxu0 0.0
        %3030 = vmatprep.subr.mxu0 0.0
        %3031 = vmatpush1.msra.mxu0 0.0
        %3032 = vmatprep.subr.mxu0 0.0
        %3033 = vmatpush1.msra.mxu0 0.0
        %3034 = vmatprep.subr.mxu0 0.0
        %3035 = vmatpush1.msra.mxu0 0.0
        %3036 = vmatprep.subr.mxu0 0.0
        %3037 = vmatpush1.msra.mxu0 0.0
        %3038 = vmatprep.subr.mxu0 0.0
        %3039 = vmatpush1.msra.mxu0 0.0
        %3040 = vmatprep.subr.mxu0 0.0
        %3041 = vmatpush1.msra.mxu0 0.0
        %3042 = vmatprep.subr.mxu0 0.0
        %3043 = vmatpush1.msra.mxu0 0.0
        %3044 = vmatprep.mubr.f32.mxu0 0.0
        %3045 = vmatmul.mubr.f32.gmra.mrb[0].mxu0 %v2975
        %v3046 = vpop.f32.mrb[0].mxu0
        %v3047 = vadd.f32 0.0, %v3046
        %v3048 = vpop.f32.mrb[0].mxu0
        %3049 = vmatprep.mubr.f32.mxu0 0.0
        %3050 = vmatmul.mubr.f32.gmra.mrb[0].mxu0 %v2978
        %v3051 = vpop.f32.mrb[0].mxu0
        %v3052 = vadd.f32 0.0, %v3051
        %v3053 = vpop.f32.mrb[0].mxu0
        %3054 = vdwg.mxu0
        %s3055 = scalar_lea.vmem %s740, 256 [#allocation12]
        %v3056 = vld [vmem:[%s3055] sm:$0xff]
        %v3057 = vld [vmem:[%s3055 + $0x8] sm:$0xff]
        %v3058 = vld [vmem:[%s3055 + $0x10] sm:$0xff]
        %v3059 = vld [vmem:[%s3055 + $0x18] sm:$0xff]
        %v3060 = vld [vmem:[%s3055 + $0x20] sm:$0xff]
        %v3061 = vld [vmem:[%s3055 + $0x28] sm:$0xff]
        %v3062 = vld [vmem:[%s3055 + $0x30] sm:$0xff]
        %v3063 = vld [vmem:[%s3055 + $0x38] sm:$0xff]
        %v3064 = vld [vmem:[%s3055 + $0x40] sm:$0xff]
        %v3065 = vld [vmem:[%s3055 + $0x48] sm:$0xff]
        %v3066 = vld [vmem:[%s3055 + $0x50] sm:$0xff]
        %v3067 = vld [vmem:[%s3055 + $0x58] sm:$0xff]
        %v3068 = vld [vmem:[%s3055 + $0x60] sm:$0xff]
        %v3069 = vld [vmem:[%s3055 + $0x68] sm:$0xff]
        %v3070 = vld [vmem:[%s3055 + $0x70] sm:$0xff]
        %v3071 = vld [vmem:[%s3055 + $0x78] sm:$0xff]
        %3072 = vmatprep.subr.mxu0 0.0
        %3073 = vmatpush1.msra.mxu0 %v3056
        %3074 = vmatprep.subr.mxu0 0.0
        %3075 = vmatpush1.msra.mxu0 %v3057
        %3076 = vmatprep.subr.mxu0 0.0
        %3077 = vmatpush1.msra.mxu0 %v3058
        %3078 = vmatprep.subr.mxu0 0.0
        %3079 = vmatpush1.msra.mxu0 %v3059
        %3080 = vmatprep.subr.mxu0 0.0
        %3081 = vmatpush1.msra.mxu0 %v3060
        %3082 = vmatprep.subr.mxu0 0.0
        %3083 = vmatpush1.msra.mxu0 %v3061
        %3084 = vmatprep.subr.mxu0 0.0
        %3085 = vmatpush1.msra.mxu0 %v3062
        %3086 = vmatprep.subr.mxu0 0.0
        %3087 = vmatpush1.msra.mxu0 %v3063
        %3088 = vmatprep.subr.mxu0 0.0
        %3089 = vmatpush1.msra.mxu0 %v3064
        %3090 = vmatprep.subr.mxu0 0.0
        %3091 = vmatpush1.msra.mxu0 %v3065
        %3092 = vmatprep.subr.mxu0 0.0
        %3093 = vmatpush1.msra.mxu0 %v3066
        %3094 = vmatprep.subr.mxu0 0.0
        %3095 = vmatpush1.msra.mxu0 %v3067
        %3096 = vmatprep.subr.mxu0 0.0
        %3097 = vmatpush1.msra.mxu0 %v3068
        %3098 = vmatprep.subr.mxu0 0.0
        %3099 = vmatpush1.msra.mxu0 %v3069
        %3100 = vmatprep.subr.mxu0 0.0
        %3101 = vmatpush1.msra.mxu0 %v3070
        %3102 = vmatprep.subr.mxu0 0.0
        %3103 = vmatpush1.msra.mxu0 %v3071
        %3104 = vmatprep.subr.mxu0 0.0
        %3105 = vmatpush1.msra.mxu0 0.0
        %3106 = vmatprep.subr.mxu0 0.0
        %3107 = vmatpush1.msra.mxu0 0.0
        %3108 = vmatprep.subr.mxu0 0.0
        %3109 = vmatpush1.msra.mxu0 0.0
        %3110 = vmatprep.subr.mxu0 0.0
        %3111 = vmatpush1.msra.mxu0 0.0
        %3112 = vmatprep.subr.mxu0 0.0
        %3113 = vmatpush1.msra.mxu0 0.0
        %3114 = vmatprep.subr.mxu0 0.0
        %3115 = vmatpush1.msra.mxu0 0.0
        %3116 = vmatprep.subr.mxu0 0.0
        %3117 = vmatpush1.msra.mxu0 0.0
        %3118 = vmatprep.subr.mxu0 0.0
        %3119 = vmatpush1.msra.mxu0 0.0
        %3120 = vmatprep.subr.mxu0 0.0
        %3121 = vmatpush1.msra.mxu0 0.0
        %3122 = vmatprep.subr.mxu0 0.0
        %3123 = vmatpush1.msra.mxu0 0.0
        %3124 = vmatprep.subr.mxu0 0.0
        %3125 = vmatpush1.msra.mxu0 0.0
        %3126 = vmatprep.subr.mxu0 0.0
        %3127 = vmatpush1.msra.mxu0 0.0
        %3128 = vmatprep.subr.mxu0 0.0
        %3129 = vmatpush1.msra.mxu0 0.0
        %3130 = vmatprep.subr.mxu0 0.0
        %3131 = vmatpush1.msra.mxu0 0.0
        %3132 = vmatprep.subr.mxu0 0.0
        %3133 = vmatpush1.msra.mxu0 0.0
        %3134 = vmatprep.subr.mxu0 0.0
        %3135 = vmatpush1.msra.mxu0 0.0
        %3136 = vmatprep.mubr.f32.mxu0 0.0
        %3137 = vmatmul.mubr.f32.gmra.mrb[0].mxu0 %v2966
        %v3138 = vpop.f32.mrb[0].mxu0
        %v3139 = vadd.f32 0.0, %v3138
        %v3140 = vpop.f32.mrb[0].mxu0
        %3141 = vmatprep.mubr.f32.mxu0 0.0
        %3142 = vmatmul.mubr.f32.gmra.mrb[0].mxu0 %v2971
        %v3143 = vpop.f32.mrb[0].mxu0
        %v3144 = vadd.f32 0.0, %v3143
        %v3145 = vpop.f32.mrb[0].mxu0
        %3146 = vmatprep.mubr.f32.mxu0 0.0
        %3147 = vmatmul.mubr.f32.gmra.mrb[0].mxu0 %v3047
        %v3148 = vpop.f32.mrb[0].mxu0
        %v3149 = vadd.f32 0.0, %v3148
        %v3150 = vpop.f32.mrb[0].mxu0
        %3151 = vmatprep.mubr.f32.mxu0 0.0
        %3152 = vmatmul.mubr.f32.gmra.mrb[0].mxu0 %v3052
        %v3153 = vpop.f32.mrb[0].mxu0
        %v3154 = vadd.f32 0.0, %v3153
        %v3155 = vpop.f32.mrb[0].mxu0
        %3156 = vdwg.mxu0
        %v3157 = vadd.f32 %v2681, %v3139
        %v3158 = vadd.f32 %v2686, %v3144
        %v3159 = vadd.f32 %v2691, %v3149
        %v3160 = vadd.f32 %v2696, %v3154
        %3161 = vmatprep.subr.mxu0 0.0
        %3162 = vmatpush1.xpose.msra.mxu0 %v1585
        %3163 = vmatprep.subr.mxu0 0.0
        %3164 = vmatpush1.xpose.msra.mxu0 %v1591
        %3165 = vmatprep.subr.mxu0 0.0
        %3166 = vmatpush1.xpose.msra.mxu0 0.0
        %3167 = vmatprep.subr.mxu0 0.0
        %3168 = vmatpush1.xpose.msra.mxu0 0.0
        %3169 = vmatprep.subr.mxu0 0.0
        %3170 = vmatpush1.xpose.msra.mxu0 0.0
        %3171 = vmatprep.subr.mxu0 0.0
        %3172 = vmatpush1.xpose.msra.mxu0 0.0
        %3173 = vmatprep.subr.mxu0 0.0
        %3174 = vmatpush1.xpose.msra.mxu0 0.0
        %3175 = vmatprep.subr.mxu0 0.0
        %3176 = vmatpush1.xpose.msra.mxu0 0.0
        %3177 = vmatprep.subr.mxu0 0.0
        %3178 = vmatpush1.xpose.msra.mxu0 0.0
        %3179 = vmatprep.subr.mxu0 0.0
        %3180 = vmatpush1.xpose.msra.mxu0 0.0
        %3181 = vmatprep.subr.mxu0 0.0
        %3182 = vmatpush1.xpose.msra.mxu0 0.0
        %3183 = vmatprep.subr.mxu0 0.0
        %3184 = vmatpush1.xpose.msra.mxu0 0.0
        %3185 = vmatprep.subr.mxu0 0.0
        %3186 = vmatpush1.xpose.msra.mxu0 0.0
        %3187 = vmatprep.subr.mxu0 0.0
        %3188 = vmatpush1.xpose.msra.mxu0 0.0
        %3189 = vmatprep.subr.mxu0 0.0
        %3190 = vmatpush1.xpose.msra.mxu0 0.0
        %3191 = vmatprep.subr.mxu0 0.0
        %3192 = vmatpush1.xpose.msra.mxu0 0.0
        %3193 = vmatprep.subr.mxu0 0.0
        %3194 = vmatpush1.xpose.msra.mxu0 0.0
        %3195 = vmatprep.subr.mxu0 0.0
        %3196 = vmatpush1.xpose.msra.mxu0 0.0
        %3197 = vmatprep.subr.mxu0 0.0
        %3198 = vmatpush1.xpose.msra.mxu0 0.0
        %3199 = vmatprep.subr.mxu0 0.0
        %3200 = vmatpush1.xpose.msra.mxu0 0.0
        %3201 = vmatprep.subr.mxu0 0.0
        %3202 = vmatpush1.xpose.msra.mxu0 0.0
        %3203 = vmatprep.subr.mxu0 0.0
        %3204 = vmatpush1.xpose.msra.mxu0 0.0
        %3205 = vmatprep.subr.mxu0 0.0
        %3206 = vmatpush1.xpose.msra.mxu0 0.0
        %3207 = vmatprep.subr.mxu0 0.0
        %3208 = vmatpush1.xpose.msra.mxu0 0.0
        %3209 = vmatprep.subr.mxu0 0.0
        %3210 = vmatpush1.xpose.msra.mxu0 0.0
        %3211 = vmatprep.subr.mxu0 0.0
        %3212 = vmatpush1.xpose.msra.mxu0 0.0
        %3213 = vmatprep.subr.mxu0 0.0
        %3214 = vmatpush1.xpose.msra.mxu0 0.0
        %3215 = vmatprep.subr.mxu0 0.0
        %3216 = vmatpush1.xpose.msra.mxu0 0.0
        %3217 = vmatprep.subr.mxu0 0.0
        %3218 = vmatpush1.xpose.msra.mxu0 0.0
        %3219 = vmatprep.subr.mxu0 0.0
        %3220 = vmatpush1.xpose.msra.mxu0 0.0
        %3221 = vmatprep.subr.mxu0 0.0
        %3222 = vmatpush1.xpose.msra.mxu0 0.0
        %3223 = vmatprep.subr.mxu0 0.0
        %3224 = vmatpush1.xpose.msra.mxu0 0.0
        %3225 = vmatprep.mubr.f32.mxu0 0.0
        %3226 = vmatmul.mubr.f32.gmra.mrb[0].mxu0 %v1407
        %v3227 = vpop.f32.mrb[0].mxu0
        %v3228 = vadd.f32 0.0, %v3227
        %v3229 = vpop.f32.mrb[0].mxu0
        %3230 = vmatprep.mubr.f32.mxu0 0.0
        %3231 = vmatmul.mubr.f32.gmra.mrb[0].mxu0 %v1413
        %v3232 = vpop.f32.mrb[0].mxu0
        %v3233 = vadd.f32 0.0, %v3232
        %v3234 = vpop.f32.mrb[0].mxu0
        %3235 = vdwg.mxu0
        %3236 = vmatprep.subr.mxu0 0.0
        %3237 = vmatpush1.xpose.msra.mxu0 %v1597
        %3238 = vmatprep.subr.mxu0 0.0
        %3239 = vmatpush1.xpose.msra.mxu0 %v1603
        %3240 = vmatprep.subr.mxu0 0.0
        %3241 = vmatpush1.xpose.msra.mxu0 0.0
        %3242 = vmatprep.subr.mxu0 0.0
        %3243 = vmatpush1.xpose.msra.mxu0 0.0
        %3244 = vmatprep.subr.mxu0 0.0
        %3245 = vmatpush1.xpose.msra.mxu0 0.0
        %3246 = vmatprep.subr.mxu0 0.0
        %3247 = vmatpush1.xpose.msra.mxu0 0.0
        %3248 = vmatprep.subr.mxu0 0.0
        %3249 = vmatpush1.xpose.msra.mxu0 0.0
        %3250 = vmatprep.subr.mxu0 0.0
        %3251 = vmatpush1.xpose.msra.mxu0 0.0
        %3252 = vmatprep.subr.mxu0 0.0
        %3253 = vmatpush1.xpose.msra.mxu0 0.0
        %3254 = vmatprep.subr.mxu0 0.0
        %3255 = vmatpush1.xpose.msra.mxu0 0.0
        %3256 = vmatprep.subr.mxu0 0.0
        %3257 = vmatpush1.xpose.msra.mxu0 0.0
        %3258 = vmatprep.subr.mxu0 0.0
        %3259 = vmatpush1.xpose.msra.mxu0 0.0
        %3260 = vmatprep.subr.mxu0 0.0
        %3261 = vmatpush1.xpose.msra.mxu0 0.0
        %3262 = vmatprep.subr.mxu0 0.0
        %3263 = vmatpush1.xpose.msra.mxu0 0.0
        %3264 = vmatprep.subr.mxu0 0.0
        %3265 = vmatpush1.xpose.msra.mxu0 0.0
        %3266 = vmatprep.subr.mxu0 0.0
        %3267 = vmatpush1.xpose.msra.mxu0 0.0
        %3268 = vmatprep.subr.mxu0 0.0
        %3269 = vmatpush1.xpose.msra.mxu0 0.0
        %3270 = vmatprep.subr.mxu0 0.0
        %3271 = vmatpush1.xpose.msra.mxu0 0.0
        %3272 = vmatprep.subr.mxu0 0.0
        %3273 = vmatpush1.xpose.msra.mxu0 0.0
        %3274 = vmatprep.subr.mxu0 0.0
        %3275 = vmatpush1.xpose.msra.mxu0 0.0
        %3276 = vmatprep.subr.mxu0 0.0
        %3277 = vmatpush1.xpose.msra.mxu0 0.0
        %3278 = vmatprep.subr.mxu0 0.0
        %3279 = vmatpush1.xpose.msra.mxu0 0.0
        %3280 = vmatprep.subr.mxu0 0.0
        %3281 = vmatpush1.xpose.msra.mxu0 0.0
        %3282 = vmatprep.subr.mxu0 0.0
        %3283 = vmatpush1.xpose.msra.mxu0 0.0
        %3284 = vmatprep.subr.mxu0 0.0
        %3285 = vmatpush1.xpose.msra.mxu0 0.0
        %3286 = vmatprep.subr.mxu0 0.0
        %3287 = vmatpush1.xpose.msra.mxu0 0.0
        %3288 = vmatprep.subr.mxu0 0.0
        %3289 = vmatpush1.xpose.msra.mxu0 0.0
        %3290 = vmatprep.subr.mxu0 0.0
        %3291 = vmatpush1.xpose.msra.mxu0 0.0
        %3292 = vmatprep.subr.mxu0 0.0
        %3293 = vmatpush1.xpose.msra.mxu0 0.0
        %3294 = vmatprep.subr.mxu0 0.0
        %3295 = vmatpush1.xpose.msra.mxu0 0.0
        %3296 = vmatprep.subr.mxu0 0.0
        %3297 = vmatpush1.xpose.msra.mxu0 0.0
        %3298 = vmatprep.subr.mxu0 0.0
        %3299 = vmatpush1.xpose.msra.mxu0 0.0
        %3300 = vmatprep.mubr.f32.mxu0 0.0
        %3301 = vmatmul.mubr.f32.gmra.mrb[0].mxu0 %v1419
        %v3302 = vpop.f32.mrb[0].mxu0
        %v3303 = vadd.f32 0.0, %v3302
        %v3304 = vpop.f32.mrb[0].mxu0
        %3305 = vmatprep.mubr.f32.mxu0 0.0
        %3306 = vmatmul.mubr.f32.gmra.mrb[0].mxu0 %v1425
        %v3307 = vpop.f32.mrb[0].mxu0
        %v3308 = vadd.f32 0.0, %v3307
        %v3309 = vpop.f32.mrb[0].mxu0
        %3310 = vdwg.mxu0
        %v3311 = vsel %vm1933, %v3228, -inf
        %3312 = vmax.xlane.f32.xlu0 %v3311
        %v3313 = vpop.xlane.xlu0 %3312
        %v3314 = vsel %vm1933, %v3233, -inf
        %3315 = vmax.xlane.f32.xlu0 %v3314
        %v3316 = vpop.xlane.xlu0 %3315
        %v3317 = vsel %vm1933, %v3303, -inf
        %3318 = vmax.xlane.f32.xlu0 %v3317
        %v3319 = vpop.xlane.xlu0 %3318
        %v3320 = vsel %vm1933, %v3308, -inf
        %3321 = vmax.xlane.f32.xlu0 %v3320
        %v3322 = vpop.xlane.xlu0 %3321
        %v3323 = vsub.f32 %v3228, %v3313
        %v3324 = vsub.f32 %v3233, %v3316
        %v3325 = vsub.f32 %v3303, %v3319
        %v3326 = vsub.f32 %v3308, %v3322
        %v3327 = vmul.f32 %v3323, 1.442695
        %v3328 = vpow.pop %v3327
        %v3329 = vmul.f32 %v3324, 1.442695
        %v3330 = vpow.pop %v3329
        %v3331 = vmul.f32 %v3325, 1.442695
        %v3332 = vpow.pop %v3331
        %v3333 = vmul.f32 %v3326, 1.442695
        %v3334 = vpow.pop %v3333
        %v3335 = vsel %vm1933, %v3328, 0.0
        %3336 = vadd.xlane.f32.xlu0 %v3335
        %v3337 = vpop.xlane.xlu0 %3336
        %v3338 = vsel %vm1933, %v3330, 0.0
        %3339 = vadd.xlane.f32.xlu0 %v3338
        %v3340 = vpop.xlane.xlu0 %3339
        %v3341 = vsel %vm1933, %v3332, 0.0
        %3342 = vadd.xlane.f32.xlu0 %v3341
        %v3343 = vpop.xlane.xlu0 %3342
        %v3344 = vsel %vm1933, %v3334, 0.0
        %3345 = vadd.xlane.f32.xlu0 %v3344
        %v3346 = vpop.xlane.xlu0 %3345
        %v3347 = vrcp.pop %v3337
        %v3348 = vrcp.pop %v3340
        %v3349 = vrcp.pop %v3343
        %v3350 = vrcp.pop %v3346
        %v3351 = vmul.f32 %v3328, %v3347
        %v3352 = vmul.f32 %v3330, %v3348
        %v3353 = vmul.f32 %v3332, %v3349
        %v3354 = vmul.f32 %v3334, %v3350
        %v3356 = vsel %vm1933, %v3351, 0
        %v3359 = vsel %vm1933, %v3352, 0
        %3361 = vmatprep.subr.mxu0 0.0
        %3362 = vmatpush1.msra.mxu0 %v1763
        %3363 = vmatprep.subr.mxu0 0.0
        %3364 = vmatpush1.msra.mxu0 %v1769
        %3365 = vmatprep.subr.mxu0 0.0
        %3366 = vmatpush1.msra.mxu0 0.0
        %3367 = vmatprep.subr.mxu0 0.0
        %3368 = vmatpush1.msra.mxu0 0.0
        %3369 = vmatprep.subr.mxu0 0.0
        %3370 = vmatpush1.msra.mxu0 0.0
        %3371 = vmatprep.subr.mxu0 0.0
        %3372 = vmatpush1.msra.mxu0 0.0
        %3373 = vmatprep.subr.mxu0 0.0
        %3374 = vmatpush1.msra.mxu0 0.0
        %3375 = vmatprep.subr.mxu0 0.0
        %3376 = vmatpush1.msra.mxu0 0.0
        %3377 = vmatprep.subr.mxu0 0.0
        %3378 = vmatpush1.msra.mxu0 0.0
        %3379 = vmatprep.subr.mxu0 0.0
        %3380 = vmatpush1.msra.mxu0 0.0
        %3381 = vmatprep.subr.mxu0 0.0
        %3382 = vmatpush1.msra.mxu0 0.0
        %3383 = vmatprep.subr.mxu0 0.0
        %3384 = vmatpush1.msra.mxu0 0.0
        %3385 = vmatprep.subr.mxu0 0.0
        %3386 = vmatpush1.msra.mxu0 0.0
        %3387 = vmatprep.subr.mxu0 0.0
        %3388 = vmatpush1.msra.mxu0 0.0
        %3389 = vmatprep.subr.mxu0 0.0
        %3390 = vmatpush1.msra.mxu0 0.0
        %3391 = vmatprep.subr.mxu0 0.0
        %3392 = vmatpush1.msra.mxu0 0.0
        %3393 = vmatprep.subr.mxu0 0.0
        %3394 = vmatpush1.msra.mxu0 0.0
        %3395 = vmatprep.subr.mxu0 0.0
        %3396 = vmatpush1.msra.mxu0 0.0
        %3397 = vmatprep.subr.mxu0 0.0
        %3398 = vmatpush1.msra.mxu0 0.0
        %3399 = vmatprep.subr.mxu0 0.0
        %3400 = vmatpush1.msra.mxu0 0.0
        %3401 = vmatprep.subr.mxu0 0.0
        %3402 = vmatpush1.msra.mxu0 0.0
        %3403 = vmatprep.subr.mxu0 0.0
        %3404 = vmatpush1.msra.mxu0 0.0
        %3405 = vmatprep.subr.mxu0 0.0
        %3406 = vmatpush1.msra.mxu0 0.0
        %3407 = vmatprep.subr.mxu0 0.0
        %3408 = vmatpush1.msra.mxu0 0.0
        %3409 = vmatprep.subr.mxu0 0.0
        %3410 = vmatpush1.msra.mxu0 0.0
        %3411 = vmatprep.subr.mxu0 0.0
        %3412 = vmatpush1.msra.mxu0 0.0
        %3413 = vmatprep.subr.mxu0 0.0
        %3414 = vmatpush1.msra.mxu0 0.0
        %3415 = vmatprep.subr.mxu0 0.0
        %3416 = vmatpush1.msra.mxu0 0.0
        %3417 = vmatprep.subr.mxu0 0.0
        %3418 = vmatpush1.msra.mxu0 0.0
        %3419 = vmatprep.subr.mxu0 0.0
        %3420 = vmatpush1.msra.mxu0 0.0
        %3421 = vmatprep.subr.mxu0 0.0
        %3422 = vmatpush1.msra.mxu0 0.0
        %3423 = vmatprep.subr.mxu0 0.0
        %3424 = vmatpush1.msra.mxu0 0.0
        %3425 = vmatprep.mubr.f32.mxu0 0.0
        %3426 = vmatmul.mubr.f32.gmra.mrb[0].mxu0 %v3356
        %v3427 = vpop.f32.mrb[0].mxu0
        %v3428 = vadd.f32 0.0, %v3427
        %v3429 = vpop.f32.mrb[0].mxu0
        %3430 = vmatprep.mubr.f32.mxu0 0.0
        %3431 = vmatmul.mubr.f32.gmra.mrb[0].mxu0 %v3359
        %v3432 = vpop.f32.mrb[0].mxu0
        %v3433 = vadd.f32 0.0, %v3432
        %v3434 = vpop.f32.mrb[0].mxu0
        %3435 = vdwg.mxu0
        %v3437 = vsel %vm1933, %v3353, 0
        %v3440 = vsel %vm1933, %v3354, 0
        %3442 = vmatprep.subr.mxu0 0.0
        %3443 = vmatpush1.msra.mxu0 %v1775
        %3444 = vmatprep.subr.mxu0 0.0
        %3445 = vmatpush1.msra.mxu0 %v1781
        %3446 = vmatprep.subr.mxu0 0.0
        %3447 = vmatpush1.msra.mxu0 0.0
        %3448 = vmatprep.subr.mxu0 0.0
        %3449 = vmatpush1.msra.mxu0 0.0
        %3450 = vmatprep.subr.mxu0 0.0
        %3451 = vmatpush1.msra.mxu0 0.0
        %3452 = vmatprep.subr.mxu0 0.0
        %3453 = vmatpush1.msra.mxu0 0.0
        %3454 = vmatprep.subr.mxu0 0.0
        %3455 = vmatpush1.msra.mxu0 0.0
        %3456 = vmatprep.subr.mxu0 0.0
        %3457 = vmatpush1.msra.mxu0 0.0
        %3458 = vmatprep.subr.mxu0 0.0
        %3459 = vmatpush1.msra.mxu0 0.0
        %3460 = vmatprep.subr.mxu0 0.0
        %3461 = vmatpush1.msra.mxu0 0.0
        %3462 = vmatprep.subr.mxu0 0.0
        %3463 = vmatpush1.msra.mxu0 0.0
        %3464 = vmatprep.subr.mxu0 0.0
        %3465 = vmatpush1.msra.mxu0 0.0
        %3466 = vmatprep.subr.mxu0 0.0
        %3467 = vmatpush1.msra.mxu0 0.0
        %3468 = vmatprep.subr.mxu0 0.0
        %3469 = vmatpush1.msra.mxu0 0.0
        %3470 = vmatprep.subr.mxu0 0.0
        %3471 = vmatpush1.msra.mxu0 0.0
        %3472 = vmatprep.subr.mxu0 0.0
        %3473 = vmatpush1.msra.mxu0 0.0
        %3474 = vmatprep.subr.mxu0 0.0
        %3475 = vmatpush1.msra.mxu0 0.0
        %3476 = vmatprep.subr.mxu0 0.0
        %3477 = vmatpush1.msra.mxu0 0.0
        %3478 = vmatprep.subr.mxu0 0.0
        %3479 = vmatpush1.msra.mxu0 0.0
        %3480 = vmatprep.subr.mxu0 0.0
        %3481 = vmatpush1.msra.mxu0 0.0
        %3482 = vmatprep.subr.mxu0 0.0
        %3483 = vmatpush1.msra.mxu0 0.0
        %3484 = vmatprep.subr.mxu0 0.0
        %3485 = vmatpush1.msra.mxu0 0.0
        %3486 = vmatprep.subr.mxu0 0.0
        %3487 = vmatpush1.msra.mxu0 0.0
        %3488 = vmatprep.subr.mxu0 0.0
        %3489 = vmatpush1.msra.mxu0 0.0
        %3490 = vmatprep.subr.mxu0 0.0
        %3491 = vmatpush1.msra.mxu0 0.0
        %3492 = vmatprep.subr.mxu0 0.0
        %3493 = vmatpush1.msra.mxu0 0.0
        %3494 = vmatprep.subr.mxu0 0.0
        %3495 = vmatpush1.msra.mxu0 0.0
        %3496 = vmatprep.subr.mxu0 0.0
        %3497 = vmatpush1.msra.mxu0 0.0
        %3498 = vmatprep.subr.mxu0 0.0
        %3499 = vmatpush1.msra.mxu0 0.0
        %3500 = vmatprep.subr.mxu0 0.0
        %3501 = vmatpush1.msra.mxu0 0.0
        %3502 = vmatprep.subr.mxu0 0.0
        %3503 = vmatpush1.msra.mxu0 0.0
        %3504 = vmatprep.subr.mxu0 0.0
        %3505 = vmatpush1.msra.mxu0 0.0
        %3506 = vmatprep.mubr.f32.mxu0 0.0
        %3507 = vmatmul.mubr.f32.gmra.mrb[0].mxu0 %v3437
        %v3508 = vpop.f32.mrb[0].mxu0
        %v3509 = vadd.f32 0.0, %v3508
        %v3510 = vpop.f32.mrb[0].mxu0
        %3511 = vmatprep.mubr.f32.mxu0 0.0
        %3512 = vmatmul.mubr.f32.gmra.mrb[0].mxu0 %v3440
        %v3513 = vpop.f32.mrb[0].mxu0
        %v3514 = vadd.f32 0.0, %v3513
        %v3515 = vpop.f32.mrb[0].mxu0
        %3516 = vdwg.mxu0
        %s3517 = scalar_lea.vmem %s740, 384 [#allocation12]
        %v3518 = vld [vmem:[%s3517] sm:$0xff]
        %v3519 = vld [vmem:[%s3517 + $0x8] sm:$0xff]
        %v3520 = vld [vmem:[%s3517 + $0x10] sm:$0xff]
        %v3521 = vld [vmem:[%s3517 + $0x18] sm:$0xff]
        %v3522 = vld [vmem:[%s3517 + $0x20] sm:$0xff]
        %v3523 = vld [vmem:[%s3517 + $0x28] sm:$0xff]
        %v3524 = vld [vmem:[%s3517 + $0x30] sm:$0xff]
        %v3525 = vld [vmem:[%s3517 + $0x38] sm:$0xff]
        %v3526 = vld [vmem:[%s3517 + $0x40] sm:$0xff]
        %v3527 = vld [vmem:[%s3517 + $0x48] sm:$0xff]
        %v3528 = vld [vmem:[%s3517 + $0x50] sm:$0xff]
        %v3529 = vld [vmem:[%s3517 + $0x58] sm:$0xff]
        %v3530 = vld [vmem:[%s3517 + $0x60] sm:$0xff]
        %v3531 = vld [vmem:[%s3517 + $0x68] sm:$0xff]
        %v3532 = vld [vmem:[%s3517 + $0x70] sm:$0xff]
        %v3533 = vld [vmem:[%s3517 + $0x78] sm:$0xff]
        %3534 = vmatprep.subr.mxu0 0.0
        %3535 = vmatpush1.msra.mxu0 %v3518
        %3536 = vmatprep.subr.mxu0 0.0
        %3537 = vmatpush1.msra.mxu0 %v3519
        %3538 = vmatprep.subr.mxu0 0.0
        %3539 = vmatpush1.msra.mxu0 %v3520
        %3540 = vmatprep.subr.mxu0 0.0
        %3541 = vmatpush1.msra.mxu0 %v3521
        %3542 = vmatprep.subr.mxu0 0.0
        %3543 = vmatpush1.msra.mxu0 %v3522
        %3544 = vmatprep.subr.mxu0 0.0
        %3545 = vmatpush1.msra.mxu0 %v3523
        %3546 = vmatprep.subr.mxu0 0.0
        %3547 = vmatpush1.msra.mxu0 %v3524
        %3548 = vmatprep.subr.mxu0 0.0
        %3549 = vmatpush1.msra.mxu0 %v3525
        %3550 = vmatprep.subr.mxu0 0.0
        %3551 = vmatpush1.msra.mxu0 %v3526
        %3552 = vmatprep.subr.mxu0 0.0
        %3553 = vmatpush1.msra.mxu0 %v3527
        %3554 = vmatprep.subr.mxu0 0.0
        %3555 = vmatpush1.msra.mxu0 %v3528
        %3556 = vmatprep.subr.mxu0 0.0
        %3557 = vmatpush1.msra.mxu0 %v3529
        %3558 = vmatprep.subr.mxu0 0.0
        %3559 = vmatpush1.msra.mxu0 %v3530
        %3560 = vmatprep.subr.mxu0 0.0
        %3561 = vmatpush1.msra.mxu0 %v3531
        %3562 = vmatprep.subr.mxu0 0.0
        %3563 = vmatpush1.msra.mxu0 %v3532
        %3564 = vmatprep.subr.mxu0 0.0
        %3565 = vmatpush1.msra.mxu0 %v3533
        %3566 = vmatprep.subr.mxu0 0.0
        %3567 = vmatpush1.msra.mxu0 0.0
        %3568 = vmatprep.subr.mxu0 0.0
        %3569 = vmatpush1.msra.mxu0 0.0
        %3570 = vmatprep.subr.mxu0 0.0
        %3571 = vmatpush1.msra.mxu0 0.0
        %3572 = vmatprep.subr.mxu0 0.0
        %3573 = vmatpush1.msra.mxu0 0.0
        %3574 = vmatprep.subr.mxu0 0.0
        %3575 = vmatpush1.msra.mxu0 0.0
        %3576 = vmatprep.subr.mxu0 0.0
        %3577 = vmatpush1.msra.mxu0 0.0
        %3578 = vmatprep.subr.mxu0 0.0
        %3579 = vmatpush1.msra.mxu0 0.0
        %3580 = vmatprep.subr.mxu0 0.0
        %3581 = vmatpush1.msra.mxu0 0.0
        %3582 = vmatprep.subr.mxu0 0.0
        %3583 = vmatpush1.msra.mxu0 0.0
        %3584 = vmatprep.subr.mxu0 0.0
        %3585 = vmatpush1.msra.mxu0 0.0
        %3586 = vmatprep.subr.mxu0 0.0
        %3587 = vmatpush1.msra.mxu0 0.0
        %3588 = vmatprep.subr.mxu0 0.0
        %3589 = vmatpush1.msra.mxu0 0.0
        %3590 = vmatprep.subr.mxu0 0.0
        %3591 = vmatpush1.msra.mxu0 0.0
        %3592 = vmatprep.subr.mxu0 0.0
        %3593 = vmatpush1.msra.mxu0 0.0
        %3594 = vmatprep.subr.mxu0 0.0
        %3595 = vmatpush1.msra.mxu0 0.0
        %3596 = vmatprep.subr.mxu0 0.0
        %3597 = vmatpush1.msra.mxu0 0.0
        %3598 = vmatprep.mubr.f32.mxu0 0.0
        %3599 = vmatmul.mubr.f32.gmra.mrb[0].mxu0 %v3428
        %v3600 = vpop.f32.mrb[0].mxu0
        %v3601 = vadd.f32 0.0, %v3600
        %v3602 = vpop.f32.mrb[0].mxu0
        %3603 = vmatprep.mubr.f32.mxu0 0.0
        %3604 = vmatmul.mubr.f32.gmra.mrb[0].mxu0 %v3433
        %v3605 = vpop.f32.mrb[0].mxu0
        %v3606 = vadd.f32 0.0, %v3605
        %v3607 = vpop.f32.mrb[0].mxu0
        %3608 = vmatprep.mubr.f32.mxu0 0.0
        %3609 = vmatmul.mubr.f32.gmra.mrb[0].mxu0 %v3509
        %v3610 = vpop.f32.mrb[0].mxu0
        %v3611 = vadd.f32 0.0, %v3610
        %v3612 = vpop.f32.mrb[0].mxu0
        %3613 = vmatprep.mubr.f32.mxu0 0.0
        %3614 = vmatmul.mubr.f32.gmra.mrb[0].mxu0 %v3514
        %v3615 = vpop.f32.mrb[0].mxu0
        %v3616 = vadd.f32 0.0, %v3615
        %v3617 = vpop.f32.mrb[0].mxu0
        %3618 = vdwg.mxu0
        %v3619 = vadd.f32 %v3157, %v3601
        %v3620 = vadd.f32 %v3158, %v3606
        %v3621 = vadd.f32 %v3159, %v3611
        %v3622 = vadd.f32 %v3160, %v3616
        %v3623 = vadd.f32 %v904, %v3619
        %v3624 = vadd.f32 %v905, %v3620
        %v3625 = vadd.f32 %v906, %v3621
        %v3626 = vadd.f32 %v907, %v3622
        %v3627 = vld [vmem:[%s748] sm:$0x1]
        %v3629 = vlaneseq
        %v3630 = vshrl.u32 %v3629, 7
        %v3631 = vsub.s32 0, %v3630
        %v3632 = vrot.slane %v3627, %v3631
        %v3634 = vadd.f32 %v3623, %v3632
        %v3635 = vadd.f32 %v3624, %v3632
        %v3636 = vadd.f32 %v3625, %v3632
        %v3637 = vadd.f32 %v3626, %v3632
        %3638 = vadd.xlane.f32.xlu0 %v3634
        %v3639 = vpop.xlane.xlu0 %3638
        %3640 = vadd.xlane.f32.xlu0 %v3635
        %v3641 = vpop.xlane.xlu0 %3640
        %3642 = vadd.xlane.f32.xlu0 %v3636
        %v3643 = vpop.xlane.xlu0 %3642
        %3644 = vadd.xlane.f32.xlu0 %v3637
        %v3645 = vpop.xlane.xlu0 %3644
        %v3646 = vadd.f32 %v3639, %v3641
        %v3647 = vrot.slane %v3646, 4
        %v3648 = vadd.f32 %v3646, %v3647
        %v3649 = vrot.slane %v3648, 2
        %v3650 = vadd.f32 %v3648, %v3649
        %v3651 = vrot.slane %v3650, 1
        %v3652 = vadd.f32 %v3650, %v3651
        %v3653 = vadd.f32 %v3643, %v3645
        %v3654 = vrot.slane %v3653, 4
        %v3655 = vadd.f32 %v3653, %v3654
        %v3656 = vrot.slane %v3655, 2
        %v3657 = vadd.f32 %v3655, %v3656
        %v3658 = vrot.slane %v3657, 1
        %v3659 = vadd.f32 %v3657, %v3658
        %v3660 = vmul.f32 %v3652, 0.001953125
        %v3661 = vmul.f32 %v3659, 0.001953125
        %v3662 = vsub.f32 %v3634, %v3660
        %v3663 = vsub.f32 %v3635, %v3660
        %v3664 = vsub.f32 %v3636, %v3661
        %v3665 = vsub.f32 %v3637, %v3661
        %v3666 = vmul.f32 %v3662, %v912
        %v3667 = vmul.f32 %v3663, %v912
        %v3668 = vmul.f32 %v3664, %v912
        %v3669 = vmul.f32 %v3665, %v912
        %v3670 = vmul.f32 %v3666, %v3666
        %v3671 = vmul.f32 %v3667, %v3667
        %v3672 = vmul.f32 %v3668, %v3668
        %v3673 = vmul.f32 %v3669, %v3669
        %3674 = vadd.xlane.f32.xlu0 %v3670
        %v3675 = vpop.xlane.xlu0 %3674
        %3676 = vadd.xlane.f32.xlu0 %v3671
        %v3677 = vpop.xlane.xlu0 %3676
        %3678 = vadd.xlane.f32.xlu0 %v3672
        %v3679 = vpop.xlane.xlu0 %3678
        %3680 = vadd.xlane.f32.xlu0 %v3673
        %v3681 = vpop.xlane.xlu0 %3680
        %v3682 = vadd.f32 %v3675, %v3677
        %v3683 = vrot.slane %v3682, 4
        %v3684 = vadd.f32 %v3682, %v3683
        %v3685 = vrot.slane %v3684, 2
        %v3686 = vadd.f32 %v3684, %v3685
        %v3687 = vrot.slane %v3686, 1
        %v3688 = vadd.f32 %v3686, %v3687
        %v3689 = vadd.f32 %v3679, %v3681
        %v3690 = vrot.slane %v3689, 4
        %v3691 = vadd.f32 %v3689, %v3690
        %v3692 = vrot.slane %v3691, 2
        %v3693 = vadd.f32 %v3691, %v3692
        %v3694 = vrot.slane %v3693, 1
        %v3695 = vadd.f32 %v3693, %v3694
        %v3696 = vmul.f32 %v3688, 0.001953125
        %v3697 = vmul.f32 %v3695, 0.001953125
        %v3698 = vadd.f32 %v3696, 1e-05
        %v3699 = vadd.f32 %v3697, 1e-05
        %v3700 = vrsqrt.pop %v3698
        %v3701 = vrsqrt.pop %v3699
        %v3702 = vmul.f32 %v3666, %v3700
        %v3703 = vmul.f32 %v3667, %v3700
        %v3704 = vmul.f32 %v3668, %v3701
        %v3705 = vmul.f32 %v3669, %v3701
        %v3706 = vld [vmem:[%s757] sm:$0xff]
        %v3707 = vld [vmem:[%s757 + $0x8] sm:$0xff]
        %v3708 = vmul.f32 %v3702, %v3706
        %v3709 = vmul.f32 %v3703, %v3707
        %v3710 = vmul.f32 %v3704, %v3706
        %v3711 = vmul.f32 %v3705, %v3707
        %v3712 = vld [vmem:[%s766] sm:$0xff]
        %v3713 = vld [vmem:[%s766 + $0x8] sm:$0xff]
        %v3714 = vadd.f32 %v3708, %v3712
        %v3715 = vadd.f32 %v3709, %v3713
        %v3716 = vadd.f32 %v3710, %v3712
        %v3717 = vadd.f32 %v3711, %v3713
        %v3718 = vld [vmem:[%s775] sm:$0xff]
        %v3719 = vld [vmem:[%s775 + $0x8] sm:$0xff]
        %v3720 = vld [vmem:[%s775 + $0x10] sm:$0xff]
        %v3721 = vld [vmem:[%s775 + $0x18] sm:$0xff]
        %v3722 = vld [vmem:[%s775 + $0x20] sm:$0xff]
        %v3723 = vld [vmem:[%s775 + $0x28] sm:$0xff]
        %v3724 = vld [vmem:[%s775 + $0x30] sm:$0xff]
        %v3725 = vld [vmem:[%s775 + $0x38] sm:$0xff]
        %v3726 = vld [vmem:[%s775 + $0x40] sm:$0xff]
        %v3727 = vld [vmem:[%s775 + $0x48] sm:$0xff]
        %v3728 = vld [vmem:[%s775 + $0x50] sm:$0xff]
        %v3729 = vld [vmem:[%s775 + $0x58] sm:$0xff]
        %v3730 = vld [vmem:[%s775 + $0x60] sm:$0xff]
        %v3731 = vld [vmem:[%s775 + $0x68] sm:$0xff]
        %v3732 = vld [vmem:[%s775 + $0x70] sm:$0xff]
        %v3733 = vld [vmem:[%s775 + $0x78] sm:$0xff]
        %v3734 = vld [vmem:[%s783] sm:$0x1]
        %v3736 = vlaneseq
        %v3737 = vshrl.u32 %v3736, 7
        %v3738 = vsub.s32 0, %v3737
        %v3739 = vrot.slane %v3734, %v3738
        %3741 = vmatprep.subr.mxu0 0.0
        %3742 = vmatpush1.msra.mxu0 %v3718
        %3743 = vmatprep.subr.mxu0 0.0
        %3744 = vmatpush1.msra.mxu0 %v3719
        %3745 = vmatprep.subr.mxu0 0.0
        %3746 = vmatpush1.msra.mxu0 %v3720
        %3747 = vmatprep.subr.mxu0 0.0
        %3748 = vmatpush1.msra.mxu0 %v3721
        %3749 = vmatprep.subr.mxu0 0.0
        %3750 = vmatpush1.msra.mxu0 %v3722
        %3751 = vmatprep.subr.mxu0 0.0
        %3752 = vmatpush1.msra.mxu0 %v3723
        %3753 = vmatprep.subr.mxu0 0.0
        %3754 = vmatpush1.msra.mxu0 %v3724
        %3755 = vmatprep.subr.mxu0 0.0
        %3756 = vmatpush1.msra.mxu0 %v3725
        %3757 = vmatprep.subr.mxu0 0.0
        %3758 = vmatpush1.msra.mxu0 %v3726
        %3759 = vmatprep.subr.mxu0 0.0
        %3760 = vmatpush1.msra.mxu0 %v3727
        %3761 = vmatprep.subr.mxu0 0.0
        %3762 = vmatpush1.msra.mxu0 %v3728
        %3763 = vmatprep.subr.mxu0 0.0
        %3764 = vmatpush1.msra.mxu0 %v3729
        %3765 = vmatprep.subr.mxu0 0.0
        %3766 = vmatpush1.msra.mxu0 %v3730
        %3767 = vmatprep.subr.mxu0 0.0
        %3768 = vmatpush1.msra.mxu0 %v3731
        %3769 = vmatprep.subr.mxu0 0.0
        %3770 = vmatpush1.msra.mxu0 %v3732
        %3771 = vmatprep.subr.mxu0 0.0
        %3772 = vmatpush1.msra.mxu0 %v3733
        %3773 = vmatprep.subr.mxu0 0.0
        %3774 = vmatpush1.msra.mxu0 0.0
        %3775 = vmatprep.subr.mxu0 0.0
        %3776 = vmatpush1.msra.mxu0 0.0
        %3777 = vmatprep.subr.mxu0 0.0
        %3778 = vmatpush1.msra.mxu0 0.0
        %3779 = vmatprep.subr.mxu0 0.0
        %3780 = vmatpush1.msra.mxu0 0.0
        %3781 = vmatprep.subr.mxu0 0.0
        %3782 = vmatpush1.msra.mxu0 0.0
        %3783 = vmatprep.subr.mxu0 0.0
        %3784 = vmatpush1.msra.mxu0 0.0
        %3785 = vmatprep.subr.mxu0 0.0
        %3786 = vmatpush1.msra.mxu0 0.0
        %3787 = vmatprep.subr.mxu0 0.0
        %3788 = vmatpush1.msra.mxu0 0.0
        %3789 = vmatprep.subr.mxu0 0.0
        %3790 = vmatpush1.msra.mxu0 0.0
        %3791 = vmatprep.subr.mxu0 0.0
        %3792 = vmatpush1.msra.mxu0 0.0
        %3793 = vmatprep.subr.mxu0 0.0
        %3794 = vmatpush1.msra.mxu0 0.0
        %3795 = vmatprep.subr.mxu0 0.0
        %3796 = vmatpush1.msra.mxu0 0.0
        %3797 = vmatprep.subr.mxu0 0.0
        %3798 = vmatpush1.msra.mxu0 0.0
        %3799 = vmatprep.subr.mxu0 0.0
        %3800 = vmatpush1.msra.mxu0 0.0
        %3801 = vmatprep.subr.mxu0 0.0
        %3802 = vmatpush1.msra.mxu0 0.0
        %3803 = vmatprep.subr.mxu0 0.0
        %3804 = vmatpush1.msra.mxu0 0.0
        %3805 = vmatprep.mubr.f32.mxu0 0.0
        %3806 = vmatmul.mubr.f32.gmra.mrb[0].mxu0 %v3714
        %v3807 = vpop.f32.mrb[0].mxu0
        %v3808 = vadd.f32 %v3739, %v3807
        %v3809 = vpop.f32.mrb[0].mxu0
        %3810 = vmatprep.mubr.f32.mxu0 0.0
        %3811 = vmatmul.mubr.f32.gmra.mrb[0].mxu0 %v3715
        %v3812 = vpop.f32.mrb[0].mxu0
        %v3813 = vadd.f32 %v3739, %v3812
        %v3814 = vpop.f32.mrb[0].mxu0
        %3815 = vmatprep.mubr.f32.mxu0 0.0
        %3816 = vmatmul.mubr.f32.gmra.mrb[0].mxu0 %v3716
        %v3817 = vpop.f32.mrb[0].mxu0
        %v3818 = vadd.f32 %v3739, %v3817
        %v3819 = vpop.f32.mrb[0].mxu0
        %3820 = vmatprep.mubr.f32.mxu0 0.0
        %3821 = vmatmul.mubr.f32.gmra.mrb[0].mxu0 %v3717
        %v3822 = vpop.f32.mrb[0].mxu0
        %v3823 = vadd.f32 %v3739, %v3822
        %v3824 = vpop.f32.mrb[0].mxu0
        %3825 = vdwg.mxu0
        %v3826 = vxor.u32 %v3808, 2147483648
        %v3827 = vxor.u32 %v3813, 2147483648
        %v3828 = vxor.u32 %v3818, 2147483648
        %v3829 = vxor.u32 %v3823, 2147483648
        %v3830 = vmul.f32 %v3826, 1.442695
        %v3831 = vpow.pop %v3830
        %v3832 = vmul.f32 %v3827, 1.442695
        %v3833 = vpow.pop %v3832
        %v3834 = vmul.f32 %v3828, 1.442695
        %v3835 = vpow.pop %v3834
        %v3836 = vmul.f32 %v3829, 1.442695
        %v3837 = vpow.pop %v3836
        %v3838 = vadd.f32 %v3831, 1.0
        %v3839 = vadd.f32 %v3833, 1.0
        %v3840 = vadd.f32 %v3835, 1.0
        %v3841 = vadd.f32 %v3837, 1.0
        %v3842 = vrcp.pop %v3838
        %v3843 = vmul.f32 1.0, %v3842
        %v3844 = vrcp.pop %v3839
        %v3845 = vmul.f32 1.0, %v3844
        %v3846 = vrcp.pop %v3840
        %v3847 = vmul.f32 1.0, %v3846
        %v3848 = vrcp.pop %v3841
        %v3849 = vmul.f32 1.0, %v3848
        %v3850 = vmul.f32 %v3843, %v3808
        %v3851 = vmul.f32 %v3845, %v3813
        %v3852 = vmul.f32 %v3847, %v3818
        %v3853 = vmul.f32 %v3849, %v3823
        %v3854 = vld [vmem:[%s792] sm:$0xff]
        %v3855 = vld [vmem:[%s792 + $0x8] sm:$0xff]
        %v3856 = vld [vmem:[%s792 + $0x10] sm:$0xff]
        %v3857 = vld [vmem:[%s792 + $0x18] sm:$0xff]
        %v3858 = vld [vmem:[%s792 + $0x20] sm:$0xff]
        %v3859 = vld [vmem:[%s792 + $0x28] sm:$0xff]
        %v3860 = vld [vmem:[%s792 + $0x30] sm:$0xff]
        %v3861 = vld [vmem:[%s792 + $0x38] sm:$0xff]
        %v3862 = vld [vmem:[%s792 + $0x40] sm:$0xff]
        %v3863 = vld [vmem:[%s792 + $0x48] sm:$0xff]
        %v3864 = vld [vmem:[%s792 + $0x50] sm:$0xff]
        %v3865 = vld [vmem:[%s792 + $0x58] sm:$0xff]
        %v3866 = vld [vmem:[%s792 + $0x60] sm:$0xff]
        %v3867 = vld [vmem:[%s792 + $0x68] sm:$0xff]
        %v3868 = vld [vmem:[%s792 + $0x70] sm:$0xff]
        %v3869 = vld [vmem:[%s792 + $0x78] sm:$0xff]
        %v3870 = vld [vmem:[%s800] sm:$0x1]
        %v3872 = vlaneseq
        %v3873 = vshrl.u32 %v3872, 7
        %v3874 = vsub.s32 0, %v3873
        %v3875 = vrot.slane %v3870, %v3874
        %3877 = vmatprep.subr.mxu0 0.0
        %3878 = vmatpush1.msra.mxu0 %v3854
        %3879 = vmatprep.subr.mxu0 0.0
        %3880 = vmatpush1.msra.mxu0 %v3855
        %3881 = vmatprep.subr.mxu0 0.0
        %3882 = vmatpush1.msra.mxu0 %v3856
        %3883 = vmatprep.subr.mxu0 0.0
        %3884 = vmatpush1.msra.mxu0 %v3857
        %3885 = vmatprep.subr.mxu0 0.0
        %3886 = vmatpush1.msra.mxu0 %v3858
        %3887 = vmatprep.subr.mxu0 0.0
        %3888 = vmatpush1.msra.mxu0 %v3859
        %3889 = vmatprep.subr.mxu0 0.0
        %3890 = vmatpush1.msra.mxu0 %v3860
        %3891 = vmatprep.subr.mxu0 0.0
        %3892 = vmatpush1.msra.mxu0 %v3861
        %3893 = vmatprep.subr.mxu0 0.0
        %3894 = vmatpush1.msra.mxu0 %v3862
        %3895 = vmatprep.subr.mxu0 0.0
        %3896 = vmatpush1.msra.mxu0 %v3863
        %3897 = vmatprep.subr.mxu0 0.0
        %3898 = vmatpush1.msra.mxu0 %v3864
        %3899 = vmatprep.subr.mxu0 0.0
        %3900 = vmatpush1.msra.mxu0 %v3865
        %3901 = vmatprep.subr.mxu0 0.0
        %3902 = vmatpush1.msra.mxu0 %v3866
        %3903 = vmatprep.subr.mxu0 0.0
        %3904 = vmatpush1.msra.mxu0 %v3867
        %3905 = vmatprep.subr.mxu0 0.0
        %3906 = vmatpush1.msra.mxu0 %v3868
        %3907 = vmatprep.subr.mxu0 0.0
        %3908 = vmatpush1.msra.mxu0 %v3869
        %3909 = vmatprep.subr.mxu0 0.0
        %3910 = vmatpush1.msra.mxu0 0.0
        %3911 = vmatprep.subr.mxu0 0.0
        %3912 = vmatpush1.msra.mxu0 0.0
        %3913 = vmatprep.subr.mxu0 0.0
        %3914 = vmatpush1.msra.mxu0 0.0
        %3915 = vmatprep.subr.mxu0 0.0
        %3916 = vmatpush1.msra.mxu0 0.0
        %3917 = vmatprep.subr.mxu0 0.0
        %3918 = vmatpush1.msra.mxu0 0.0
        %3919 = vmatprep.subr.mxu0 0.0
        %3920 = vmatpush1.msra.mxu0 0.0
        %3921 = vmatprep.subr.mxu0 0.0
        %3922 = vmatpush1.msra.mxu0 0.0
        %3923 = vmatprep.subr.mxu0 0.0
        %3924 = vmatpush1.msra.mxu0 0.0
        %3925 = vmatprep.subr.mxu0 0.0
        %3926 = vmatpush1.msra.mxu0 0.0
        %3927 = vmatprep.subr.mxu0 0.0
        %3928 = vmatpush1.msra.mxu0 0.0
        %3929 = vmatprep.subr.mxu0 0.0
        %3930 = vmatpush1.msra.mxu0 0.0
        %3931 = vmatprep.subr.mxu0 0.0
        %3932 = vmatpush1.msra.mxu0 0.0
        %3933 = vmatprep.subr.mxu0 0.0
        %3934 = vmatpush1.msra.mxu0 0.0
        %3935 = vmatprep.subr.mxu0 0.0
        %3936 = vmatpush1.msra.mxu0 0.0
        %3937 = vmatprep.subr.mxu0 0.0
        %3938 = vmatpush1.msra.mxu0 0.0
        %3939 = vmatprep.subr.mxu0 0.0
        %3940 = vmatpush1.msra.mxu0 0.0
        %3941 = vmatprep.mubr.f32.mxu0 0.0
        %3942 = vmatmul.mubr.f32.gmra.mrb[0].mxu0 %v3850
        %v3943 = vpop.f32.mrb[0].mxu0
        %v3944 = vadd.f32 %v3875, %v3943
        %v3945 = vpop.f32.mrb[0].mxu0
        %3946 = vmatprep.mubr.f32.mxu0 0.0
        %3947 = vmatmul.mubr.f32.gmra.mrb[0].mxu0 %v3851
        %v3948 = vpop.f32.mrb[0].mxu0
        %v3949 = vadd.f32 %v3875, %v3948
        %v3950 = vpop.f32.mrb[0].mxu0
        %3951 = vmatprep.mubr.f32.mxu0 0.0
        %3952 = vmatmul.mubr.f32.gmra.mrb[0].mxu0 %v3852
        %v3953 = vpop.f32.mrb[0].mxu0
        %v3954 = vadd.f32 %v3875, %v3953
        %v3955 = vpop.f32.mrb[0].mxu0
        %3956 = vmatprep.mubr.f32.mxu0 0.0
        %3957 = vmatmul.mubr.f32.gmra.mrb[0].mxu0 %v3853
        %v3958 = vpop.f32.mrb[0].mxu0
        %v3959 = vadd.f32 %v3875, %v3958
        %v3960 = vpop.f32.mrb[0].mxu0
        %3961 = vdwg.mxu0
        %v3962 = vadd.f32 %v3634, %v3944
        %v3963 = vadd.f32 %v3635, %v3949
        %v3964 = vadd.f32 %v3636, %v3954
        %v3965 = vadd.f32 %v3637, %v3959
        %3966 = vst [vmem:[#allocation2] sm:$0xff] %v3962
        %3967 = vst [vmem:[#allocation2 + $0x8] sm:$0xff] %v3963
        %3968 = vst [vmem:[#allocation2 + $0x10] sm:$0xff] %v3964
        %3969 = vst [vmem:[#allocation2 + $0x18] sm:$0xff] %v3965
        %p3970 = scmp.eq.s32.totalorder %s49, 1
        // Predicated region
        $region129: #{tpu_custom_call.1} parent=71 // pred_check
          %p3971 = pneg %p3970
        $region130: #{tpu_custom_call.1} parent=71 // pred_check_branch
          %3973 = sbr.rel (%p3971) target = $region132
        $region131: #{tpu_custom_call.1} parent=71 // pred_region
          %v3974 = vmul.f32 %v3962, %v3962
          %v3975 = vmul.f32 %v3963, %v3963
          %v3976 = vmul.f32 %v3964, %v3964
          %v3977 = vmul.f32 %v3965, %v3965
          %3978 = vadd.xlane.f32.xlu0 %v3974
          %v3979 = vpop.xlane.xlu0 %3978
          %3980 = vadd.xlane.f32.xlu0 %v3975
          %v3981 = vpop.xlane.xlu0 %3980
          %3982 = vadd.xlane.f32.xlu0 %v3976
          %v3983 = vpop.xlane.xlu0 %3982
          %3984 = vadd.xlane.f32.xlu0 %v3977
          %v3985 = vpop.xlane.xlu0 %3984
          %v3986 = vmax.f32 %v3979, 1e-24
          %v3987 = vmax.f32 %v3981, 1e-24
          %v3988 = vmax.f32 %v3983, 1e-24
          %v3989 = vmax.f32 %v3985, 1e-24
          %v3990 = vrsqrt.pop %v3986
          %v3991 = vrsqrt.pop %v3987
          %v3992 = vrsqrt.pop %v3988
          %v3993 = vrsqrt.pop %v3989
          %v3994 = vmul.f32 %v3962, %v3990
          %v3995 = vmul.f32 %v3963, %v3991
          %v3996 = vmul.f32 %v3964, %v3992
          %v3997 = vmul.f32 %v3965, %v3993
          %3998 = vst [vmem:[#allocation24] sm:$0xff] %v3994
          %3999 = vst [vmem:[#allocation24 + $0x8] sm:$0xff] %v3995
          %4000 = vst [vmem:[#allocation24 + $0x10] sm:$0xff] %v3996
          %4001 = vst [vmem:[#allocation24 + $0x18] sm:$0xff] %v3997
        $region132: #{tpu_custom_call.1} parent=71 // pred_fallthru
          _
        // Predicated region
        $region133: #{tpu_custom_call.1} parent=71 // pred_check
          %p4002 = pneg %p412
        $region134: #{tpu_custom_call.1} parent=71 // pred_check_branch
          %4004 = sbr.rel (%p4002) target = $region136
        $region135: #{tpu_custom_call.1} parent=71 // pred_region
          %s4005 = smul.u32 2, %s48
          %s4007 = ssub.s32 512, 512
          %4008 = vsyncadd [#allocation5], %s4007
          %s4009 = smul.addr %s4005, 2
          %s4010 = smul.addr %s4009, 128
          %s4011 = scalar_lea.hbm %s13, %s4010
          %s4012 = sshll.u32 [#allocation24], 4
          %s4013 = int_to_ptr.vmem [resolvable:$true] %s4012
          %4018 = dma.vmem_to_hbm [thread:$0]  %s4013, 512, %s4011, [#allocation5], 128, 128, 8
        $region136: #{tpu_custom_call.1} parent=71 // pred_fallthru
          _
        // Predicated region
        $region137: #{tpu_custom_call.1} parent=71 // pred_check
          %p4019 = pneg %p412
        $region138: #{tpu_custom_call.1} parent=71 // pred_check_branch
          %4021 = sbr.rel (%p4019) target = $region140
        $region139: #{tpu_custom_call.1} parent=71 // pred_region
          %4022 = dma.done [#allocation5], 512
        $region140: #{tpu_custom_call.1} parent=71 // pred_fallthru
          _
      $region72: #{tpu_custom_call.1} parent=5 // pred_fallthru
        _
      %p4023 = scmp.le.s32.totalorder 2, %s39
      // Predicated region
      $region141: #{tpu_custom_call.1} parent=5 // pred_check
        %p4024 = pneg %p4023
      $region142: #{tpu_custom_call.1} parent=5 // pred_check_branch
        %4026 = sbr.rel (%p4024) target = $region144
      $region143: #{tpu_custom_call.1} parent=5 // pred_region
        %s4027 = ssub.s32 %s39, 2
      $region144: #{tpu_custom_call.1} parent=5 // pred_fallthru
        _
    $region6: #{tpu_custom_call.1} parent=1 // loop_footer
      %s43 = sadd.s32 1, %s39
    $region7: #{tpu_custom_call.1} parent=1 // loop_footer_branch
      %38 = sbr.rel target = $region3
    $region8: #{tpu_custom_call.1} parent=1 // loop_exit
      _
    %4028 = vsyncpa [#allocation4], 1
    %s4029 = scalar_lea.sflag [#allocation4], 1
    %4030 = vsyncpa %s4029, 1
    %4031 = vsyncpa [#allocation7], 1
    %s4032 = scalar_lea.sflag [#allocation7], 1
    %4033 = vsyncpa %s4032, 1
    %4034 = vsyncpa [#allocation10], 1
    %s4035 = scalar_lea.sflag [#allocation10], 1
    %4036 = vsyncpa %s4035, 1
    %4037 = vsyncpa [#allocation13], 1
    %s4038 = scalar_lea.sflag [#allocation13], 1
    %4039 = vsyncpa %s4038, 1
    %4040 = vsyncpa [#allocation16], 1
    %s4041 = scalar_lea.sflag [#allocation16], 1
    %4042 = vsyncpa %s4041, 1
    %4043 = vsyncpa [#allocation19], 1
    %s4044 = scalar_lea.sflag [#allocation19], 1
    %4045 = vsyncpa %s4044, 1
    %4046 = vsyncpa [#allocation22], 1
    %s4047 = scalar_lea.sflag [#allocation22], 1
    %4048 = vsyncpa %s4047, 1
    %4049 = vsyncpa [#allocation5], 1
    %s4050 = scalar_lea.sflag [#allocation5], 1
    %4051 = vsyncpa %s4050, 1

</llo_original>
